<compile_context>
chip_gen: v6e
topology: v6e:2x2x1
jax: 0.10.0
libtpu: 0.0.40
codegen_flags: <defaults>
</compile_context>

<pallas_src>
import numpy as np
import jax
import jax.numpy as jnp
from jax import lax
from jax.experimental import pallas as pl
from jax.experimental.pallas import tpu as pltpu  # noqa: F401  (kept for CompilerParams tuning)


def upsample_conv_kernel(g_ref, m_ref, bv_ref, o_ref):
    # g_ref : (N, H+2, Kp)      raw NHWC rows, zero-padded, (x, c)-flattened, lane-padded to Kp
    # m_ref : (3, Kp, 2*Wo*C)   band matrices: nearest-2x upsample + 3x3 conv + padding folded in
    # bv_ref: (1, 2*Wo*C)       lane-periodic bias
    # o_ref : (N, H, 2*Wo*C)    packed output: row i = [conv row 2i | conv row 2i+1]
    N, Hp2, _ = g_ref.shape
    H = Hp2 - 2
    bias = bv_ref[...]                              # (1, 2*Wo*C); broadcast once, hoisted
    m0, m1, m2 = m_ref[0], m_ref[1], m_ref[2]       # (Kp, 2*Wo*C) each; streamed from VMEM by MXU
    for n in range(N):                              # static unroll over the (small) batch
        g = g_ref[n]                                # (H+2, Kp)
        # Packed output row i is a linear map of raw padded rows i, i+1, i+2 (g row j = raw row
        # j-1; rows 0 and H+1 are the zero pad, so image borders need no special casing).
        acc = jnp.dot(g[0:H, :], m0, preferred_element_type=jnp.float32,
                      precision=lax.Precision.HIGHEST)
        acc = acc + jnp.dot(g[1:H + 1, :], m1, preferred_element_type=jnp.float32,
                            precision=lax.Precision.HIGHEST)
        acc = acc + jnp.dot(g[2:H + 2, :], m2, preferred_element_type=jnp.float32,
                            precision=lax.Precision.HIGHEST)
        o_ref[n] = (acc + bias).astype(o_ref.dtype)  # (H, 2*Wo*C): lane-dense, unmasked stores


def build_upsample_tables(w, b, H, W):
    """Fold nearest-2x upsample + 3x3 'same' conv + zero padding into 3 band matrices (host-side).

    Packed output row i of an image holds [conv row 2i | conv row 2i+1], each half laid out as
    lane = xo*C + co.  That row is a linear function of the raw zero-padded input rows i, i+1,
    i+2 (g row j = raw row j-1; rows 0 / H+1 are the pad), flattened as lane = xc*C + ci with xc
    the padded column index.  M[s] maps g row i+s into the packed output row.
    """
    w = np.asarray(w, np.float32)                    # (C, C, 3, 3) OIHW
    b = np.asarray(b, np.float32)                    # (C,)
    C = w.shape[0]
    Wo = 2 * W
    woc = Wo * C
    k_raw = (W + 2) * C
    k_pad = int(max(128, -(-k_raw // 128) * 128))    # lane-pad to a multiple of 128 (review #9)
    M = np.zeros((3, k_pad, 2 * woc), np.float32)
    for parity in range(2):                          # even / odd output row of the pair
        for ky in range(3):
            s = (parity - 1 + ky) // 2 + 1           # which g row (i + s) this tap reads
            for xo in range(Wo):
                for kx in range(3):
                    xc = (xo - 1 + kx) // 2 + 1      # padded input column (0 and W+1 are the pad)
                    for co in range(C):
                        l = parity * woc + xo * C + co
                        for ci in range(C):
                            M[s, xc * C + ci, l] += w[co, ci, ky, kx]
    bvec = np.tile(b, 2 * Wo)[None, :]               # (1, 2*woc): lane-periodic bias
    return jnp.asarray(M), jnp.asarray(bvec)


@jax.jit
def upsample_forward(x, band, bvec):
    """x: (N, C, H, W) f32; band/bvec from build_upsample_tables.  Returns (N, C, 2H, 2W)."""
    N, C, H, W = x.shape
    Wo = 2 * W
    woc = Wo * C
    k_pad = band.shape[1]
    extra = k_pad - (W + 2) * C

    # Glue kept to a minimum: NHWC transpose + one zero pad (1 row / 1 col each side, plus the
    # lane pad up to k_pad folded into the same pad op) + a free reshape.  No jnp.repeat anymore.
    xh = jnp.transpose(x, (0, 2, 3, 1))                                  # (N, H, W, C)
    if extra % C == 0:
        xh = jnp.pad(xh, ((0, 0), (1, 1), (1, 1 + extra // C), (0, 0)))  # (N, H+2, k_pad//C, C)
        g = xh.reshape(N, H + 2, k_pad)
    else:
        xh = jnp.pad(xh, ((0, 0), (1, 1), (1, 1), (0, 0)))
        g = jnp.pad(xh.reshape(N, H + 2, (W + 2) * C), ((0, 0), (0, 0), (0, extra)))

    out_flat = pl.pallas_call(
        upsample_conv_kernel,
        out_shape=jax.ShapeDtypeStruct((N, H, 2 * woc), x.dtype),
        # No grid: the whole (tiny) batch is one step; default BlockSpecs place everything in VMEM.
    )(g, band, bvec)

    # Packed (even|odd) rows interleave correctly under this reshape.
    out = out_flat.reshape(N, 2 * H, Wo, C)
    return jnp.transpose(out, (0, 3, 1, 2))                              # back to NCHW


def reference_forward(x, w, b):
    u = jnp.repeat(jnp.repeat(x, 2, axis=2), 2, axis=3)
    y = lax.conv_general_dilated(
        u, w, window_strides=(1, 1), padding=((1, 1), (1, 1)),
        dimension_numbers=("NCHW", "OIHW", "NCHW"),
        precision=lax.Precision.HIGHEST)
    return y + b[None, :, None, None]


if __name__ == "__main__":
    key = jax.random.PRNGKey(0)
    kx, kw, kb = jax.random.split(key, 3)

    N, C, H, W = 2, 4, 16, 16
    x = jax.random.normal(kx, (N, C, H, W), dtype=jnp.float32)

    # deterministic Conv2d(C, C, kernel_size=3, padding=1) params (PyTorch-style uniform bound)
    fan_in = C * 3 * 3
    bound = 1.0 / (fan_in ** 0.5)
    w = jax.random.uniform(kw, (C, C, 3, 3), jnp.float32, -bound, bound)
    b = jax.random.uniform(kb, (C,), jnp.float32, -bound, bound)

    band, bvec = build_upsample_tables(w, b, H, W)   # host-side, once per weight set

    y = jax.block_until_ready(upsample_forward(x, band, bvec))
    y_ref = jax.block_until_ready(reference_forward(x, w, b))

    assert y.shape == (N, C, 2 * H, 2 * W), y.shape
    max_err = float(jnp.max(jnp.abs(y - y_ref)))
    assert jnp.allclose(y, y_ref, rtol=1e-5, atol=1e-5), max_err
    print("KERNEL_OK")
</pallas_src>

<mosaic_0001>
module attributes {stable_mosaic.version = 11 : i64} {
  func.func @upsample_conv_kernel(%arg0: memref<2x18x128xf32, #tpu.memory_space<vmem>>, %arg1: memref<3x128x256xf32, #tpu.memory_space<vmem>>, %arg2: memref<1x256xf32, #tpu.memory_space<vmem>>, %arg3: memref<2x16x256xf32, #tpu.memory_space<vmem>>) attributes {dimension_semantics = [], scalar_prefetch = 0 : i64, scratch_operands = 0 : i64, tpu.core_type = #tpu.core_type<tc>} {
    %c0 = arith.constant 0 : index
    %c0_0 = arith.constant 0 : index
    %0 = vector.load %arg2[%c0, %c0_0] : memref<1x256xf32, #tpu.memory_space<vmem>>, vector<1x256xf32>
    %c0_1 = arith.constant 0 : index
    %c0_2 = arith.constant 0 : index
    %c0_3 = arith.constant 0 : index
    %1 = vector.load %arg1[%c0_1, %c0_2, %c0_3] : memref<3x128x256xf32, #tpu.memory_space<vmem>>, vector<1x128x256xf32>
    %2 = vector.shape_cast %1 : vector<1x128x256xf32> to vector<128x256xf32>
    %c1 = arith.constant 1 : index
    %c0_4 = arith.constant 0 : index
    %c0_5 = arith.constant 0 : index
    %3 = vector.load %arg1[%c1, %c0_4, %c0_5] : memref<3x128x256xf32, #tpu.memory_space<vmem>>, vector<1x128x256xf32>
    %4 = vector.shape_cast %3 : vector<1x128x256xf32> to vector<128x256xf32>
    %c2 = arith.constant 2 : index
    %c0_6 = arith.constant 0 : index
    %c0_7 = arith.constant 0 : index
    %5 = vector.load %arg1[%c2, %c0_6, %c0_7] : memref<3x128x256xf32, #tpu.memory_space<vmem>>, vector<1x128x256xf32>
    %6 = vector.shape_cast %5 : vector<1x128x256xf32> to vector<128x256xf32>
    %c0_8 = arith.constant 0 : index
    %c0_9 = arith.constant 0 : index
    %c0_10 = arith.constant 0 : index
    %7 = vector.load %arg0[%c0_8, %c0_9, %c0_10] : memref<2x18x128xf32, #tpu.memory_space<vmem>>, vector<1x18x128xf32>
    %8 = vector.shape_cast %7 : vector<1x18x128xf32> to vector<18x128xf32>
    %9 = vector.extract_strided_slice %8 {offsets = [0, 0], sizes = [16, 128], strides = [1, 1]} : vector<18x128xf32> to vector<16x128xf32>
    %cst = arith.constant dense<0.000000e+00> : vector<16x256xf32>
    %10 = tpu.matmul %9, %2, %cst {dimension_numbers = #tpu.dot_dimension_numbers<[1], [0], [0], [1], [0, 0, 1, 1], [], []>, precision = #tpu.contract_precision<fp32>} : vector<16x128xf32>, vector<128x256xf32>, vector<16x256xf32> -> vector<16x256xf32>
    %11 = vector.extract_strided_slice %8 {offsets = [1, 0], sizes = [16, 128], strides = [1, 1]} : vector<18x128xf32> to vector<16x128xf32>
    %cst_11 = arith.constant dense<0.000000e+00> : vector<16x256xf32>
    %12 = tpu.matmul %11, %4, %cst_11 {dimension_numbers = #tpu.dot_dimension_numbers<[1], [0], [0], [1], [0, 0, 1, 1], [], []>, precision = #tpu.contract_precision<fp32>} : vector<16x128xf32>, vector<128x256xf32>, vector<16x256xf32> -> vector<16x256xf32>
    %13 = arith.addf %10, %12 : vector<16x256xf32>
    %14 = vector.extract_strided_slice %8 {offsets = [2, 0], sizes = [16, 128], strides = [1, 1]} : vector<18x128xf32> to vector<16x128xf32>
    %cst_12 = arith.constant dense<0.000000e+00> : vector<16x256xf32>
    %15 = tpu.matmul %14, %6, %cst_12 {dimension_numbers = #tpu.dot_dimension_numbers<[1], [0], [0], [1], [0, 0, 1, 1], [], []>, precision = #tpu.contract_precision<fp32>} : vector<16x128xf32>, vector<128x256xf32>, vector<16x256xf32> -> vector<16x256xf32>
    %16 = arith.addf %13, %15 : vector<16x256xf32>
    %17 = vector.broadcast %0 : vector<1x256xf32> to vector<16x256xf32>
    %18 = arith.addf %16, %17 : vector<16x256xf32>
    %c0_13 = arith.constant 0 : index
    %c0_14 = arith.constant 0 : index
    %c0_15 = arith.constant 0 : index
    %19 = vector.load %arg3[%c0_13, %c0_14, %c0_15] : memref<2x16x256xf32, #tpu.memory_space<vmem>>, vector<1x16x256xf32>
    %20 = vector.shape_cast %19 : vector<1x16x256xf32> to vector<16x256xf32>
    %21 = vector.shape_cast %18 : vector<16x256xf32> to vector<1x16x256xf32>
    tpu.vector_store %arg3[%c0_13, %c0_14, %c0_15], %21 {strides = array<i32>} : memref<2x16x256xf32, #tpu.memory_space<vmem>>, vector<1x16x256xf32>,
    %c1_16 = arith.constant 1 : index
    %c0_17 = arith.constant 0 : index
    %c0_18 = arith.constant 0 : index
    %22 = vector.load %arg0[%c1_16, %c0_17, %c0_18] : memref<2x18x128xf32, #tpu.memory_space<vmem>>, vector<1x18x128xf32>
    %23 = vector.shape_cast %22 : vector<1x18x128xf32> to vector<18x128xf32>
    %24 = vector.extract_strided_slice %23 {offsets = [0, 0], sizes = [16, 128], strides = [1, 1]} : vector<18x128xf32> to vector<16x128xf32>
    %cst_19 = arith.constant dense<0.000000e+00> : vector<16x256xf32>
    %25 = tpu.matmul %24, %2, %cst_19 {dimension_numbers = #tpu.dot_dimension_numbers<[1], [0], [0], [1], [0, 0, 1, 1], [], []>, precision = #tpu.contract_precision<fp32>} : vector<16x128xf32>, vector<128x256xf32>, vector<16x256xf32> -> vector<16x256xf32>
    %26 = vector.extract_strided_slice %23 {offsets = [1, 0], sizes = [16, 128], strides = [1, 1]} : vector<18x128xf32> to vector<16x128xf32>
    %cst_20 = arith.constant dense<0.000000e+00> : vector<16x256xf32>
    %27 = tpu.matmul %26, %4, %cst_20 {dimension_numbers = #tpu.dot_dimension_numbers<[1], [0], [0], [1], [0, 0, 1, 1], [], []>, precision = #tpu.contract_precision<fp32>} : vector<16x128xf32>, vector<128x256xf32>, vector<16x256xf32> -> vector<16x256xf32>
    %28 = arith.addf %25, %27 : vector<16x256xf32>
    %29 = vector.extract_strided_slice %23 {offsets = [2, 0], sizes = [16, 128], strides = [1, 1]} : vector<18x128xf32> to vector<16x128xf32>
    %cst_21 = arith.constant dense<0.000000e+00> : vector<16x256xf32>
    %30 = tpu.matmul %29, %6, %cst_21 {dimension_numbers = #tpu.dot_dimension_numbers<[1], [0], [0], [1], [0, 0, 1, 1], [], []>, precision = #tpu.contract_precision<fp32>} : vector<16x128xf32>, vector<128x256xf32>, vector<16x256xf32> -> vector<16x256xf32>
    %31 = arith.addf %28, %30 : vector<16x256xf32>
    %32 = vector.broadcast %0 : vector<1x256xf32> to vector<16x256xf32>
    %33 = arith.addf %31, %32 : vector<16x256xf32>
    %c1_22 = arith.constant 1 : index
    %c0_23 = arith.constant 0 : index
    %c0_24 = arith.constant 0 : index
    %34 = vector.load %arg3[%c1_22, %c0_23, %c0_24] : memref<2x16x256xf32, #tpu.memory_space<vmem>>, vector<1x16x256xf32>
    %35 = vector.shape_cast %34 : vector<1x16x256xf32> to vector<16x256xf32>
    %36 = vector.shape_cast %33 : vector<16x256xf32> to vector<1x16x256xf32>
    tpu.vector_store %arg3[%c1_22, %c0_23, %c0_24], %36 {strides = array<i32>} : memref<2x16x256xf32, #tpu.memory_space<vmem>>, vector<1x16x256xf32>,
    return
  }
}

</mosaic_0001>

<llo_original>
// kernel: upsample_forward.1
$region0: #{upsample_forward.1}
  #allocation0 [shape = 'u32[]', space=smem, size = 0x4, offset = 0x4, fixed_abs, tag = 'smem constant byte address 0x4 - core index']
  #allocation1 [shape = 'u32[144,128]{1,0:T(1,128)}', space=vmem, size = 0x12000, scoped, tag = 'internal scratch']
  %s0 = inlined_call_operand.vmem [shape: f32[2,18,128], index: 0, kind: input, shape index: {}]
  %s1 = inlined_call_operand.vmem [shape: f32[3,128,256], index: 1, kind: input, shape index: {}]
  %s2 = inlined_call_operand.vmem [shape: f32[1,256], index: 2, kind: input, shape index: {}]
  %s3 = inlined_call_operand.vmem [shape: f32[2,16,256], index: 3, kind: output, shape index: {}]
  %s4 = sld [smem:[#allocation0]]
  $region22: #{upsample_forward.1} parent=0
    _
  %s6 = ssub.s32 1, %s4
  %s7 = scalar_select 0, %s6, %s4
  // Predicated region
  $region2: #{upsample_forward.1} parent=0 // pred_check
    _
  $region3: #{upsample_forward.1} parent=0 // pred_check_branch
    %9 = sbr.rel (0) target = $region5
  $region4: #{upsample_forward.1} parent=0 // pred_region
    _
  $region5: #{upsample_forward.1} parent=0 // pred_fallthru
    _
  // Predicated region
  $region6: #{upsample_forward.1} parent=0 // pred_check
    _
  $region7: #{upsample_forward.1} parent=0 // pred_check_branch
    %11 = sbr.rel (0) target = $region9
  $region8: #{upsample_forward.1} parent=0 // pred_region
    _
  $region9: #{upsample_forward.1} parent=0 // pred_fallthru
    _
  // Predicated region
  $region10: #{upsample_forward.1} parent=0 // pred_check
    _
  $region11: #{upsample_forward.1} parent=0 // pred_check_branch
    %13 = sbr.rel (0) target = $region13
  $region12: #{upsample_forward.1} parent=0 // pred_region
    _
  $region13: #{upsample_forward.1} parent=0 // pred_fallthru
    _
  %v14 = vld [vmem:[%s2] sm:$0x3]
  %v15 = vld [vmem:[%s1] sm:$0xff]
  %v16 = vld [vmem:[%s1 + $0x8] sm:$0xff]
  %v17 = vld [vmem:[%s1 + $0x10] sm:$0xff]
  %v18 = vld [vmem:[%s1 + $0x18] sm:$0xff]
  %v19 = vld [vmem:[%s1 + $0x20] sm:$0xff]
  %v20 = vld [vmem:[%s1 + $0x28] sm:$0xff]
  %v21 = vld [vmem:[%s1 + $0x30] sm:$0xff]
  %v22 = vld [vmem:[%s1 + $0x38] sm:$0xff]
  %v23 = vld [vmem:[%s1 + $0x40] sm:$0xff]
  %v24 = vld [vmem:[%s1 + $0x48] sm:$0xff]
  %v25 = vld [vmem:[%s1 + $0x50] sm:$0xff]
  %v26 = vld [vmem:[%s1 + $0x58] sm:$0xff]
  %v27 = vld [vmem:[%s1 + $0x60] sm:$0xff]
  %v28 = vld [vmem:[%s1 + $0x68] sm:$0xff]
  %v29 = vld [vmem:[%s1 + $0x70] sm:$0xff]
  %v30 = vld [vmem:[%s1 + $0x78] sm:$0xff]
  %v31 = vld [vmem:[%s1 + $0x80] sm:$0xff]
  %v32 = vld [vmem:[%s1 + $0x88] sm:$0xff]
  %v33 = vld [vmem:[%s1 + $0x90] sm:$0xff]
  %v34 = vld [vmem:[%s1 + $0x98] sm:$0xff]
  %v35 = vld [vmem:[%s1 + $0xa0] sm:$0xff]
  %v36 = vld [vmem:[%s1 + $0xa8] sm:$0xff]
  %v37 = vld [vmem:[%s1 + $0xb0] sm:$0xff]
  %v38 = vld [vmem:[%s1 + $0xb8] sm:$0xff]
  %v39 = vld [vmem:[%s1 + $0xc0] sm:$0xff]
  %v40 = vld [vmem:[%s1 + $0xc8] sm:$0xff]
  %v41 = vld [vmem:[%s1 + $0xd0] sm:$0xff]
  %v42 = vld [vmem:[%s1 + $0xd8] sm:$0xff]
  %v43 = vld [vmem:[%s1 + $0xe0] sm:$0xff]
  %v44 = vld [vmem:[%s1 + $0xe8] sm:$0xff]
  %v45 = vld [vmem:[%s1 + $0xf0] sm:$0xff]
  %v46 = vld [vmem:[%s1 + $0xf8] sm:$0xff]
  %s47 = scalar_lea.vmem %s1, 256
  %v48 = vld [vmem:[%s47] sm:$0xff]
  %v49 = vld [vmem:[%s47 + $0x8] sm:$0xff]
  %v50 = vld [vmem:[%s47 + $0x10] sm:$0xff]
  %v51 = vld [vmem:[%s47 + $0x18] sm:$0xff]
  %v52 = vld [vmem:[%s47 + $0x20] sm:$0xff]
  %v53 = vld [vmem:[%s47 + $0x28] sm:$0xff]
  %v54 = vld [vmem:[%s47 + $0x30] sm:$0xff]
  %v55 = vld [vmem:[%s47 + $0x38] sm:$0xff]
  %v56 = vld [vmem:[%s47 + $0x40] sm:$0xff]
  %v57 = vld [vmem:[%s47 + $0x48] sm:$0xff]
  %v58 = vld [vmem:[%s47 + $0x50] sm:$0xff]
  %v59 = vld [vmem:[%s47 + $0x58] sm:$0xff]
  %v60 = vld [vmem:[%s47 + $0x60] sm:$0xff]
  %v61 = vld [vmem:[%s47 + $0x68] sm:$0xff]
  %v62 = vld [vmem:[%s47 + $0x70] sm:$0xff]
  %v63 = vld [vmem:[%s47 + $0x78] sm:$0xff]
  %v64 = vld [vmem:[%s47 + $0x80] sm:$0xff]
  %v65 = vld [vmem:[%s47 + $0x88] sm:$0xff]
  %v66 = vld [vmem:[%s47 + $0x90] sm:$0xff]
  %v67 = vld [vmem:[%s47 + $0x98] sm:$0xff]
  %v68 = vld [vmem:[%s47 + $0xa0] sm:$0xff]
  %v69 = vld [vmem:[%s47 + $0xa8] sm:$0xff]
  %v70 = vld [vmem:[%s47 + $0xb0] sm:$0xff]
  %v71 = vld [vmem:[%s47 + $0xb8] sm:$0xff]
  %v72 = vld [vmem:[%s47 + $0xc0] sm:$0xff]
  %v73 = vld [vmem:[%s47 + $0xc8] sm:$0xff]
  %v74 = vld [vmem:[%s47 + $0xd0] sm:$0xff]
  %v75 = vld [vmem:[%s47 + $0xd8] sm:$0xff]
  %v76 = vld [vmem:[%s47 + $0xe0] sm:$0xff]
  %v77 = vld [vmem:[%s47 + $0xe8] sm:$0xff]
  %v78 = vld [vmem:[%s47 + $0xf0] sm:$0xff]
  %v79 = vld [vmem:[%s47 + $0xf8] sm:$0xff]
  %s80 = scalar_lea.vmem %s1, 512
  %v81 = vld [vmem:[%s80] sm:$0xff]
  %v82 = vld [vmem:[%s80 + $0x8] sm:$0xff]
  %v83 = vld [vmem:[%s80 + $0x10] sm:$0xff]
  %v84 = vld [vmem:[%s80 + $0x18] sm:$0xff]
  %v85 = vld [vmem:[%s80 + $0x20] sm:$0xff]
  %v86 = vld [vmem:[%s80 + $0x28] sm:$0xff]
  %v87 = vld [vmem:[%s80 + $0x30] sm:$0xff]
  %v88 = vld [vmem:[%s80 + $0x38] sm:$0xff]
  %v89 = vld [vmem:[%s80 + $0x40] sm:$0xff]
  %v90 = vld [vmem:[%s80 + $0x48] sm:$0xff]
  %v91 = vld [vmem:[%s80 + $0x50] sm:$0xff]
  %v92 = vld [vmem:[%s80 + $0x58] sm:$0xff]
  %v93 = vld [vmem:[%s80 + $0x60] sm:$0xff]
  %v94 = vld [vmem:[%s80 + $0x68] sm:$0xff]
  %v95 = vld [vmem:[%s80 + $0x70] sm:$0xff]
  %v96 = vld [vmem:[%s80 + $0x78] sm:$0xff]
  %v97 = vld [vmem:[%s80 + $0x80] sm:$0xff]
  %v98 = vld [vmem:[%s80 + $0x88] sm:$0xff]
  %v99 = vld [vmem:[%s80 + $0x90] sm:$0xff]
  %v100 = vld [vmem:[%s80 + $0x98] sm:$0xff]
  %v101 = vld [vmem:[%s80 + $0xa0] sm:$0xff]
  %v102 = vld [vmem:[%s80 + $0xa8] sm:$0xff]
  %v103 = vld [vmem:[%s80 + $0xb0] sm:$0xff]
  %v104 = vld [vmem:[%s80 + $0xb8] sm:$0xff]
  %v105 = vld [vmem:[%s80 + $0xc0] sm:$0xff]
  %v106 = vld [vmem:[%s80 + $0xc8] sm:$0xff]
  %v107 = vld [vmem:[%s80 + $0xd0] sm:$0xff]
  %v108 = vld [vmem:[%s80 + $0xd8] sm:$0xff]
  %v109 = vld [vmem:[%s80 + $0xe0] sm:$0xff]
  %v110 = vld [vmem:[%s80 + $0xe8] sm:$0xff]
  %v111 = vld [vmem:[%s80 + $0xf0] sm:$0xff]
  %v112 = vld [vmem:[%s80 + $0xf8] sm:$0xff]
  %v113 = vld [vmem:[%s0] sm:$0xff]
  %v114 = vld [vmem:[%s0 + $0x8] sm:$0xff]
  %v115 = vld [vmem:[%s0 + $0x10] sm:$0x3]
  %vm119 = vcmask 1046528
  %v120 = vrot.slane %v113, 1
  %v121 = vrot.slane %v114, 1
  %v122 = vsel %vm119, %v120, %v121
  %v123 = vrot.slane %v115, 1
  %v124 = vsel %vm119, %v121, %v123
  %v127 = vand.u32 %v79, 4294901760
  %128 = vmatprep.subr.mxu0 %v127
  %v129 = vand.u32 %v78, 4294901760
  %130 = vmatpush1.msra.mxu0 %v129
  %v131 = vand.u32 %v77, 4294901760
  %132 = vmatprep.subr.mxu0 %v131
  %v133 = vand.u32 %v76, 4294901760
  %134 = vmatpush1.msra.mxu0 %v133
  %v135 = vand.u32 %v75, 4294901760
  %136 = vmatprep.subr.mxu0 %v135
  %v137 = vand.u32 %v74, 4294901760
  %138 = vmatpush1.msra.mxu0 %v137
  %v139 = vand.u32 %v73, 4294901760
  %140 = vmatprep.subr.mxu0 %v139
  %v141 = vand.u32 %v72, 4294901760
  %142 = vmatpush1.msra.mxu0 %v141
  %v143 = vand.u32 %v71, 4294901760
  %144 = vmatprep.subr.mxu0 %v143
  %v145 = vand.u32 %v70, 4294901760
  %146 = vmatpush1.msra.mxu0 %v145
  %v147 = vand.u32 %v69, 4294901760
  %148 = vmatprep.subr.mxu0 %v147
  %v149 = vand.u32 %v68, 4294901760
  %150 = vmatpush1.msra.mxu0 %v149
  %v151 = vand.u32 %v67, 4294901760
  %152 = vmatprep.subr.mxu0 %v151
  %v153 = vand.u32 %v66, 4294901760
  %154 = vmatpush1.msra.mxu0 %v153
  %v155 = vand.u32 %v65, 4294901760
  %156 = vmatprep.subr.mxu0 %v155
  %v157 = vand.u32 %v64, 4294901760
  %158 = vmatpush1.msra.mxu0 %v157
  %v159 = vand.u32 %v63, 4294901760
  %160 = vmatprep.subr.mxu0 %v159
  %v161 = vand.u32 %v62, 4294901760
  %162 = vmatpush1.msra.mxu0 %v161
  %v163 = vand.u32 %v61, 4294901760
  %164 = vmatprep.subr.mxu0 %v163
  %v165 = vand.u32 %v60, 4294901760
  %166 = vmatpush1.msra.mxu0 %v165
  %v167 = vand.u32 %v59, 4294901760
  %168 = vmatprep.subr.mxu0 %v167
  %v169 = vand.u32 %v58, 4294901760
  %170 = vmatpush1.msra.mxu0 %v169
  %v171 = vand.u32 %v57, 4294901760
  %172 = vmatprep.subr.mxu0 %v171
  %v173 = vand.u32 %v56, 4294901760
  %174 = vmatpush1.msra.mxu0 %v173
  %v175 = vand.u32 %v55, 4294901760
  %176 = vmatprep.subr.mxu0 %v175
  %v177 = vand.u32 %v54, 4294901760
  %178 = vmatpush1.msra.mxu0 %v177
  %v179 = vand.u32 %v53, 4294901760
  %180 = vmatprep.subr.mxu0 %v179
  %v181 = vand.u32 %v52, 4294901760
  %182 = vmatpush1.msra.mxu0 %v181
  %v183 = vand.u32 %v51, 4294901760
  %184 = vmatprep.subr.mxu0 %v183
  %v185 = vand.u32 %v50, 4294901760
  %186 = vmatpush1.msra.mxu0 %v185
  %v187 = vand.u32 %v49, 4294901760
  %188 = vmatprep.subr.mxu0 %v187
  %v189 = vand.u32 %v48, 4294901760
  %190 = vmatpush1.msra.mxu0 %v189
  %191 = vmatprep.subr.mxu0 0.0
  %192 = vmatpush2.msra.mxu0 0.0
  %193 = vmatprep.subr.mxu0 0.0
  %194 = vmatpush2.msra.mxu0 0.0
  %195 = vmatprep.subr.mxu0 0.0
  %196 = vmatpush2.msra.mxu0 0.0
  %197 = vmatprep.subr.mxu0 0.0
  %198 = vmatpush2.msra.mxu0 0.0
  %199 = vmatprep.subr.mxu0 0.0
  %200 = vmatpush2.msra.mxu0 0.0
  %201 = vmatprep.subr.mxu0 0.0
  %202 = vmatpush2.msra.mxu0 0.0
  %203 = vmatprep.subr.mxu0 0.0
  %204 = vmatpush2.msra.mxu0 0.0
  %205 = vmatprep.subr.mxu0 0.0
  %206 = vmatpush2.msra.mxu0 0.0
  %207 = vmatprep.subr.mxu0 0.0
  %208 = vmatpush2.msra.mxu0 0.0
  %209 = vmatprep.subr.mxu0 0.0
  %210 = vmatpush2.msra.mxu0 0.0
  %211 = vmatprep.subr.mxu0 0.0
  %212 = vmatpush2.msra.mxu0 0.0
  %213 = vmatprep.subr.mxu0 0.0
  %214 = vmatpush2.msra.mxu0 0.0
  %215 = vmatprep.subr.mxu0 0.0
  %216 = vmatpush2.msra.mxu0 0.0
  %217 = vmatprep.subr.mxu0 0.0
  %218 = vmatpush2.msra.mxu0 0.0
  %219 = vmatprep.subr.mxu0 0.0
  %220 = vmatpush2.msra.mxu0 0.0
  %221 = vmatprep.subr.mxu0 0.0
  %222 = vmatpush2.msra.mxu0 0.0
  %223 = vmatprep.mubr.f32.mxu0 0.0
  %v224 = vand.u32 %v122, 4294901760
  %v225 = vsub.f32 %v122, %v224
  %v226 = vand.u32 %v225, 4294901760
  %v227 = vsub.f32 %v225, %v226
  %v228 = vand.u32 %v227, 4294901760
  %229 = vmatmul.mubr.f32.gmra.mxu0 %v228
  %v230 = vpop.f32.mrf.mxu0
  %v231 = vadd.f32 0.0, %v230
  %v232 = vpop.f32.mrf.mxu0
  %v233 = vadd.f32 0.0, %v232
  %234 = vmatprep.mubr.f32.mxu0 0.0
  %v235 = vand.u32 %v124, 4294901760
  %v236 = vsub.f32 %v124, %v235
  %v237 = vand.u32 %v236, 4294901760
  %v238 = vsub.f32 %v236, %v237
  %v239 = vand.u32 %v238, 4294901760
  %240 = vmatmul.mubr.f32.gmra.mxu0 %v239
  %v241 = vpop.f32.mrf.mxu0
  %v242 = vadd.f32 0.0, %v241
  %v243 = vpop.f32.mrf.mxu0
  %v244 = vadd.f32 0.0, %v243
  %245 = vdwg.mxu0
  %v246 = vand.u32 %v79, 4294901760
  %v247 = vsub.f32 %v79, %v246
  %v248 = vand.u32 %v247, 4294901760
  %v249 = vsub.f32 %v247, %v248
  %v250 = vand.u32 %v249, 4294901760
  %251 = vmatprep.subr.mxu0 %v250
  %v252 = vand.u32 %v78, 4294901760
  %v253 = vsub.f32 %v78, %v252
  %v254 = vand.u32 %v253, 4294901760
  %v255 = vsub.f32 %v253, %v254
  %v256 = vand.u32 %v255, 4294901760
  %257 = vmatpush1.msra.mxu0 %v256
  %v258 = vand.u32 %v77, 4294901760
  %v259 = vsub.f32 %v77, %v258
  %v260 = vand.u32 %v259, 4294901760
  %v261 = vsub.f32 %v259, %v260
  %v262 = vand.u32 %v261, 4294901760
  %263 = vmatprep.subr.mxu0 %v262
  %v264 = vand.u32 %v76, 4294901760
  %v265 = vsub.f32 %v76, %v264
  %v266 = vand.u32 %v265, 4294901760
  %v267 = vsub.f32 %v265, %v266
  %v268 = vand.u32 %v267, 4294901760
  %269 = vmatpush1.msra.mxu0 %v268
  %v270 = vand.u32 %v75, 4294901760
  %v271 = vsub.f32 %v75, %v270
  %v272 = vand.u32 %v271, 4294901760
  %v273 = vsub.f32 %v271, %v272
  %v274 = vand.u32 %v273, 4294901760
  %275 = vmatprep.subr.mxu0 %v274
  %v276 = vand.u32 %v74, 4294901760
  %v277 = vsub.f32 %v74, %v276
  %v278 = vand.u32 %v277, 4294901760
  %v279 = vsub.f32 %v277, %v278
  %v280 = vand.u32 %v279, 4294901760
  %281 = vmatpush1.msra.mxu0 %v280
  %v282 = vand.u32 %v73, 4294901760
  %v283 = vsub.f32 %v73, %v282
  %v284 = vand.u32 %v283, 4294901760
  %v285 = vsub.f32 %v283, %v284
  %v286 = vand.u32 %v285, 4294901760
  %287 = vmatprep.subr.mxu0 %v286
  %v288 = vand.u32 %v72, 4294901760
  %v289 = vsub.f32 %v72, %v288
  %v290 = vand.u32 %v289, 4294901760
  %v291 = vsub.f32 %v289, %v290
  %v292 = vand.u32 %v291, 4294901760
  %293 = vmatpush1.msra.mxu0 %v292
  %v294 = vand.u32 %v71, 4294901760
  %v295 = vsub.f32 %v71, %v294
  %v296 = vand.u32 %v295, 4294901760
  %v297 = vsub.f32 %v295, %v296
  %v298 = vand.u32 %v297, 4294901760
  %299 = vmatprep.subr.mxu0 %v298
  %v300 = vand.u32 %v70, 4294901760
  %v301 = vsub.f32 %v70, %v300
  %v302 = vand.u32 %v301, 4294901760
  %v303 = vsub.f32 %v301, %v302
  %v304 = vand.u32 %v303, 4294901760
  %305 = vmatpush1.msra.mxu0 %v304
  %v306 = vand.u32 %v69, 4294901760
  %v307 = vsub.f32 %v69, %v306
  %v308 = vand.u32 %v307, 4294901760
  %v309 = vsub.f32 %v307, %v308
  %v310 = vand.u32 %v309, 4294901760
  %311 = vmatprep.subr.mxu0 %v310
  %v312 = vand.u32 %v68, 4294901760
  %v313 = vsub.f32 %v68, %v312
  %v314 = vand.u32 %v313, 4294901760
  %v315 = vsub.f32 %v313, %v314
  %v316 = vand.u32 %v315, 4294901760
  %317 = vmatpush1.msra.mxu0 %v316
  %v318 = vand.u32 %v67, 4294901760
  %v319 = vsub.f32 %v67, %v318
  %v320 = vand.u32 %v319, 4294901760
  %v321 = vsub.f32 %v319, %v320
  %v322 = vand.u32 %v321, 4294901760
  %323 = vmatprep.subr.mxu0 %v322
  %v324 = vand.u32 %v66, 4294901760
  %v325 = vsub.f32 %v66, %v324
  %v326 = vand.u32 %v325, 4294901760
  %v327 = vsub.f32 %v325, %v326
  %v328 = vand.u32 %v327, 4294901760
  %329 = vmatpush1.msra.mxu0 %v328
  %v330 = vand.u32 %v65, 4294901760
  %v331 = vsub.f32 %v65, %v330
  %v332 = vand.u32 %v331, 4294901760
  %v333 = vsub.f32 %v331, %v332
  %v334 = vand.u32 %v333, 4294901760
  %335 = vmatprep.subr.mxu0 %v334
  %v336 = vand.u32 %v64, 4294901760
  %v337 = vsub.f32 %v64, %v336
  %v338 = vand.u32 %v337, 4294901760
  %v339 = vsub.f32 %v337, %v338
  %v340 = vand.u32 %v339, 4294901760
  %341 = vmatpush1.msra.mxu0 %v340
  %v342 = vand.u32 %v63, 4294901760
  %v343 = vsub.f32 %v63, %v342
  %v344 = vand.u32 %v343, 4294901760
  %v345 = vsub.f32 %v343, %v344
  %v346 = vand.u32 %v345, 4294901760
  %347 = vmatprep.subr.mxu0 %v346
  %v348 = vand.u32 %v62, 4294901760
  %v349 = vsub.f32 %v62, %v348
  %v350 = vand.u32 %v349, 4294901760
  %v351 = vsub.f32 %v349, %v350
  %v352 = vand.u32 %v351, 4294901760
  %353 = vmatpush1.msra.mxu0 %v352
  %v354 = vand.u32 %v61, 4294901760
  %v355 = vsub.f32 %v61, %v354
  %v356 = vand.u32 %v355, 4294901760
  %v357 = vsub.f32 %v355, %v356
  %v358 = vand.u32 %v357, 4294901760
  %359 = vmatprep.subr.mxu0 %v358
  %v360 = vand.u32 %v60, 4294901760
  %v361 = vsub.f32 %v60, %v360
  %v362 = vand.u32 %v361, 4294901760
  %v363 = vsub.f32 %v361, %v362
  %v364 = vand.u32 %v363, 4294901760
  %365 = vmatpush1.msra.mxu0 %v364
  %v366 = vand.u32 %v59, 4294901760
  %v367 = vsub.f32 %v59, %v366
  %v368 = vand.u32 %v367, 4294901760
  %v369 = vsub.f32 %v367, %v368
  %v370 = vand.u32 %v369, 4294901760
  %371 = vmatprep.subr.mxu0 %v370
  %v372 = vand.u32 %v58, 4294901760
  %v373 = vsub.f32 %v58, %v372
  %v374 = vand.u32 %v373, 4294901760
  %v375 = vsub.f32 %v373, %v374
  %v376 = vand.u32 %v375, 4294901760
  %377 = vmatpush1.msra.mxu0 %v376
  %v378 = vand.u32 %v57, 4294901760
  %v379 = vsub.f32 %v57, %v378
  %v380 = vand.u32 %v379, 4294901760
  %v381 = vsub.f32 %v379, %v380
  %v382 = vand.u32 %v381, 4294901760
  %383 = vmatprep.subr.mxu0 %v382
  %v384 = vand.u32 %v56, 4294901760
  %v385 = vsub.f32 %v56, %v384
  %v386 = vand.u32 %v385, 4294901760
  %v387 = vsub.f32 %v385, %v386
  %v388 = vand.u32 %v387, 4294901760
  %389 = vmatpush1.msra.mxu0 %v388
  %v390 = vand.u32 %v55, 4294901760
  %v391 = vsub.f32 %v55, %v390
  %v392 = vand.u32 %v391, 4294901760
  %v393 = vsub.f32 %v391, %v392
  %v394 = vand.u32 %v393, 4294901760
  %395 = vmatprep.subr.mxu0 %v394
  %v396 = vand.u32 %v54, 4294901760
  %v397 = vsub.f32 %v54, %v396
  %v398 = vand.u32 %v397, 4294901760
  %v399 = vsub.f32 %v397, %v398
  %v400 = vand.u32 %v399, 4294901760
  %401 = vmatpush1.msra.mxu0 %v400
  %v402 = vand.u32 %v53, 4294901760
  %v403 = vsub.f32 %v53, %v402
  %v404 = vand.u32 %v403, 4294901760
  %v405 = vsub.f32 %v403, %v404
  %v406 = vand.u32 %v405, 4294901760
  %407 = vmatprep.subr.mxu0 %v406
  %v408 = vand.u32 %v52, 4294901760
  %v409 = vsub.f32 %v52, %v408
  %v410 = vand.u32 %v409, 4294901760
  %v411 = vsub.f32 %v409, %v410
  %v412 = vand.u32 %v411, 4294901760
  %413 = vmatpush1.msra.mxu0 %v412
  %v414 = vand.u32 %v51, 4294901760
  %v415 = vsub.f32 %v51, %v414
  %v416 = vand.u32 %v415, 4294901760
  %v417 = vsub.f32 %v415, %v416
  %v418 = vand.u32 %v417, 4294901760
  %419 = vmatprep.subr.mxu0 %v418
  %v420 = vand.u32 %v50, 4294901760
  %v421 = vsub.f32 %v50, %v420
  %v422 = vand.u32 %v421, 4294901760
  %v423 = vsub.f32 %v421, %v422
  %v424 = vand.u32 %v423, 4294901760
  %425 = vmatpush1.msra.mxu0 %v424
  %v426 = vand.u32 %v49, 4294901760
  %v427 = vsub.f32 %v49, %v426
  %v428 = vand.u32 %v427, 4294901760
  %v429 = vsub.f32 %v427, %v428
  %v430 = vand.u32 %v429, 4294901760
  %431 = vmatprep.subr.mxu0 %v430
  %v432 = vand.u32 %v48, 4294901760
  %v433 = vsub.f32 %v48, %v432
  %v434 = vand.u32 %v433, 4294901760
  %v435 = vsub.f32 %v433, %v434
  %v436 = vand.u32 %v435, 4294901760
  %437 = vmatpush1.msra.mxu0 %v436
  %438 = vmatprep.subr.mxu0 0.0
  %439 = vmatpush2.msra.mxu0 0.0
  %440 = vmatprep.subr.mxu0 0.0
  %441 = vmatpush2.msra.mxu0 0.0
  %442 = vmatprep.subr.mxu0 0.0
  %443 = vmatpush2.msra.mxu0 0.0
  %444 = vmatprep.subr.mxu0 0.0
  %445 = vmatpush2.msra.mxu0 0.0
  %446 = vmatprep.subr.mxu0 0.0
  %447 = vmatpush2.msra.mxu0 0.0
  %448 = vmatprep.subr.mxu0 0.0
  %449 = vmatpush2.msra.mxu0 0.0
  %450 = vmatprep.subr.mxu0 0.0
  %451 = vmatpush2.msra.mxu0 0.0
  %452 = vmatprep.subr.mxu0 0.0
  %453 = vmatpush2.msra.mxu0 0.0
  %454 = vmatprep.subr.mxu0 0.0
  %455 = vmatpush2.msra.mxu0 0.0
  %456 = vmatprep.subr.mxu0 0.0
  %457 = vmatpush2.msra.mxu0 0.0
  %458 = vmatprep.subr.mxu0 0.0
  %459 = vmatpush2.msra.mxu0 0.0
  %460 = vmatprep.subr.mxu0 0.0
  %461 = vmatpush2.msra.mxu0 0.0
  %462 = vmatprep.subr.mxu0 0.0
  %463 = vmatpush2.msra.mxu0 0.0
  %464 = vmatprep.subr.mxu0 0.0
  %465 = vmatpush2.msra.mxu0 0.0
  %466 = vmatprep.subr.mxu0 0.0
  %467 = vmatpush2.msra.mxu0 0.0
  %468 = vmatprep.subr.mxu0 0.0
  %469 = vmatpush2.msra.mxu0 0.0
  %470 = vmatprep.mubr.f32.mxu0 0.0
  %v471 = vand.u32 %v122, 4294901760
  %472 = vmatmul.mubr.f32.gmra.mxu0 %v471
  %v473 = vpop.f32.mrf.mxu0
  %v474 = vadd.f32 %v231, %v473
  %v475 = vpop.f32.mrf.mxu0
  %v476 = vadd.f32 %v233, %v475
  %477 = vmatprep.mubr.f32.mxu0 0.0
  %v478 = vand.u32 %v124, 4294901760
  %479 = vmatmul.mubr.f32.gmra.mxu0 %v478
  %v480 = vpop.f32.mrf.mxu0
  %v481 = vadd.f32 %v242, %v480
  %v482 = vpop.f32.mrf.mxu0
  %v483 = vadd.f32 %v244, %v482
  %484 = vdwg.mxu0
  %v485 = vand.u32 %v79, 4294901760
  %v486 = vsub.f32 %v79, %v485
  %487 = vmatprep.subr.mxu0 %v486
  %v488 = vand.u32 %v78, 4294901760
  %v489 = vsub.f32 %v78, %v488
  %490 = vmatpush1.msra.mxu0 %v489
  %v491 = vand.u32 %v77, 4294901760
  %v492 = vsub.f32 %v77, %v491
  %493 = vmatprep.subr.mxu0 %v492
  %v494 = vand.u32 %v76, 4294901760
  %v495 = vsub.f32 %v76, %v494
  %496 = vmatpush1.msra.mxu0 %v495
  %v497 = vand.u32 %v75, 4294901760
  %v498 = vsub.f32 %v75, %v497
  %499 = vmatprep.subr.mxu0 %v498
  %v500 = vand.u32 %v74, 4294901760
  %v501 = vsub.f32 %v74, %v500
  %502 = vmatpush1.msra.mxu0 %v501
  %v503 = vand.u32 %v73, 4294901760
  %v504 = vsub.f32 %v73, %v503
  %505 = vmatprep.subr.mxu0 %v504
  %v506 = vand.u32 %v72, 4294901760
  %v507 = vsub.f32 %v72, %v506
  %508 = vmatpush1.msra.mxu0 %v507
  %v509 = vand.u32 %v71, 4294901760
  %v510 = vsub.f32 %v71, %v509
  %511 = vmatprep.subr.mxu0 %v510
  %v512 = vand.u32 %v70, 4294901760
  %v513 = vsub.f32 %v70, %v512
  %514 = vmatpush1.msra.mxu0 %v513
  %v515 = vand.u32 %v69, 4294901760
  %v516 = vsub.f32 %v69, %v515
  %517 = vmatprep.subr.mxu0 %v516
  %v518 = vand.u32 %v68, 4294901760
  %v519 = vsub.f32 %v68, %v518
  %520 = vmatpush1.msra.mxu0 %v519
  %v521 = vand.u32 %v67, 4294901760
  %v522 = vsub.f32 %v67, %v521
  %523 = vmatprep.subr.mxu0 %v522
  %v524 = vand.u32 %v66, 4294901760
  %v525 = vsub.f32 %v66, %v524
  %526 = vmatpush1.msra.mxu0 %v525
  %v527 = vand.u32 %v65, 4294901760
  %v528 = vsub.f32 %v65, %v527
  %529 = vmatprep.subr.mxu0 %v528
  %v530 = vand.u32 %v64, 4294901760
  %v531 = vsub.f32 %v64, %v530
  %532 = vmatpush1.msra.mxu0 %v531
  %v533 = vand.u32 %v63, 4294901760
  %v534 = vsub.f32 %v63, %v533
  %535 = vmatprep.subr.mxu0 %v534
  %v536 = vand.u32 %v62, 4294901760
  %v537 = vsub.f32 %v62, %v536
  %538 = vmatpush1.msra.mxu0 %v537
  %v539 = vand.u32 %v61, 4294901760
  %v540 = vsub.f32 %v61, %v539
  %541 = vmatprep.subr.mxu0 %v540
  %v542 = vand.u32 %v60, 4294901760
  %v543 = vsub.f32 %v60, %v542
  %544 = vmatpush1.msra.mxu0 %v543
  %v545 = vand.u32 %v59, 4294901760
  %v546 = vsub.f32 %v59, %v545
  %547 = vmatprep.subr.mxu0 %v546
  %v548 = vand.u32 %v58, 4294901760
  %v549 = vsub.f32 %v58, %v548
  %550 = vmatpush1.msra.mxu0 %v549
  %v551 = vand.u32 %v57, 4294901760
  %v552 = vsub.f32 %v57, %v551
  %553 = vmatprep.subr.mxu0 %v552
  %v554 = vand.u32 %v56, 4294901760
  %v555 = vsub.f32 %v56, %v554
  %556 = vmatpush1.msra.mxu0 %v555
  %v557 = vand.u32 %v55, 4294901760
  %v558 = vsub.f32 %v55, %v557
  %559 = vmatprep.subr.mxu0 %v558
  %v560 = vand.u32 %v54, 4294901760
  %v561 = vsub.f32 %v54, %v560
  %562 = vmatpush1.msra.mxu0 %v561
  %v563 = vand.u32 %v53, 4294901760
  %v564 = vsub.f32 %v53, %v563
  %565 = vmatprep.subr.mxu0 %v564
  %v566 = vand.u32 %v52, 4294901760
  %v567 = vsub.f32 %v52, %v566
  %568 = vmatpush1.msra.mxu0 %v567
  %v569 = vand.u32 %v51, 4294901760
  %v570 = vsub.f32 %v51, %v569
  %571 = vmatprep.subr.mxu0 %v570
  %v572 = vand.u32 %v50, 4294901760
  %v573 = vsub.f32 %v50, %v572
  %574 = vmatpush1.msra.mxu0 %v573
  %v575 = vand.u32 %v49, 4294901760
  %v576 = vsub.f32 %v49, %v575
  %577 = vmatprep.subr.mxu0 %v576
  %v578 = vand.u32 %v48, 4294901760
  %v579 = vsub.f32 %v48, %v578
  %580 = vmatpush1.msra.mxu0 %v579
  %581 = vmatprep.subr.mxu0 0.0
  %582 = vmatpush2.msra.mxu0 0.0
  %583 = vmatprep.subr.mxu0 0.0
  %584 = vmatpush2.msra.mxu0 0.0
  %585 = vmatprep.subr.mxu0 0.0
  %586 = vmatpush2.msra.mxu0 0.0
  %587 = vmatprep.subr.mxu0 0.0
  %588 = vmatpush2.msra.mxu0 0.0
  %589 = vmatprep.subr.mxu0 0.0
  %590 = vmatpush2.msra.mxu0 0.0
  %591 = vmatprep.subr.mxu0 0.0
  %592 = vmatpush2.msra.mxu0 0.0
  %593 = vmatprep.subr.mxu0 0.0
  %594 = vmatpush2.msra.mxu0 0.0
  %595 = vmatprep.subr.mxu0 0.0
  %596 = vmatpush2.msra.mxu0 0.0
  %597 = vmatprep.subr.mxu0 0.0
  %598 = vmatpush2.msra.mxu0 0.0
  %599 = vmatprep.subr.mxu0 0.0
  %600 = vmatpush2.msra.mxu0 0.0
  %601 = vmatprep.subr.mxu0 0.0
  %602 = vmatpush2.msra.mxu0 0.0
  %603 = vmatprep.subr.mxu0 0.0
  %604 = vmatpush2.msra.mxu0 0.0
  %605 = vmatprep.subr.mxu0 0.0
  %606 = vmatpush2.msra.mxu0 0.0
  %607 = vmatprep.subr.mxu0 0.0
  %608 = vmatpush2.msra.mxu0 0.0
  %609 = vmatprep.subr.mxu0 0.0
  %610 = vmatpush2.msra.mxu0 0.0
  %611 = vmatprep.subr.mxu0 0.0
  %612 = vmatpush2.msra.mxu0 0.0
  %613 = vmatprep.mubr.f32.mxu0 0.0
  %v614 = vand.u32 %v122, 4294901760
  %v615 = vsub.f32 %v122, %v614
  %616 = vmatmul.mubr.f32.gmra.mxu0 %v615
  %v617 = vpop.f32.mrf.mxu0
  %v618 = vadd.f32 %v474, %v617
  %v619 = vpop.f32.mrf.mxu0
  %v620 = vadd.f32 %v476, %v619
  %621 = vmatprep.mubr.f32.mxu0 0.0
  %v622 = vand.u32 %v124, 4294901760
  %v623 = vsub.f32 %v124, %v622
  %624 = vmatmul.mubr.f32.gmra.mxu0 %v623
  %v625 = vpop.f32.mrf.mxu0
  %v626 = vadd.f32 %v481, %v625
  %v627 = vpop.f32.mrf.mxu0
  %v628 = vadd.f32 %v483, %v627
  %629 = vdwg.mxu0
  %v630 = vand.u32 %v79, 4294901760
  %631 = vmatprep.subr.mxu0 %v630
  %v632 = vand.u32 %v78, 4294901760
  %633 = vmatpush1.msra.mxu0 %v632
  %v634 = vand.u32 %v77, 4294901760
  %635 = vmatprep.subr.mxu0 %v634
  %v636 = vand.u32 %v76, 4294901760
  %637 = vmatpush1.msra.mxu0 %v636
  %v638 = vand.u32 %v75, 4294901760
  %639 = vmatprep.subr.mxu0 %v638
  %v640 = vand.u32 %v74, 4294901760
  %641 = vmatpush1.msra.mxu0 %v640
  %v642 = vand.u32 %v73, 4294901760
  %643 = vmatprep.subr.mxu0 %v642
  %v644 = vand.u32 %v72, 4294901760
  %645 = vmatpush1.msra.mxu0 %v644
  %v646 = vand.u32 %v71, 4294901760
  %647 = vmatprep.subr.mxu0 %v646
  %v648 = vand.u32 %v70, 4294901760
  %649 = vmatpush1.msra.mxu0 %v648
  %v650 = vand.u32 %v69, 4294901760
  %651 = vmatprep.subr.mxu0 %v650
  %v652 = vand.u32 %v68, 4294901760
  %653 = vmatpush1.msra.mxu0 %v652
  %v654 = vand.u32 %v67, 4294901760
  %655 = vmatprep.subr.mxu0 %v654
  %v656 = vand.u32 %v66, 4294901760
  %657 = vmatpush1.msra.mxu0 %v656
  %v658 = vand.u32 %v65, 4294901760
  %659 = vmatprep.subr.mxu0 %v658
  %v660 = vand.u32 %v64, 4294901760
  %661 = vmatpush1.msra.mxu0 %v660
  %v662 = vand.u32 %v63, 4294901760
  %663 = vmatprep.subr.mxu0 %v662
  %v664 = vand.u32 %v62, 4294901760
  %665 = vmatpush1.msra.mxu0 %v664
  %v666 = vand.u32 %v61, 4294901760
  %667 = vmatprep.subr.mxu0 %v666
  %v668 = vand.u32 %v60, 4294901760
  %669 = vmatpush1.msra.mxu0 %v668
  %v670 = vand.u32 %v59, 4294901760
  %671 = vmatprep.subr.mxu0 %v670
  %v672 = vand.u32 %v58, 4294901760
  %673 = vmatpush1.msra.mxu0 %v672
  %v674 = vand.u32 %v57, 4294901760
  %675 = vmatprep.subr.mxu0 %v674
  %v676 = vand.u32 %v56, 4294901760
  %677 = vmatpush1.msra.mxu0 %v676
  %v678 = vand.u32 %v55, 4294901760
  %679 = vmatprep.subr.mxu0 %v678
  %v680 = vand.u32 %v54, 4294901760
  %681 = vmatpush1.msra.mxu0 %v680
  %v682 = vand.u32 %v53, 4294901760
  %683 = vmatprep.subr.mxu0 %v682
  %v684 = vand.u32 %v52, 4294901760
  %685 = vmatpush1.msra.mxu0 %v684
  %v686 = vand.u32 %v51, 4294901760
  %687 = vmatprep.subr.mxu0 %v686
  %v688 = vand.u32 %v50, 4294901760
  %689 = vmatpush1.msra.mxu0 %v688
  %v690 = vand.u32 %v49, 4294901760
  %691 = vmatprep.subr.mxu0 %v690
  %v692 = vand.u32 %v48, 4294901760
  %693 = vmatpush1.msra.mxu0 %v692
  %694 = vmatprep.subr.mxu0 0.0
  %695 = vmatpush2.msra.mxu0 0.0
  %696 = vmatprep.subr.mxu0 0.0
  %697 = vmatpush2.msra.mxu0 0.0
  %698 = vmatprep.subr.mxu0 0.0
  %699 = vmatpush2.msra.mxu0 0.0
  %700 = vmatprep.subr.mxu0 0.0
  %701 = vmatpush2.msra.mxu0 0.0
  %702 = vmatprep.subr.mxu0 0.0
  %703 = vmatpush2.msra.mxu0 0.0
  %704 = vmatprep.subr.mxu0 0.0
  %705 = vmatpush2.msra.mxu0 0.0
  %706 = vmatprep.subr.mxu0 0.0
  %707 = vmatpush2.msra.mxu0 0.0
  %708 = vmatprep.subr.mxu0 0.0
  %709 = vmatpush2.msra.mxu0 0.0
  %710 = vmatprep.subr.mxu0 0.0
  %711 = vmatpush2.msra.mxu0 0.0
  %712 = vmatprep.subr.mxu0 0.0
  %713 = vmatpush2.msra.mxu0 0.0
  %714 = vmatprep.subr.mxu0 0.0
  %715 = vmatpush2.msra.mxu0 0.0
  %716 = vmatprep.subr.mxu0 0.0
  %717 = vmatpush2.msra.mxu0 0.0
  %718 = vmatprep.subr.mxu0 0.0
  %719 = vmatpush2.msra.mxu0 0.0
  %720 = vmatprep.subr.mxu0 0.0
  %721 = vmatpush2.msra.mxu0 0.0
  %722 = vmatprep.subr.mxu0 0.0
  %723 = vmatpush2.msra.mxu0 0.0
  %724 = vmatprep.subr.mxu0 0.0
  %725 = vmatpush2.msra.mxu0 0.0
  %726 = vmatprep.mubr.f32.mxu0 0.0
  %v727 = vand.u32 %v122, 4294901760
  %v728 = vsub.f32 %v122, %v727
  %v729 = vand.u32 %v728, 4294901760
  %730 = vmatmul.mubr.f32.gmra.mxu0 %v729
  %v731 = vpop.f32.mrf.mxu0
  %v732 = vadd.f32 %v618, %v731
  %v733 = vpop.f32.mrf.mxu0
  %v734 = vadd.f32 %v620, %v733
  %735 = vmatprep.mubr.f32.mxu0 0.0
  %v736 = vand.u32 %v124, 4294901760
  %v737 = vsub.f32 %v124, %v736
  %v738 = vand.u32 %v737, 4294901760
  %739 = vmatmul.mubr.f32.gmra.mxu0 %v738
  %v740 = vpop.f32.mrf.mxu0
  %v741 = vadd.f32 %v626, %v740
  %v742 = vpop.f32.mrf.mxu0
  %v743 = vadd.f32 %v628, %v742
  %744 = vdwg.mxu0
  %v745 = vand.u32 %v79, 4294901760
  %v746 = vsub.f32 %v79, %v745
  %v747 = vand.u32 %v746, 4294901760
  %748 = vmatprep.subr.mxu0 %v747
  %v749 = vand.u32 %v78, 4294901760
  %v750 = vsub.f32 %v78, %v749
  %v751 = vand.u32 %v750, 4294901760
  %752 = vmatpush1.msra.mxu0 %v751
  %v753 = vand.u32 %v77, 4294901760
  %v754 = vsub.f32 %v77, %v753
  %v755 = vand.u32 %v754, 4294901760
  %756 = vmatprep.subr.mxu0 %v755
  %v757 = vand.u32 %v76, 4294901760
  %v758 = vsub.f32 %v76, %v757
  %v759 = vand.u32 %v758, 4294901760
  %760 = vmatpush1.msra.mxu0 %v759
  %v761 = vand.u32 %v75, 4294901760
  %v762 = vsub.f32 %v75, %v761
  %v763 = vand.u32 %v762, 4294901760
  %764 = vmatprep.subr.mxu0 %v763
  %v765 = vand.u32 %v74, 4294901760
  %v766 = vsub.f32 %v74, %v765
  %v767 = vand.u32 %v766, 4294901760
  %768 = vmatpush1.msra.mxu0 %v767
  %v769 = vand.u32 %v73, 4294901760
  %v770 = vsub.f32 %v73, %v769
  %v771 = vand.u32 %v770, 4294901760
  %772 = vmatprep.subr.mxu0 %v771
  %v773 = vand.u32 %v72, 4294901760
  %v774 = vsub.f32 %v72, %v773
  %v775 = vand.u32 %v774, 4294901760
  %776 = vmatpush1.msra.mxu0 %v775
  %v777 = vand.u32 %v71, 4294901760
  %v778 = vsub.f32 %v71, %v777
  %v779 = vand.u32 %v778, 4294901760
  %780 = vmatprep.subr.mxu0 %v779
  %v781 = vand.u32 %v70, 4294901760
  %v782 = vsub.f32 %v70, %v781
  %v783 = vand.u32 %v782, 4294901760
  %784 = vmatpush1.msra.mxu0 %v783
  %v785 = vand.u32 %v69, 4294901760
  %v786 = vsub.f32 %v69, %v785
  %v787 = vand.u32 %v786, 4294901760
  %788 = vmatprep.subr.mxu0 %v787
  %v789 = vand.u32 %v68, 4294901760
  %v790 = vsub.f32 %v68, %v789
  %v791 = vand.u32 %v790, 4294901760
  %792 = vmatpush1.msra.mxu0 %v791
  %v793 = vand.u32 %v67, 4294901760
  %v794 = vsub.f32 %v67, %v793
  %v795 = vand.u32 %v794, 4294901760
  %796 = vmatprep.subr.mxu0 %v795
  %v797 = vand.u32 %v66, 4294901760
  %v798 = vsub.f32 %v66, %v797
  %v799 = vand.u32 %v798, 4294901760
  %800 = vmatpush1.msra.mxu0 %v799
  %v801 = vand.u32 %v65, 4294901760
  %v802 = vsub.f32 %v65, %v801
  %v803 = vand.u32 %v802, 4294901760
  %804 = vmatprep.subr.mxu0 %v803
  %v805 = vand.u32 %v64, 4294901760
  %v806 = vsub.f32 %v64, %v805
  %v807 = vand.u32 %v806, 4294901760
  %808 = vmatpush1.msra.mxu0 %v807
  %v809 = vand.u32 %v63, 4294901760
  %v810 = vsub.f32 %v63, %v809
  %v811 = vand.u32 %v810, 4294901760
  %812 = vmatprep.subr.mxu0 %v811
  %v813 = vand.u32 %v62, 4294901760
  %v814 = vsub.f32 %v62, %v813
  %v815 = vand.u32 %v814, 4294901760
  %816 = vmatpush1.msra.mxu0 %v815
  %v817 = vand.u32 %v61, 4294901760
  %v818 = vsub.f32 %v61, %v817
  %v819 = vand.u32 %v818, 4294901760
  %820 = vmatprep.subr.mxu0 %v819
  %v821 = vand.u32 %v60, 4294901760
  %v822 = vsub.f32 %v60, %v821
  %v823 = vand.u32 %v822, 4294901760
  %824 = vmatpush1.msra.mxu0 %v823
  %v825 = vand.u32 %v59, 4294901760
  %v826 = vsub.f32 %v59, %v825
  %v827 = vand.u32 %v826, 4294901760
  %828 = vmatprep.subr.mxu0 %v827
  %v829 = vand.u32 %v58, 4294901760
  %v830 = vsub.f32 %v58, %v829
  %v831 = vand.u32 %v830, 4294901760
  %832 = vmatpush1.msra.mxu0 %v831
  %v833 = vand.u32 %v57, 4294901760
  %v834 = vsub.f32 %v57, %v833
  %v835 = vand.u32 %v834, 4294901760
  %836 = vmatprep.subr.mxu0 %v835
  %v837 = vand.u32 %v56, 4294901760
  %v838 = vsub.f32 %v56, %v837
  %v839 = vand.u32 %v838, 4294901760
  %840 = vmatpush1.msra.mxu0 %v839
  %v841 = vand.u32 %v55, 4294901760
  %v842 = vsub.f32 %v55, %v841
  %v843 = vand.u32 %v842, 4294901760
  %844 = vmatprep.subr.mxu0 %v843
  %v845 = vand.u32 %v54, 4294901760
  %v846 = vsub.f32 %v54, %v845
  %v847 = vand.u32 %v846, 4294901760
  %848 = vmatpush1.msra.mxu0 %v847
  %v849 = vand.u32 %v53, 4294901760
  %v850 = vsub.f32 %v53, %v849
  %v851 = vand.u32 %v850, 4294901760
  %852 = vmatprep.subr.mxu0 %v851
  %v853 = vand.u32 %v52, 4294901760
  %v854 = vsub.f32 %v52, %v853
  %v855 = vand.u32 %v854, 4294901760
  %856 = vmatpush1.msra.mxu0 %v855
  %v857 = vand.u32 %v51, 4294901760
  %v858 = vsub.f32 %v51, %v857
  %v859 = vand.u32 %v858, 4294901760
  %860 = vmatprep.subr.mxu0 %v859
  %v861 = vand.u32 %v50, 4294901760
  %v862 = vsub.f32 %v50, %v861
  %v863 = vand.u32 %v862, 4294901760
  %864 = vmatpush1.msra.mxu0 %v863
  %v865 = vand.u32 %v49, 4294901760
  %v866 = vsub.f32 %v49, %v865
  %v867 = vand.u32 %v866, 4294901760
  %868 = vmatprep.subr.mxu0 %v867
  %v869 = vand.u32 %v48, 4294901760
  %v870 = vsub.f32 %v48, %v869
  %v871 = vand.u32 %v870, 4294901760
  %872 = vmatpush1.msra.mxu0 %v871
  %873 = vmatprep.subr.mxu0 0.0
  %874 = vmatpush2.msra.mxu0 0.0
  %875 = vmatprep.subr.mxu0 0.0
  %876 = vmatpush2.msra.mxu0 0.0
  %877 = vmatprep.subr.mxu0 0.0
  %878 = vmatpush2.msra.mxu0 0.0
  %879 = vmatprep.subr.mxu0 0.0
  %880 = vmatpush2.msra.mxu0 0.0
  %881 = vmatprep.subr.mxu0 0.0
  %882 = vmatpush2.msra.mxu0 0.0
  %883 = vmatprep.subr.mxu0 0.0
  %884 = vmatpush2.msra.mxu0 0.0
  %885 = vmatprep.subr.mxu0 0.0
  %886 = vmatpush2.msra.mxu0 0.0
  %887 = vmatprep.subr.mxu0 0.0
  %888 = vmatpush2.msra.mxu0 0.0
  %889 = vmatprep.subr.mxu0 0.0
  %890 = vmatpush2.msra.mxu0 0.0
  %891 = vmatprep.subr.mxu0 0.0
  %892 = vmatpush2.msra.mxu0 0.0
  %893 = vmatprep.subr.mxu0 0.0
  %894 = vmatpush2.msra.mxu0 0.0
  %895 = vmatprep.subr.mxu0 0.0
  %896 = vmatpush2.msra.mxu0 0.0
  %897 = vmatprep.subr.mxu0 0.0
  %898 = vmatpush2.msra.mxu0 0.0
  %899 = vmatprep.subr.mxu0 0.0
  %900 = vmatpush2.msra.mxu0 0.0
  %901 = vmatprep.subr.mxu0 0.0
  %902 = vmatpush2.msra.mxu0 0.0
  %903 = vmatprep.subr.mxu0 0.0
  %904 = vmatpush2.msra.mxu0 0.0
  %905 = vmatprep.mubr.f32.mxu0 0.0
  %v906 = vand.u32 %v122, 4294901760
  %907 = vmatmul.mubr.f32.gmra.mxu0 %v906
  %v908 = vpop.f32.mrf.mxu0
  %v909 = vadd.f32 %v732, %v908
  %v910 = vpop.f32.mrf.mxu0
  %v911 = vadd.f32 %v734, %v910
  %912 = vmatprep.mubr.f32.mxu0 0.0
  %v913 = vand.u32 %v124, 4294901760
  %914 = vmatmul.mubr.f32.gmra.mxu0 %v913
  %v915 = vpop.f32.mrf.mxu0
  %v916 = vadd.f32 %v741, %v915
  %v917 = vpop.f32.mrf.mxu0
  %v918 = vadd.f32 %v743, %v917
  %919 = vdwg.mxu0
  %v920 = vand.u32 %v79, 4294901760
  %921 = vmatprep.subr.mxu0 %v920
  %v922 = vand.u32 %v78, 4294901760
  %923 = vmatpush1.msra.mxu0 %v922
  %v924 = vand.u32 %v77, 4294901760
  %925 = vmatprep.subr.mxu0 %v924
  %v926 = vand.u32 %v76, 4294901760
  %927 = vmatpush1.msra.mxu0 %v926
  %v928 = vand.u32 %v75, 4294901760
  %929 = vmatprep.subr.mxu0 %v928
  %v930 = vand.u32 %v74, 4294901760
  %931 = vmatpush1.msra.mxu0 %v930
  %v932 = vand.u32 %v73, 4294901760
  %933 = vmatprep.subr.mxu0 %v932
  %v934 = vand.u32 %v72, 4294901760
  %935 = vmatpush1.msra.mxu0 %v934
  %v936 = vand.u32 %v71, 4294901760
  %937 = vmatprep.subr.mxu0 %v936
  %v938 = vand.u32 %v70, 4294901760
  %939 = vmatpush1.msra.mxu0 %v938
  %v940 = vand.u32 %v69, 4294901760
  %941 = vmatprep.subr.mxu0 %v940
  %v942 = vand.u32 %v68, 4294901760
  %943 = vmatpush1.msra.mxu0 %v942
  %v944 = vand.u32 %v67, 4294901760
  %945 = vmatprep.subr.mxu0 %v944
  %v946 = vand.u32 %v66, 4294901760
  %947 = vmatpush1.msra.mxu0 %v946
  %v948 = vand.u32 %v65, 4294901760
  %949 = vmatprep.subr.mxu0 %v948
  %v950 = vand.u32 %v64, 4294901760
  %951 = vmatpush1.msra.mxu0 %v950
  %v952 = vand.u32 %v63, 4294901760
  %953 = vmatprep.subr.mxu0 %v952
  %v954 = vand.u32 %v62, 4294901760
  %955 = vmatpush1.msra.mxu0 %v954
  %v956 = vand.u32 %v61, 4294901760
  %957 = vmatprep.subr.mxu0 %v956
  %v958 = vand.u32 %v60, 4294901760
  %959 = vmatpush1.msra.mxu0 %v958
  %v960 = vand.u32 %v59, 4294901760
  %961 = vmatprep.subr.mxu0 %v960
  %v962 = vand.u32 %v58, 4294901760
  %963 = vmatpush1.msra.mxu0 %v962
  %v964 = vand.u32 %v57, 4294901760
  %965 = vmatprep.subr.mxu0 %v964
  %v966 = vand.u32 %v56, 4294901760
  %967 = vmatpush1.msra.mxu0 %v966
  %v968 = vand.u32 %v55, 4294901760
  %969 = vmatprep.subr.mxu0 %v968
  %v970 = vand.u32 %v54, 4294901760
  %971 = vmatpush1.msra.mxu0 %v970
  %v972 = vand.u32 %v53, 4294901760
  %973 = vmatprep.subr.mxu0 %v972
  %v974 = vand.u32 %v52, 4294901760
  %975 = vmatpush1.msra.mxu0 %v974
  %v976 = vand.u32 %v51, 4294901760
  %977 = vmatprep.subr.mxu0 %v976
  %v978 = vand.u32 %v50, 4294901760
  %979 = vmatpush1.msra.mxu0 %v978
  %v980 = vand.u32 %v49, 4294901760
  %981 = vmatprep.subr.mxu0 %v980
  %v982 = vand.u32 %v48, 4294901760
  %983 = vmatpush1.msra.mxu0 %v982
  %984 = vmatprep.subr.mxu0 0.0
  %985 = vmatpush2.msra.mxu0 0.0
  %986 = vmatprep.subr.mxu0 0.0
  %987 = vmatpush2.msra.mxu0 0.0
  %988 = vmatprep.subr.mxu0 0.0
  %989 = vmatpush2.msra.mxu0 0.0
  %990 = vmatprep.subr.mxu0 0.0
  %991 = vmatpush2.msra.mxu0 0.0
  %992 = vmatprep.subr.mxu0 0.0
  %993 = vmatpush2.msra.mxu0 0.0
  %994 = vmatprep.subr.mxu0 0.0
  %995 = vmatpush2.msra.mxu0 0.0
  %996 = vmatprep.subr.mxu0 0.0
  %997 = vmatpush2.msra.mxu0 0.0
  %998 = vmatprep.subr.mxu0 0.0
  %999 = vmatpush2.msra.mxu0 0.0
  %1000 = vmatprep.subr.mxu0 0.0
  %1001 = vmatpush2.msra.mxu0 0.0
  %1002 = vmatprep.subr.mxu0 0.0
  %1003 = vmatpush2.msra.mxu0 0.0
  %1004 = vmatprep.subr.mxu0 0.0
  %1005 = vmatpush2.msra.mxu0 0.0
  %1006 = vmatprep.subr.mxu0 0.0
  %1007 = vmatpush2.msra.mxu0 0.0
  %1008 = vmatprep.subr.mxu0 0.0
  %1009 = vmatpush2.msra.mxu0 0.0
  %1010 = vmatprep.subr.mxu0 0.0
  %1011 = vmatpush2.msra.mxu0 0.0
  %1012 = vmatprep.subr.mxu0 0.0
  %1013 = vmatpush2.msra.mxu0 0.0
  %1014 = vmatprep.subr.mxu0 0.0
  %1015 = vmatpush2.msra.mxu0 0.0
  %1016 = vmatprep.mubr.f32.mxu0 0.0
  %v1017 = vand.u32 %v122, 4294901760
  %1018 = vmatmul.mubr.f32.gmra.mxu0 %v1017
  %v1019 = vpop.f32.mrf.mxu0
  %v1020 = vadd.f32 %v909, %v1019
  %v1021 = vpop.f32.mrf.mxu0
  %v1022 = vadd.f32 %v911, %v1021
  %1023 = vmatprep.mubr.f32.mxu0 0.0
  %v1024 = vand.u32 %v124, 4294901760
  %1025 = vmatmul.mubr.f32.gmra.mxu0 %v1024
  %v1026 = vpop.f32.mrf.mxu0
  %v1027 = vadd.f32 %v916, %v1026
  %v1028 = vpop.f32.mrf.mxu0
  %v1029 = vadd.f32 %v918, %v1028
  %1030 = vdwg.mxu0
  %v1031 = vand.u32 %v46, 4294901760
  %1032 = vmatprep.subr.mxu0 %v1031
  %v1033 = vand.u32 %v45, 4294901760
  %1034 = vmatpush1.msra.mxu0 %v1033
  %v1035 = vand.u32 %v44, 4294901760
  %1036 = vmatprep.subr.mxu0 %v1035
  %v1037 = vand.u32 %v43, 4294901760
  %1038 = vmatpush1.msra.mxu0 %v1037
  %v1039 = vand.u32 %v42, 4294901760
  %1040 = vmatprep.subr.mxu0 %v1039
  %v1041 = vand.u32 %v41, 4294901760
  %1042 = vmatpush1.msra.mxu0 %v1041
  %v1043 = vand.u32 %v40, 4294901760
  %1044 = vmatprep.subr.mxu0 %v1043
  %v1045 = vand.u32 %v39, 4294901760
  %1046 = vmatpush1.msra.mxu0 %v1045
  %v1047 = vand.u32 %v38, 4294901760
  %1048 = vmatprep.subr.mxu0 %v1047
  %v1049 = vand.u32 %v37, 4294901760
  %1050 = vmatpush1.msra.mxu0 %v1049
  %v1051 = vand.u32 %v36, 4294901760
  %1052 = vmatprep.subr.mxu0 %v1051
  %v1053 = vand.u32 %v35, 4294901760
  %1054 = vmatpush1.msra.mxu0 %v1053
  %v1055 = vand.u32 %v34, 4294901760
  %1056 = vmatprep.subr.mxu0 %v1055
  %v1057 = vand.u32 %v33, 4294901760
  %1058 = vmatpush1.msra.mxu0 %v1057
  %v1059 = vand.u32 %v32, 4294901760
  %1060 = vmatprep.subr.mxu0 %v1059
  %v1061 = vand.u32 %v31, 4294901760
  %1062 = vmatpush1.msra.mxu0 %v1061
  %v1063 = vand.u32 %v30, 4294901760
  %1064 = vmatprep.subr.mxu0 %v1063
  %v1065 = vand.u32 %v29, 4294901760
  %1066 = vmatpush1.msra.mxu0 %v1065
  %v1067 = vand.u32 %v28, 4294901760
  %1068 = vmatprep.subr.mxu0 %v1067
  %v1069 = vand.u32 %v27, 4294901760
  %1070 = vmatpush1.msra.mxu0 %v1069
  %v1071 = vand.u32 %v26, 4294901760
  %1072 = vmatprep.subr.mxu0 %v1071
  %v1073 = vand.u32 %v25, 4294901760
  %1074 = vmatpush1.msra.mxu0 %v1073
  %v1075 = vand.u32 %v24, 4294901760
  %1076 = vmatprep.subr.mxu0 %v1075
  %v1077 = vand.u32 %v23, 4294901760
  %1078 = vmatpush1.msra.mxu0 %v1077
  %v1079 = vand.u32 %v22, 4294901760
  %1080 = vmatprep.subr.mxu0 %v1079
  %v1081 = vand.u32 %v21, 4294901760
  %1082 = vmatpush1.msra.mxu0 %v1081
  %v1083 = vand.u32 %v20, 4294901760
  %1084 = vmatprep.subr.mxu0 %v1083
  %v1085 = vand.u32 %v19, 4294901760
  %1086 = vmatpush1.msra.mxu0 %v1085
  %v1087 = vand.u32 %v18, 4294901760
  %1088 = vmatprep.subr.mxu0 %v1087
  %v1089 = vand.u32 %v17, 4294901760
  %1090 = vmatpush1.msra.mxu0 %v1089
  %v1091 = vand.u32 %v16, 4294901760
  %1092 = vmatprep.subr.mxu0 %v1091
  %v1093 = vand.u32 %v15, 4294901760
  %1094 = vmatpush1.msra.mxu0 %v1093
  %1095 = vmatprep.subr.mxu0 0.0
  %1096 = vmatpush2.msra.mxu0 0.0
  %1097 = vmatprep.subr.mxu0 0.0
  %1098 = vmatpush2.msra.mxu0 0.0
  %1099 = vmatprep.subr.mxu0 0.0
  %1100 = vmatpush2.msra.mxu0 0.0
  %1101 = vmatprep.subr.mxu0 0.0
  %1102 = vmatpush2.msra.mxu0 0.0
  %1103 = vmatprep.subr.mxu0 0.0
  %1104 = vmatpush2.msra.mxu0 0.0
  %1105 = vmatprep.subr.mxu0 0.0
  %1106 = vmatpush2.msra.mxu0 0.0
  %1107 = vmatprep.subr.mxu0 0.0
  %1108 = vmatpush2.msra.mxu0 0.0
  %1109 = vmatprep.subr.mxu0 0.0
  %1110 = vmatpush2.msra.mxu0 0.0
  %1111 = vmatprep.subr.mxu0 0.0
  %1112 = vmatpush2.msra.mxu0 0.0
  %1113 = vmatprep.subr.mxu0 0.0
  %1114 = vmatpush2.msra.mxu0 0.0
  %1115 = vmatprep.subr.mxu0 0.0
  %1116 = vmatpush2.msra.mxu0 0.0
  %1117 = vmatprep.subr.mxu0 0.0
  %1118 = vmatpush2.msra.mxu0 0.0
  %1119 = vmatprep.subr.mxu0 0.0
  %1120 = vmatpush2.msra.mxu0 0.0
  %1121 = vmatprep.subr.mxu0 0.0
  %1122 = vmatpush2.msra.mxu0 0.0
  %1123 = vmatprep.subr.mxu0 0.0
  %1124 = vmatpush2.msra.mxu0 0.0
  %1125 = vmatprep.subr.mxu0 0.0
  %1126 = vmatpush2.msra.mxu0 0.0
  %1127 = vmatprep.mubr.f32.mxu0 0.0
  %v1128 = vand.u32 %v113, 4294901760
  %v1129 = vsub.f32 %v113, %v1128
  %v1130 = vand.u32 %v1129, 4294901760
  %v1131 = vsub.f32 %v1129, %v1130
  %v1132 = vand.u32 %v1131, 4294901760
  %1133 = vmatmul.mubr.f32.gmra.mxu0 %v1132
  %v1134 = vpop.f32.mrf.mxu0
  %v1135 = vadd.f32 %v1020, %v1134
  %v1136 = vpop.f32.mrf.mxu0
  %v1137 = vadd.f32 %v1022, %v1136
  %1138 = vmatprep.mubr.f32.mxu0 0.0
  %v1139 = vand.u32 %v114, 4294901760
  %v1140 = vsub.f32 %v114, %v1139
  %v1141 = vand.u32 %v1140, 4294901760
  %v1142 = vsub.f32 %v1140, %v1141
  %v1143 = vand.u32 %v1142, 4294901760
  %1144 = vmatmul.mubr.f32.gmra.mxu0 %v1143
  %v1145 = vpop.f32.mrf.mxu0
  %v1146 = vadd.f32 %v1027, %v1145
  %v1147 = vpop.f32.mrf.mxu0
  %v1148 = vadd.f32 %v1029, %v1147
  %1149 = vdwg.mxu0
  %v1150 = vand.u32 %v46, 4294901760
  %v1151 = vsub.f32 %v46, %v1150
  %v1152 = vand.u32 %v1151, 4294901760
  %v1153 = vsub.f32 %v1151, %v1152
  %v1154 = vand.u32 %v1153, 4294901760
  %1155 = vmatprep.subr.mxu0 %v1154
  %v1156 = vand.u32 %v45, 4294901760
  %v1157 = vsub.f32 %v45, %v1156
  %v1158 = vand.u32 %v1157, 4294901760
  %v1159 = vsub.f32 %v1157, %v1158
  %v1160 = vand.u32 %v1159, 4294901760
  %1161 = vmatpush1.msra.mxu0 %v1160
  %v1162 = vand.u32 %v44, 4294901760
  %v1163 = vsub.f32 %v44, %v1162
  %v1164 = vand.u32 %v1163, 4294901760
  %v1165 = vsub.f32 %v1163, %v1164
  %v1166 = vand.u32 %v1165, 4294901760
  %1167 = vmatprep.subr.mxu0 %v1166
  %v1168 = vand.u32 %v43, 4294901760
  %v1169 = vsub.f32 %v43, %v1168
  %v1170 = vand.u32 %v1169, 4294901760
  %v1171 = vsub.f32 %v1169, %v1170
  %v1172 = vand.u32 %v1171, 4294901760
  %1173 = vmatpush1.msra.mxu0 %v1172
  %v1174 = vand.u32 %v42, 4294901760
  %v1175 = vsub.f32 %v42, %v1174
  %v1176 = vand.u32 %v1175, 4294901760
  %v1177 = vsub.f32 %v1175, %v1176
  %v1178 = vand.u32 %v1177, 4294901760
  %1179 = vmatprep.subr.mxu0 %v1178
  %v1180 = vand.u32 %v41, 4294901760
  %v1181 = vsub.f32 %v41, %v1180
  %v1182 = vand.u32 %v1181, 4294901760
  %v1183 = vsub.f32 %v1181, %v1182
  %v1184 = vand.u32 %v1183, 4294901760
  %1185 = vmatpush1.msra.mxu0 %v1184
  %v1186 = vand.u32 %v40, 4294901760
  %v1187 = vsub.f32 %v40, %v1186
  %v1188 = vand.u32 %v1187, 4294901760
  %v1189 = vsub.f32 %v1187, %v1188
  %v1190 = vand.u32 %v1189, 4294901760
  %1191 = vmatprep.subr.mxu0 %v1190
  %v1192 = vand.u32 %v39, 4294901760
  %v1193 = vsub.f32 %v39, %v1192
  %v1194 = vand.u32 %v1193, 4294901760
  %v1195 = vsub.f32 %v1193, %v1194
  %v1196 = vand.u32 %v1195, 4294901760
  %1197 = vmatpush1.msra.mxu0 %v1196
  %v1198 = vand.u32 %v38, 4294901760
  %v1199 = vsub.f32 %v38, %v1198
  %v1200 = vand.u32 %v1199, 4294901760
  %v1201 = vsub.f32 %v1199, %v1200
  %v1202 = vand.u32 %v1201, 4294901760
  %1203 = vmatprep.subr.mxu0 %v1202
  %v1204 = vand.u32 %v37, 4294901760
  %v1205 = vsub.f32 %v37, %v1204
  %v1206 = vand.u32 %v1205, 4294901760
  %v1207 = vsub.f32 %v1205, %v1206
  %v1208 = vand.u32 %v1207, 4294901760
  %1209 = vmatpush1.msra.mxu0 %v1208
  %v1210 = vand.u32 %v36, 4294901760
  %v1211 = vsub.f32 %v36, %v1210
  %v1212 = vand.u32 %v1211, 4294901760
  %v1213 = vsub.f32 %v1211, %v1212
  %v1214 = vand.u32 %v1213, 4294901760
  %1215 = vmatprep.subr.mxu0 %v1214
  %v1216 = vand.u32 %v35, 4294901760
  %v1217 = vsub.f32 %v35, %v1216
  %v1218 = vand.u32 %v1217, 4294901760
  %v1219 = vsub.f32 %v1217, %v1218
  %v1220 = vand.u32 %v1219, 4294901760
  %1221 = vmatpush1.msra.mxu0 %v1220
  %v1222 = vand.u32 %v34, 4294901760
  %v1223 = vsub.f32 %v34, %v1222
  %v1224 = vand.u32 %v1223, 4294901760
  %v1225 = vsub.f32 %v1223, %v1224
  %v1226 = vand.u32 %v1225, 4294901760
  %1227 = vmatprep.subr.mxu0 %v1226
  %v1228 = vand.u32 %v33, 4294901760
  %v1229 = vsub.f32 %v33, %v1228
  %v1230 = vand.u32 %v1229, 4294901760
  %v1231 = vsub.f32 %v1229, %v1230
  %v1232 = vand.u32 %v1231, 4294901760
  %1233 = vmatpush1.msra.mxu0 %v1232
  %v1234 = vand.u32 %v32, 4294901760
  %v1235 = vsub.f32 %v32, %v1234
  %v1236 = vand.u32 %v1235, 4294901760
  %v1237 = vsub.f32 %v1235, %v1236
  %v1238 = vand.u32 %v1237, 4294901760
  %1239 = vmatprep.subr.mxu0 %v1238
  %v1240 = vand.u32 %v31, 4294901760
  %v1241 = vsub.f32 %v31, %v1240
  %v1242 = vand.u32 %v1241, 4294901760
  %v1243 = vsub.f32 %v1241, %v1242
  %v1244 = vand.u32 %v1243, 4294901760
  %1245 = vmatpush1.msra.mxu0 %v1244
  %v1246 = vand.u32 %v30, 4294901760
  %v1247 = vsub.f32 %v30, %v1246
  %v1248 = vand.u32 %v1247, 4294901760
  %v1249 = vsub.f32 %v1247, %v1248
  %v1250 = vand.u32 %v1249, 4294901760
  %1251 = vmatprep.subr.mxu0 %v1250
  %v1252 = vand.u32 %v29, 4294901760
  %v1253 = vsub.f32 %v29, %v1252
  %v1254 = vand.u32 %v1253, 4294901760
  %v1255 = vsub.f32 %v1253, %v1254
  %v1256 = vand.u32 %v1255, 4294901760
  %1257 = vmatpush1.msra.mxu0 %v1256
  %v1258 = vand.u32 %v28, 4294901760
  %v1259 = vsub.f32 %v28, %v1258
  %v1260 = vand.u32 %v1259, 4294901760
  %v1261 = vsub.f32 %v1259, %v1260
  %v1262 = vand.u32 %v1261, 4294901760
  %1263 = vmatprep.subr.mxu0 %v1262
  %v1264 = vand.u32 %v27, 4294901760
  %v1265 = vsub.f32 %v27, %v1264
  %v1266 = vand.u32 %v1265, 4294901760
  %v1267 = vsub.f32 %v1265, %v1266
  %v1268 = vand.u32 %v1267, 4294901760
  %1269 = vmatpush1.msra.mxu0 %v1268
  %v1270 = vand.u32 %v26, 4294901760
  %v1271 = vsub.f32 %v26, %v1270
  %v1272 = vand.u32 %v1271, 4294901760
  %v1273 = vsub.f32 %v1271, %v1272
  %v1274 = vand.u32 %v1273, 4294901760
  %1275 = vmatprep.subr.mxu0 %v1274
  %v1276 = vand.u32 %v25, 4294901760
  %v1277 = vsub.f32 %v25, %v1276
  %v1278 = vand.u32 %v1277, 4294901760
  %v1279 = vsub.f32 %v1277, %v1278
  %v1280 = vand.u32 %v1279, 4294901760
  %1281 = vmatpush1.msra.mxu0 %v1280
  %v1282 = vand.u32 %v24, 4294901760
  %v1283 = vsub.f32 %v24, %v1282
  %v1284 = vand.u32 %v1283, 4294901760
  %v1285 = vsub.f32 %v1283, %v1284
  %v1286 = vand.u32 %v1285, 4294901760
  %1287 = vmatprep.subr.mxu0 %v1286
  %v1288 = vand.u32 %v23, 4294901760
  %v1289 = vsub.f32 %v23, %v1288
  %v1290 = vand.u32 %v1289, 4294901760
  %v1291 = vsub.f32 %v1289, %v1290
  %v1292 = vand.u32 %v1291, 4294901760
  %1293 = vmatpush1.msra.mxu0 %v1292
  %v1294 = vand.u32 %v22, 4294901760
  %v1295 = vsub.f32 %v22, %v1294
  %v1296 = vand.u32 %v1295, 4294901760
  %v1297 = vsub.f32 %v1295, %v1296
  %v1298 = vand.u32 %v1297, 4294901760
  %1299 = vmatprep.subr.mxu0 %v1298
  %v1300 = vand.u32 %v21, 4294901760
  %v1301 = vsub.f32 %v21, %v1300
  %v1302 = vand.u32 %v1301, 4294901760
  %v1303 = vsub.f32 %v1301, %v1302
  %v1304 = vand.u32 %v1303, 4294901760
  %1305 = vmatpush1.msra.mxu0 %v1304
  %v1306 = vand.u32 %v20, 4294901760
  %v1307 = vsub.f32 %v20, %v1306
  %v1308 = vand.u32 %v1307, 4294901760
  %v1309 = vsub.f32 %v1307, %v1308
  %v1310 = vand.u32 %v1309, 4294901760
  %1311 = vmatprep.subr.mxu0 %v1310
  %v1312 = vand.u32 %v19, 4294901760
  %v1313 = vsub.f32 %v19, %v1312
  %v1314 = vand.u32 %v1313, 4294901760
  %v1315 = vsub.f32 %v1313, %v1314
  %v1316 = vand.u32 %v1315, 4294901760
  %1317 = vmatpush1.msra.mxu0 %v1316
  %v1318 = vand.u32 %v18, 4294901760
  %v1319 = vsub.f32 %v18, %v1318
  %v1320 = vand.u32 %v1319, 4294901760
  %v1321 = vsub.f32 %v1319, %v1320
  %v1322 = vand.u32 %v1321, 4294901760
  %1323 = vmatprep.subr.mxu0 %v1322
  %v1324 = vand.u32 %v17, 4294901760
  %v1325 = vsub.f32 %v17, %v1324
  %v1326 = vand.u32 %v1325, 4294901760
  %v1327 = vsub.f32 %v1325, %v1326
  %v1328 = vand.u32 %v1327, 4294901760
  %1329 = vmatpush1.msra.mxu0 %v1328
  %v1330 = vand.u32 %v16, 4294901760
  %v1331 = vsub.f32 %v16, %v1330
  %v1332 = vand.u32 %v1331, 4294901760
  %v1333 = vsub.f32 %v1331, %v1332
  %v1334 = vand.u32 %v1333, 4294901760
  %1335 = vmatprep.subr.mxu0 %v1334
  %v1336 = vand.u32 %v15, 4294901760
  %v1337 = vsub.f32 %v15, %v1336
  %v1338 = vand.u32 %v1337, 4294901760
  %v1339 = vsub.f32 %v1337, %v1338
  %v1340 = vand.u32 %v1339, 4294901760
  %1341 = vmatpush1.msra.mxu0 %v1340
  %1342 = vmatprep.subr.mxu0 0.0
  %1343 = vmatpush2.msra.mxu0 0.0
  %1344 = vmatprep.subr.mxu0 0.0
  %1345 = vmatpush2.msra.mxu0 0.0
  %1346 = vmatprep.subr.mxu0 0.0
  %1347 = vmatpush2.msra.mxu0 0.0
  %1348 = vmatprep.subr.mxu0 0.0
  %1349 = vmatpush2.msra.mxu0 0.0
  %1350 = vmatprep.subr.mxu0 0.0
  %1351 = vmatpush2.msra.mxu0 0.0
  %1352 = vmatprep.subr.mxu0 0.0
  %1353 = vmatpush2.msra.mxu0 0.0
  %1354 = vmatprep.subr.mxu0 0.0
  %1355 = vmatpush2.msra.mxu0 0.0
  %1356 = vmatprep.subr.mxu0 0.0
  %1357 = vmatpush2.msra.mxu0 0.0
  %1358 = vmatprep.subr.mxu0 0.0
  %1359 = vmatpush2.msra.mxu0 0.0
  %1360 = vmatprep.subr.mxu0 0.0
  %1361 = vmatpush2.msra.mxu0 0.0
  %1362 = vmatprep.subr.mxu0 0.0
  %1363 = vmatpush2.msra.mxu0 0.0
  %1364 = vmatprep.subr.mxu0 0.0
  %1365 = vmatpush2.msra.mxu0 0.0
  %1366 = vmatprep.subr.mxu0 0.0
  %1367 = vmatpush2.msra.mxu0 0.0
  %1368 = vmatprep.subr.mxu0 0.0
  %1369 = vmatpush2.msra.mxu0 0.0
  %1370 = vmatprep.subr.mxu0 0.0
  %1371 = vmatpush2.msra.mxu0 0.0
  %1372 = vmatprep.subr.mxu0 0.0
  %1373 = vmatpush2.msra.mxu0 0.0
  %1374 = vmatprep.mubr.f32.mxu0 0.0
  %v1375 = vand.u32 %v113, 4294901760
  %1376 = vmatmul.mubr.f32.gmra.mxu0 %v1375
  %v1377 = vpop.f32.mrf.mxu0
  %v1378 = vadd.f32 %v1135, %v1377
  %v1379 = vpop.f32.mrf.mxu0
  %v1380 = vadd.f32 %v1137, %v1379
  %1381 = vmatprep.mubr.f32.mxu0 0.0
  %v1382 = vand.u32 %v114, 4294901760
  %1383 = vmatmul.mubr.f32.gmra.mxu0 %v1382
  %v1384 = vpop.f32.mrf.mxu0
  %v1385 = vadd.f32 %v1146, %v1384
  %v1386 = vpop.f32.mrf.mxu0
  %v1387 = vadd.f32 %v1148, %v1386
  %1388 = vdwg.mxu0
  %v1389 = vand.u32 %v46, 4294901760
  %v1390 = vsub.f32 %v46, %v1389
  %1391 = vmatprep.subr.mxu0 %v1390
  %v1392 = vand.u32 %v45, 4294901760
  %v1393 = vsub.f32 %v45, %v1392
  %1394 = vmatpush1.msra.mxu0 %v1393
  %v1395 = vand.u32 %v44, 4294901760
  %v1396 = vsub.f32 %v44, %v1395
  %1397 = vmatprep.subr.mxu0 %v1396
  %v1398 = vand.u32 %v43, 4294901760
  %v1399 = vsub.f32 %v43, %v1398
  %1400 = vmatpush1.msra.mxu0 %v1399
  %v1401 = vand.u32 %v42, 4294901760
  %v1402 = vsub.f32 %v42, %v1401
  %1403 = vmatprep.subr.mxu0 %v1402
  %v1404 = vand.u32 %v41, 4294901760
  %v1405 = vsub.f32 %v41, %v1404
  %1406 = vmatpush1.msra.mxu0 %v1405
  %v1407 = vand.u32 %v40, 4294901760
  %v1408 = vsub.f32 %v40, %v1407
  %1409 = vmatprep.subr.mxu0 %v1408
  %v1410 = vand.u32 %v39, 4294901760
  %v1411 = vsub.f32 %v39, %v1410
  %1412 = vmatpush1.msra.mxu0 %v1411
  %v1413 = vand.u32 %v38, 4294901760
  %v1414 = vsub.f32 %v38, %v1413
  %1415 = vmatprep.subr.mxu0 %v1414
  %v1416 = vand.u32 %v37, 4294901760
  %v1417 = vsub.f32 %v37, %v1416
  %1418 = vmatpush1.msra.mxu0 %v1417
  %v1419 = vand.u32 %v36, 4294901760
  %v1420 = vsub.f32 %v36, %v1419
  %1421 = vmatprep.subr.mxu0 %v1420
  %v1422 = vand.u32 %v35, 4294901760
  %v1423 = vsub.f32 %v35, %v1422
  %1424 = vmatpush1.msra.mxu0 %v1423
  %v1425 = vand.u32 %v34, 4294901760
  %v1426 = vsub.f32 %v34, %v1425
  %1427 = vmatprep.subr.mxu0 %v1426
  %v1428 = vand.u32 %v33, 4294901760
  %v1429 = vsub.f32 %v33, %v1428
  %1430 = vmatpush1.msra.mxu0 %v1429
  %v1431 = vand.u32 %v32, 4294901760
  %v1432 = vsub.f32 %v32, %v1431
  %1433 = vmatprep.subr.mxu0 %v1432
  %v1434 = vand.u32 %v31, 4294901760
  %v1435 = vsub.f32 %v31, %v1434
  %1436 = vmatpush1.msra.mxu0 %v1435
  %v1437 = vand.u32 %v30, 4294901760
  %v1438 = vsub.f32 %v30, %v1437
  %1439 = vmatprep.subr.mxu0 %v1438
  %v1440 = vand.u32 %v29, 4294901760
  %v1441 = vsub.f32 %v29, %v1440
  %1442 = vmatpush1.msra.mxu0 %v1441
  %v1443 = vand.u32 %v28, 4294901760
  %v1444 = vsub.f32 %v28, %v1443
  %1445 = vmatprep.subr.mxu0 %v1444
  %v1446 = vand.u32 %v27, 4294901760
  %v1447 = vsub.f32 %v27, %v1446
  %1448 = vmatpush1.msra.mxu0 %v1447
  %v1449 = vand.u32 %v26, 4294901760
  %v1450 = vsub.f32 %v26, %v1449
  %1451 = vmatprep.subr.mxu0 %v1450
  %v1452 = vand.u32 %v25, 4294901760
  %v1453 = vsub.f32 %v25, %v1452
  %1454 = vmatpush1.msra.mxu0 %v1453
  %v1455 = vand.u32 %v24, 4294901760
  %v1456 = vsub.f32 %v24, %v1455
  %1457 = vmatprep.subr.mxu0 %v1456
  %v1458 = vand.u32 %v23, 4294901760
  %v1459 = vsub.f32 %v23, %v1458
  %1460 = vmatpush1.msra.mxu0 %v1459
  %v1461 = vand.u32 %v22, 4294901760
  %v1462 = vsub.f32 %v22, %v1461
  %1463 = vmatprep.subr.mxu0 %v1462
  %v1464 = vand.u32 %v21, 4294901760
  %v1465 = vsub.f32 %v21, %v1464
  %1466 = vmatpush1.msra.mxu0 %v1465
  %v1467 = vand.u32 %v20, 4294901760
  %v1468 = vsub.f32 %v20, %v1467
  %1469 = vmatprep.subr.mxu0 %v1468
  %v1470 = vand.u32 %v19, 4294901760
  %v1471 = vsub.f32 %v19, %v1470
  %1472 = vmatpush1.msra.mxu0 %v1471
  %v1473 = vand.u32 %v18, 4294901760
  %v1474 = vsub.f32 %v18, %v1473
  %1475 = vmatprep.subr.mxu0 %v1474
  %v1476 = vand.u32 %v17, 4294901760
  %v1477 = vsub.f32 %v17, %v1476
  %1478 = vmatpush1.msra.mxu0 %v1477
  %v1479 = vand.u32 %v16, 4294901760
  %v1480 = vsub.f32 %v16, %v1479
  %1481 = vmatprep.subr.mxu0 %v1480
  %v1482 = vand.u32 %v15, 4294901760
  %v1483 = vsub.f32 %v15, %v1482
  %1484 = vmatpush1.msra.mxu0 %v1483
  %1485 = vmatprep.subr.mxu0 0.0
  %1486 = vmatpush2.msra.mxu0 0.0
  %1487 = vmatprep.subr.mxu0 0.0
  %1488 = vmatpush2.msra.mxu0 0.0
  %1489 = vmatprep.subr.mxu0 0.0
  %1490 = vmatpush2.msra.mxu0 0.0
  %1491 = vmatprep.subr.mxu0 0.0
  %1492 = vmatpush2.msra.mxu0 0.0
  %1493 = vmatprep.subr.mxu0 0.0
  %1494 = vmatpush2.msra.mxu0 0.0
  %1495 = vmatprep.subr.mxu0 0.0
  %1496 = vmatpush2.msra.mxu0 0.0
  %1497 = vmatprep.subr.mxu0 0.0
  %1498 = vmatpush2.msra.mxu0 0.0
  %1499 = vmatprep.subr.mxu0 0.0
  %1500 = vmatpush2.msra.mxu0 0.0
  %1501 = vmatprep.subr.mxu0 0.0
  %1502 = vmatpush2.msra.mxu0 0.0
  %1503 = vmatprep.subr.mxu0 0.0
  %1504 = vmatpush2.msra.mxu0 0.0
  %1505 = vmatprep.subr.mxu0 0.0
  %1506 = vmatpush2.msra.mxu0 0.0
  %1507 = vmatprep.subr.mxu0 0.0
  %1508 = vmatpush2.msra.mxu0 0.0
  %1509 = vmatprep.subr.mxu0 0.0
  %1510 = vmatpush2.msra.mxu0 0.0
  %1511 = vmatprep.subr.mxu0 0.0
  %1512 = vmatpush2.msra.mxu0 0.0
  %1513 = vmatprep.subr.mxu0 0.0
  %1514 = vmatpush2.msra.mxu0 0.0
  %1515 = vmatprep.subr.mxu0 0.0
  %1516 = vmatpush2.msra.mxu0 0.0
  %1517 = vmatprep.mubr.f32.mxu0 0.0
  %v1518 = vand.u32 %v113, 4294901760
  %v1519 = vsub.f32 %v113, %v1518
  %1520 = vmatmul.mubr.f32.gmra.mxu0 %v1519
  %v1521 = vpop.f32.mrf.mxu0
  %v1522 = vadd.f32 %v1378, %v1521
  %v1523 = vpop.f32.mrf.mxu0
  %v1524 = vadd.f32 %v1380, %v1523
  %1525 = vmatprep.mubr.f32.mxu0 0.0
  %v1526 = vand.u32 %v114, 4294901760
  %v1527 = vsub.f32 %v114, %v1526
  %1528 = vmatmul.mubr.f32.gmra.mxu0 %v1527
  %v1529 = vpop.f32.mrf.mxu0
  %v1530 = vadd.f32 %v1385, %v1529
  %v1531 = vpop.f32.mrf.mxu0
  %v1532 = vadd.f32 %v1387, %v1531
  %1533 = vdwg.mxu0
  %v1534 = vand.u32 %v46, 4294901760
  %1535 = vmatprep.subr.mxu0 %v1534
  %v1536 = vand.u32 %v45, 4294901760
  %1537 = vmatpush1.msra.mxu0 %v1536
  %v1538 = vand.u32 %v44, 4294901760
  %1539 = vmatprep.subr.mxu0 %v1538
  %v1540 = vand.u32 %v43, 4294901760
  %1541 = vmatpush1.msra.mxu0 %v1540
  %v1542 = vand.u32 %v42, 4294901760
  %1543 = vmatprep.subr.mxu0 %v1542
  %v1544 = vand.u32 %v41, 4294901760
  %1545 = vmatpush1.msra.mxu0 %v1544
  %v1546 = vand.u32 %v40, 4294901760
  %1547 = vmatprep.subr.mxu0 %v1546
  %v1548 = vand.u32 %v39, 4294901760
  %1549 = vmatpush1.msra.mxu0 %v1548
  %v1550 = vand.u32 %v38, 4294901760
  %1551 = vmatprep.subr.mxu0 %v1550
  %v1552 = vand.u32 %v37, 4294901760
  %1553 = vmatpush1.msra.mxu0 %v1552
  %v1554 = vand.u32 %v36, 4294901760
  %1555 = vmatprep.subr.mxu0 %v1554
  %v1556 = vand.u32 %v35, 4294901760
  %1557 = vmatpush1.msra.mxu0 %v1556
  %v1558 = vand.u32 %v34, 4294901760
  %1559 = vmatprep.subr.mxu0 %v1558
  %v1560 = vand.u32 %v33, 4294901760
  %1561 = vmatpush1.msra.mxu0 %v1560
  %v1562 = vand.u32 %v32, 4294901760
  %1563 = vmatprep.subr.mxu0 %v1562
  %v1564 = vand.u32 %v31, 4294901760
  %1565 = vmatpush1.msra.mxu0 %v1564
  %v1566 = vand.u32 %v30, 4294901760
  %1567 = vmatprep.subr.mxu0 %v1566
  %v1568 = vand.u32 %v29, 4294901760
  %1569 = vmatpush1.msra.mxu0 %v1568
  %v1570 = vand.u32 %v28, 4294901760
  %1571 = vmatprep.subr.mxu0 %v1570
  %v1572 = vand.u32 %v27, 4294901760
  %1573 = vmatpush1.msra.mxu0 %v1572
  %v1574 = vand.u32 %v26, 4294901760
  %1575 = vmatprep.subr.mxu0 %v1574
  %v1576 = vand.u32 %v25, 4294901760
  %1577 = vmatpush1.msra.mxu0 %v1576
  %v1578 = vand.u32 %v24, 4294901760
  %1579 = vmatprep.subr.mxu0 %v1578
  %v1580 = vand.u32 %v23, 4294901760
  %1581 = vmatpush1.msra.mxu0 %v1580
  %v1582 = vand.u32 %v22, 4294901760
  %1583 = vmatprep.subr.mxu0 %v1582
  %v1584 = vand.u32 %v21, 4294901760
  %1585 = vmatpush1.msra.mxu0 %v1584
  %v1586 = vand.u32 %v20, 4294901760
  %1587 = vmatprep.subr.mxu0 %v1586
  %v1588 = vand.u32 %v19, 4294901760
  %1589 = vmatpush1.msra.mxu0 %v1588
  %v1590 = vand.u32 %v18, 4294901760
  %1591 = vmatprep.subr.mxu0 %v1590
  %v1592 = vand.u32 %v17, 4294901760
  %1593 = vmatpush1.msra.mxu0 %v1592
  %v1594 = vand.u32 %v16, 4294901760
  %1595 = vmatprep.subr.mxu0 %v1594
  %v1596 = vand.u32 %v15, 4294901760
  %1597 = vmatpush1.msra.mxu0 %v1596
  %1598 = vmatprep.subr.mxu0 0.0
  %1599 = vmatpush2.msra.mxu0 0.0
  %1600 = vmatprep.subr.mxu0 0.0
  %1601 = vmatpush2.msra.mxu0 0.0
  %1602 = vmatprep.subr.mxu0 0.0
  %1603 = vmatpush2.msra.mxu0 0.0
  %1604 = vmatprep.subr.mxu0 0.0
  %1605 = vmatpush2.msra.mxu0 0.0
  %1606 = vmatprep.subr.mxu0 0.0
  %1607 = vmatpush2.msra.mxu0 0.0
  %1608 = vmatprep.subr.mxu0 0.0
  %1609 = vmatpush2.msra.mxu0 0.0
  %1610 = vmatprep.subr.mxu0 0.0
  %1611 = vmatpush2.msra.mxu0 0.0
  %1612 = vmatprep.subr.mxu0 0.0
  %1613 = vmatpush2.msra.mxu0 0.0
  %1614 = vmatprep.subr.mxu0 0.0
  %1615 = vmatpush2.msra.mxu0 0.0
  %1616 = vmatprep.subr.mxu0 0.0
  %1617 = vmatpush2.msra.mxu0 0.0
  %1618 = vmatprep.subr.mxu0 0.0
  %1619 = vmatpush2.msra.mxu0 0.0
  %1620 = vmatprep.subr.mxu0 0.0
  %1621 = vmatpush2.msra.mxu0 0.0
  %1622 = vmatprep.subr.mxu0 0.0
  %1623 = vmatpush2.msra.mxu0 0.0
  %1624 = vmatprep.subr.mxu0 0.0
  %1625 = vmatpush2.msra.mxu0 0.0
  %1626 = vmatprep.subr.mxu0 0.0
  %1627 = vmatpush2.msra.mxu0 0.0
  %1628 = vmatprep.subr.mxu0 0.0
  %1629 = vmatpush2.msra.mxu0 0.0
  %1630 = vmatprep.mubr.f32.mxu0 0.0
  %v1631 = vand.u32 %v113, 4294901760
  %v1632 = vsub.f32 %v113, %v1631
  %v1633 = vand.u32 %v1632, 4294901760
  %1634 = vmatmul.mubr.f32.gmra.mxu0 %v1633
  %v1635 = vpop.f32.mrf.mxu0
  %v1636 = vadd.f32 %v1522, %v1635
  %v1637 = vpop.f32.mrf.mxu0
  %v1638 = vadd.f32 %v1524, %v1637
  %1639 = vmatprep.mubr.f32.mxu0 0.0
  %v1640 = vand.u32 %v114, 4294901760
  %v1641 = vsub.f32 %v114, %v1640
  %v1642 = vand.u32 %v1641, 4294901760
  %1643 = vmatmul.mubr.f32.gmra.mxu0 %v1642
  %v1644 = vpop.f32.mrf.mxu0
  %v1645 = vadd.f32 %v1530, %v1644
  %v1646 = vpop.f32.mrf.mxu0
  %v1647 = vadd.f32 %v1532, %v1646
  %1648 = vdwg.mxu0
  %v1649 = vand.u32 %v46, 4294901760
  %v1650 = vsub.f32 %v46, %v1649
  %v1651 = vand.u32 %v1650, 4294901760
  %1652 = vmatprep.subr.mxu0 %v1651
  %v1653 = vand.u32 %v45, 4294901760
  %v1654 = vsub.f32 %v45, %v1653
  %v1655 = vand.u32 %v1654, 4294901760
  %1656 = vmatpush1.msra.mxu0 %v1655
  %v1657 = vand.u32 %v44, 4294901760
  %v1658 = vsub.f32 %v44, %v1657
  %v1659 = vand.u32 %v1658, 4294901760
  %1660 = vmatprep.subr.mxu0 %v1659
  %v1661 = vand.u32 %v43, 4294901760
  %v1662 = vsub.f32 %v43, %v1661
  %v1663 = vand.u32 %v1662, 4294901760
  %1664 = vmatpush1.msra.mxu0 %v1663
  %v1665 = vand.u32 %v42, 4294901760
  %v1666 = vsub.f32 %v42, %v1665
  %v1667 = vand.u32 %v1666, 4294901760
  %1668 = vmatprep.subr.mxu0 %v1667
  %v1669 = vand.u32 %v41, 4294901760
  %v1670 = vsub.f32 %v41, %v1669
  %v1671 = vand.u32 %v1670, 4294901760
  %1672 = vmatpush1.msra.mxu0 %v1671
  %v1673 = vand.u32 %v40, 4294901760
  %v1674 = vsub.f32 %v40, %v1673
  %v1675 = vand.u32 %v1674, 4294901760
  %1676 = vmatprep.subr.mxu0 %v1675
  %v1677 = vand.u32 %v39, 4294901760
  %v1678 = vsub.f32 %v39, %v1677
  %v1679 = vand.u32 %v1678, 4294901760
  %1680 = vmatpush1.msra.mxu0 %v1679
  %v1681 = vand.u32 %v38, 4294901760
  %v1682 = vsub.f32 %v38, %v1681
  %v1683 = vand.u32 %v1682, 4294901760
  %1684 = vmatprep.subr.mxu0 %v1683
  %v1685 = vand.u32 %v37, 4294901760
  %v1686 = vsub.f32 %v37, %v1685
  %v1687 = vand.u32 %v1686, 4294901760
  %1688 = vmatpush1.msra.mxu0 %v1687
  %v1689 = vand.u32 %v36, 4294901760
  %v1690 = vsub.f32 %v36, %v1689
  %v1691 = vand.u32 %v1690, 4294901760
  %1692 = vmatprep.subr.mxu0 %v1691
  %v1693 = vand.u32 %v35, 4294901760
  %v1694 = vsub.f32 %v35, %v1693
  %v1695 = vand.u32 %v1694, 4294901760
  %1696 = vmatpush1.msra.mxu0 %v1695
  %v1697 = vand.u32 %v34, 4294901760
  %v1698 = vsub.f32 %v34, %v1697
  %v1699 = vand.u32 %v1698, 4294901760
  %1700 = vmatprep.subr.mxu0 %v1699
  %v1701 = vand.u32 %v33, 4294901760
  %v1702 = vsub.f32 %v33, %v1701
  %v1703 = vand.u32 %v1702, 4294901760
  %1704 = vmatpush1.msra.mxu0 %v1703
  %v1705 = vand.u32 %v32, 4294901760
  %v1706 = vsub.f32 %v32, %v1705
  %v1707 = vand.u32 %v1706, 4294901760
  %1708 = vmatprep.subr.mxu0 %v1707
  %v1709 = vand.u32 %v31, 4294901760
  %v1710 = vsub.f32 %v31, %v1709
  %v1711 = vand.u32 %v1710, 4294901760
  %1712 = vmatpush1.msra.mxu0 %v1711
  %v1713 = vand.u32 %v30, 4294901760
  %v1714 = vsub.f32 %v30, %v1713
  %v1715 = vand.u32 %v1714, 4294901760
  %1716 = vmatprep.subr.mxu0 %v1715
  %v1717 = vand.u32 %v29, 4294901760
  %v1718 = vsub.f32 %v29, %v1717
  %v1719 = vand.u32 %v1718, 4294901760
  %1720 = vmatpush1.msra.mxu0 %v1719
  %v1721 = vand.u32 %v28, 4294901760
  %v1722 = vsub.f32 %v28, %v1721
  %v1723 = vand.u32 %v1722, 4294901760
  %1724 = vmatprep.subr.mxu0 %v1723
  %v1725 = vand.u32 %v27, 4294901760
  %v1726 = vsub.f32 %v27, %v1725
  %v1727 = vand.u32 %v1726, 4294901760
  %1728 = vmatpush1.msra.mxu0 %v1727
  %v1729 = vand.u32 %v26, 4294901760
  %v1730 = vsub.f32 %v26, %v1729
  %v1731 = vand.u32 %v1730, 4294901760
  %1732 = vmatprep.subr.mxu0 %v1731
  %v1733 = vand.u32 %v25, 4294901760
  %v1734 = vsub.f32 %v25, %v1733
  %v1735 = vand.u32 %v1734, 4294901760
  %1736 = vmatpush1.msra.mxu0 %v1735
  %v1737 = vand.u32 %v24, 4294901760
  %v1738 = vsub.f32 %v24, %v1737
  %v1739 = vand.u32 %v1738, 4294901760
  %1740 = vmatprep.subr.mxu0 %v1739
  %v1741 = vand.u32 %v23, 4294901760
  %v1742 = vsub.f32 %v23, %v1741
  %v1743 = vand.u32 %v1742, 4294901760
  %1744 = vmatpush1.msra.mxu0 %v1743
  %v1745 = vand.u32 %v22, 4294901760
  %v1746 = vsub.f32 %v22, %v1745
  %v1747 = vand.u32 %v1746, 4294901760
  %1748 = vmatprep.subr.mxu0 %v1747
  %v1749 = vand.u32 %v21, 4294901760
  %v1750 = vsub.f32 %v21, %v1749
  %v1751 = vand.u32 %v1750, 4294901760
  %1752 = vmatpush1.msra.mxu0 %v1751
  %v1753 = vand.u32 %v20, 4294901760
  %v1754 = vsub.f32 %v20, %v1753
  %v1755 = vand.u32 %v1754, 4294901760
  %1756 = vmatprep.subr.mxu0 %v1755
  %v1757 = vand.u32 %v19, 4294901760
  %v1758 = vsub.f32 %v19, %v1757
  %v1759 = vand.u32 %v1758, 4294901760
  %1760 = vmatpush1.msra.mxu0 %v1759
  %v1761 = vand.u32 %v18, 4294901760
  %v1762 = vsub.f32 %v18, %v1761
  %v1763 = vand.u32 %v1762, 4294901760
  %1764 = vmatprep.subr.mxu0 %v1763
  %v1765 = vand.u32 %v17, 4294901760
  %v1766 = vsub.f32 %v17, %v1765
  %v1767 = vand.u32 %v1766, 4294901760
  %1768 = vmatpush1.msra.mxu0 %v1767
  %v1769 = vand.u32 %v16, 4294901760
  %v1770 = vsub.f32 %v16, %v1769
  %v1771 = vand.u32 %v1770, 4294901760
  %1772 = vmatprep.subr.mxu0 %v1771
  %v1773 = vand.u32 %v15, 4294901760
  %v1774 = vsub.f32 %v15, %v1773
  %v1775 = vand.u32 %v1774, 4294901760
  %1776 = vmatpush1.msra.mxu0 %v1775
  %1777 = vmatprep.subr.mxu0 0.0
  %1778 = vmatpush2.msra.mxu0 0.0
  %1779 = vmatprep.subr.mxu0 0.0
  %1780 = vmatpush2.msra.mxu0 0.0
  %1781 = vmatprep.subr.mxu0 0.0
  %1782 = vmatpush2.msra.mxu0 0.0
  %1783 = vmatprep.subr.mxu0 0.0
  %1784 = vmatpush2.msra.mxu0 0.0
  %1785 = vmatprep.subr.mxu0 0.0
  %1786 = vmatpush2.msra.mxu0 0.0
  %1787 = vmatprep.subr.mxu0 0.0
  %1788 = vmatpush2.msra.mxu0 0.0
  %1789 = vmatprep.subr.mxu0 0.0
  %1790 = vmatpush2.msra.mxu0 0.0
  %1791 = vmatprep.subr.mxu0 0.0
  %1792 = vmatpush2.msra.mxu0 0.0
  %1793 = vmatprep.subr.mxu0 0.0
  %1794 = vmatpush2.msra.mxu0 0.0
  %1795 = vmatprep.subr.mxu0 0.0
  %1796 = vmatpush2.msra.mxu0 0.0
  %1797 = vmatprep.subr.mxu0 0.0
  %1798 = vmatpush2.msra.mxu0 0.0
  %1799 = vmatprep.subr.mxu0 0.0
  %1800 = vmatpush2.msra.mxu0 0.0
  %1801 = vmatprep.subr.mxu0 0.0
  %1802 = vmatpush2.msra.mxu0 0.0
  %1803 = vmatprep.subr.mxu0 0.0
  %1804 = vmatpush2.msra.mxu0 0.0
  %1805 = vmatprep.subr.mxu0 0.0
  %1806 = vmatpush2.msra.mxu0 0.0
  %1807 = vmatprep.subr.mxu0 0.0
  %1808 = vmatpush2.msra.mxu0 0.0
  %1809 = vmatprep.mubr.f32.mxu0 0.0
  %v1810 = vand.u32 %v113, 4294901760
  %1811 = vmatmul.mubr.f32.gmra.mxu0 %v1810
  %v1812 = vpop.f32.mrf.mxu0
  %v1813 = vadd.f32 %v1636, %v1812
  %v1814 = vpop.f32.mrf.mxu0
  %v1815 = vadd.f32 %v1638, %v1814
  %1816 = vmatprep.mubr.f32.mxu0 0.0
  %v1817 = vand.u32 %v114, 4294901760
  %1818 = vmatmul.mubr.f32.gmra.mxu0 %v1817
  %v1819 = vpop.f32.mrf.mxu0
  %v1820 = vadd.f32 %v1645, %v1819
  %v1821 = vpop.f32.mrf.mxu0
  %v1822 = vadd.f32 %v1647, %v1821
  %1823 = vdwg.mxu0
  %v1824 = vand.u32 %v46, 4294901760
  %1825 = vmatprep.subr.mxu0 %v1824
  %v1826 = vand.u32 %v45, 4294901760
  %1827 = vmatpush1.msra.mxu0 %v1826
  %v1828 = vand.u32 %v44, 4294901760
  %1829 = vmatprep.subr.mxu0 %v1828
  %v1830 = vand.u32 %v43, 4294901760
  %1831 = vmatpush1.msra.mxu0 %v1830
  %v1832 = vand.u32 %v42, 4294901760
  %1833 = vmatprep.subr.mxu0 %v1832
  %v1834 = vand.u32 %v41, 4294901760
  %1835 = vmatpush1.msra.mxu0 %v1834
  %v1836 = vand.u32 %v40, 4294901760
  %1837 = vmatprep.subr.mxu0 %v1836
  %v1838 = vand.u32 %v39, 4294901760
  %1839 = vmatpush1.msra.mxu0 %v1838
  %v1840 = vand.u32 %v38, 4294901760
  %1841 = vmatprep.subr.mxu0 %v1840
  %v1842 = vand.u32 %v37, 4294901760
  %1843 = vmatpush1.msra.mxu0 %v1842
  %v1844 = vand.u32 %v36, 4294901760
  %1845 = vmatprep.subr.mxu0 %v1844
  %v1846 = vand.u32 %v35, 4294901760
  %1847 = vmatpush1.msra.mxu0 %v1846
  %v1848 = vand.u32 %v34, 4294901760
  %1849 = vmatprep.subr.mxu0 %v1848
  %v1850 = vand.u32 %v33, 4294901760
  %1851 = vmatpush1.msra.mxu0 %v1850
  %v1852 = vand.u32 %v32, 4294901760
  %1853 = vmatprep.subr.mxu0 %v1852
  %v1854 = vand.u32 %v31, 4294901760
  %1855 = vmatpush1.msra.mxu0 %v1854
  %v1856 = vand.u32 %v30, 4294901760
  %1857 = vmatprep.subr.mxu0 %v1856
  %v1858 = vand.u32 %v29, 4294901760
  %1859 = vmatpush1.msra.mxu0 %v1858
  %v1860 = vand.u32 %v28, 4294901760
  %1861 = vmatprep.subr.mxu0 %v1860
  %v1862 = vand.u32 %v27, 4294901760
  %1863 = vmatpush1.msra.mxu0 %v1862
  %v1864 = vand.u32 %v26, 4294901760
  %1865 = vmatprep.subr.mxu0 %v1864
  %v1866 = vand.u32 %v25, 4294901760
  %1867 = vmatpush1.msra.mxu0 %v1866
  %v1868 = vand.u32 %v24, 4294901760
  %1869 = vmatprep.subr.mxu0 %v1868
  %v1870 = vand.u32 %v23, 4294901760
  %1871 = vmatpush1.msra.mxu0 %v1870
  %v1872 = vand.u32 %v22, 4294901760
  %1873 = vmatprep.subr.mxu0 %v1872
  %v1874 = vand.u32 %v21, 4294901760
  %1875 = vmatpush1.msra.mxu0 %v1874
  %v1876 = vand.u32 %v20, 4294901760
  %1877 = vmatprep.subr.mxu0 %v1876
  %v1878 = vand.u32 %v19, 4294901760
  %1879 = vmatpush1.msra.mxu0 %v1878
  %v1880 = vand.u32 %v18, 4294901760
  %1881 = vmatprep.subr.mxu0 %v1880
  %v1882 = vand.u32 %v17, 4294901760
  %1883 = vmatpush1.msra.mxu0 %v1882
  %v1884 = vand.u32 %v16, 4294901760
  %1885 = vmatprep.subr.mxu0 %v1884
  %v1886 = vand.u32 %v15, 4294901760
  %1887 = vmatpush1.msra.mxu0 %v1886
  %1888 = vmatprep.subr.mxu0 0.0
  %1889 = vmatpush2.msra.mxu0 0.0
  %1890 = vmatprep.subr.mxu0 0.0
  %1891 = vmatpush2.msra.mxu0 0.0
  %1892 = vmatprep.subr.mxu0 0.0
  %1893 = vmatpush2.msra.mxu0 0.0
  %1894 = vmatprep.subr.mxu0 0.0
  %1895 = vmatpush2.msra.mxu0 0.0
  %1896 = vmatprep.subr.mxu0 0.0
  %1897 = vmatpush2.msra.mxu0 0.0
  %1898 = vmatprep.subr.mxu0 0.0
  %1899 = vmatpush2.msra.mxu0 0.0
  %1900 = vmatprep.subr.mxu0 0.0
  %1901 = vmatpush2.msra.mxu0 0.0
  %1902 = vmatprep.subr.mxu0 0.0
  %1903 = vmatpush2.msra.mxu0 0.0
  %1904 = vmatprep.subr.mxu0 0.0
  %1905 = vmatpush2.msra.mxu0 0.0
  %1906 = vmatprep.subr.mxu0 0.0
  %1907 = vmatpush2.msra.mxu0 0.0
  %1908 = vmatprep.subr.mxu0 0.0
  %1909 = vmatpush2.msra.mxu0 0.0
  %1910 = vmatprep.subr.mxu0 0.0
  %1911 = vmatpush2.msra.mxu0 0.0
  %1912 = vmatprep.subr.mxu0 0.0
  %1913 = vmatpush2.msra.mxu0 0.0
  %1914 = vmatprep.subr.mxu0 0.0
  %1915 = vmatpush2.msra.mxu0 0.0
  %1916 = vmatprep.subr.mxu0 0.0
  %1917 = vmatpush2.msra.mxu0 0.0
  %1918 = vmatprep.subr.mxu0 0.0
  %1919 = vmatpush2.msra.mxu0 0.0
  %1920 = vmatprep.mubr.f32.mxu0 0.0
  %v1921 = vand.u32 %v113, 4294901760
  %1922 = vmatmul.mubr.f32.gmra.mxu0 %v1921
  %v1923 = vpop.f32.mrf.mxu0
  %v1924 = vadd.f32 %v1813, %v1923
  %v1925 = vpop.f32.mrf.mxu0
  %v1926 = vadd.f32 %v1815, %v1925
  %1927 = vmatprep.mubr.f32.mxu0 0.0
  %v1928 = vand.u32 %v114, 4294901760
  %1929 = vmatmul.mubr.f32.gmra.mxu0 %v1928
  %v1930 = vpop.f32.mrf.mxu0
  %v1931 = vadd.f32 %v1820, %v1930
  %v1932 = vpop.f32.mrf.mxu0
  %v1933 = vadd.f32 %v1822, %v1932
  %1934 = vdwg.mxu0
  %vm1935 = vcmask 1045504
  %v1936 = vrot.slane %v113, 2
  %v1937 = vrot.slane %v114, 2
  %v1938 = vsel %vm1935, %v1936, %v1937
  %v1939 = vrot.slane %v115, 2
  %v1940 = vsel %vm1935, %v1937, %v1939
  %v1943 = vand.u32 %v112, 4294901760
  %1944 = vmatprep.subr.mxu0 %v1943
  %v1945 = vand.u32 %v111, 4294901760
  %1946 = vmatpush1.msra.mxu0 %v1945
  %v1947 = vand.u32 %v110, 4294901760
  %1948 = vmatprep.subr.mxu0 %v1947
  %v1949 = vand.u32 %v109, 4294901760
  %1950 = vmatpush1.msra.mxu0 %v1949
  %v1951 = vand.u32 %v108, 4294901760
  %1952 = vmatprep.subr.mxu0 %v1951
  %v1953 = vand.u32 %v107, 4294901760
  %1954 = vmatpush1.msra.mxu0 %v1953
  %v1955 = vand.u32 %v106, 4294901760
  %1956 = vmatprep.subr.mxu0 %v1955
  %v1957 = vand.u32 %v105, 4294901760
  %1958 = vmatpush1.msra.mxu0 %v1957
  %v1959 = vand.u32 %v104, 4294901760
  %1960 = vmatprep.subr.mxu0 %v1959
  %v1961 = vand.u32 %v103, 4294901760
  %1962 = vmatpush1.msra.mxu0 %v1961
  %v1963 = vand.u32 %v102, 4294901760
  %1964 = vmatprep.subr.mxu0 %v1963
  %v1965 = vand.u32 %v101, 4294901760
  %1966 = vmatpush1.msra.mxu0 %v1965
  %v1967 = vand.u32 %v100, 4294901760
  %1968 = vmatprep.subr.mxu0 %v1967
  %v1969 = vand.u32 %v99, 4294901760
  %1970 = vmatpush1.msra.mxu0 %v1969
  %v1971 = vand.u32 %v98, 4294901760
  %1972 = vmatprep.subr.mxu0 %v1971
  %v1973 = vand.u32 %v97, 4294901760
  %1974 = vmatpush1.msra.mxu0 %v1973
  %v1975 = vand.u32 %v96, 4294901760
  %1976 = vmatprep.subr.mxu0 %v1975
  %v1977 = vand.u32 %v95, 4294901760
  %1978 = vmatpush1.msra.mxu0 %v1977
  %v1979 = vand.u32 %v94, 4294901760
  %1980 = vmatprep.subr.mxu0 %v1979
  %v1981 = vand.u32 %v93, 4294901760
  %1982 = vmatpush1.msra.mxu0 %v1981
  %v1983 = vand.u32 %v92, 4294901760
  %1984 = vmatprep.subr.mxu0 %v1983
  %v1985 = vand.u32 %v91, 4294901760
  %1986 = vmatpush1.msra.mxu0 %v1985
  %v1987 = vand.u32 %v90, 4294901760
  %1988 = vmatprep.subr.mxu0 %v1987
  %v1989 = vand.u32 %v89, 4294901760
  %1990 = vmatpush1.msra.mxu0 %v1989
  %v1991 = vand.u32 %v88, 4294901760
  %1992 = vmatprep.subr.mxu0 %v1991
  %v1993 = vand.u32 %v87, 4294901760
  %1994 = vmatpush1.msra.mxu0 %v1993
  %v1995 = vand.u32 %v86, 4294901760
  %1996 = vmatprep.subr.mxu0 %v1995
  %v1997 = vand.u32 %v85, 4294901760
  %1998 = vmatpush1.msra.mxu0 %v1997
  %v1999 = vand.u32 %v84, 4294901760
  %2000 = vmatprep.subr.mxu0 %v1999
  %v2001 = vand.u32 %v83, 4294901760
  %2002 = vmatpush1.msra.mxu0 %v2001
  %v2003 = vand.u32 %v82, 4294901760
  %2004 = vmatprep.subr.mxu0 %v2003
  %v2005 = vand.u32 %v81, 4294901760
  %2006 = vmatpush1.msra.mxu0 %v2005
  %2007 = vmatprep.subr.mxu0 0.0
  %2008 = vmatpush2.msra.mxu0 0.0
  %2009 = vmatprep.subr.mxu0 0.0
  %2010 = vmatpush2.msra.mxu0 0.0
  %2011 = vmatprep.subr.mxu0 0.0
  %2012 = vmatpush2.msra.mxu0 0.0
  %2013 = vmatprep.subr.mxu0 0.0
  %2014 = vmatpush2.msra.mxu0 0.0
  %2015 = vmatprep.subr.mxu0 0.0
  %2016 = vmatpush2.msra.mxu0 0.0
  %2017 = vmatprep.subr.mxu0 0.0
  %2018 = vmatpush2.msra.mxu0 0.0
  %2019 = vmatprep.subr.mxu0 0.0
  %2020 = vmatpush2.msra.mxu0 0.0
  %2021 = vmatprep.subr.mxu0 0.0
  %2022 = vmatpush2.msra.mxu0 0.0
  %2023 = vmatprep.subr.mxu0 0.0
  %2024 = vmatpush2.msra.mxu0 0.0
  %2025 = vmatprep.subr.mxu0 0.0
  %2026 = vmatpush2.msra.mxu0 0.0
  %2027 = vmatprep.subr.mxu0 0.0
  %2028 = vmatpush2.msra.mxu0 0.0
  %2029 = vmatprep.subr.mxu0 0.0
  %2030 = vmatpush2.msra.mxu0 0.0
  %2031 = vmatprep.subr.mxu0 0.0
  %2032 = vmatpush2.msra.mxu0 0.0
  %2033 = vmatprep.subr.mxu0 0.0
  %2034 = vmatpush2.msra.mxu0 0.0
  %2035 = vmatprep.subr.mxu0 0.0
  %2036 = vmatpush2.msra.mxu0 0.0
  %2037 = vmatprep.subr.mxu0 0.0
  %2038 = vmatpush2.msra.mxu0 0.0
  %2039 = vmatprep.mubr.f32.mxu0 0.0
  %v2040 = vand.u32 %v1938, 4294901760
  %v2041 = vsub.f32 %v1938, %v2040
  %v2042 = vand.u32 %v2041, 4294901760
  %v2043 = vsub.f32 %v2041, %v2042
  %v2044 = vand.u32 %v2043, 4294901760
  %2045 = vmatmul.mubr.f32.gmra.mxu0 %v2044
  %v2046 = vpop.f32.mrf.mxu0
  %v2047 = vadd.f32 0.0, %v2046
  %v2048 = vpop.f32.mrf.mxu0
  %v2049 = vadd.f32 0.0, %v2048
  %2050 = vmatprep.mubr.f32.mxu0 0.0
  %v2051 = vand.u32 %v1940, 4294901760
  %v2052 = vsub.f32 %v1940, %v2051
  %v2053 = vand.u32 %v2052, 4294901760
  %v2054 = vsub.f32 %v2052, %v2053
  %v2055 = vand.u32 %v2054, 4294901760
  %2056 = vmatmul.mubr.f32.gmra.mxu0 %v2055
  %v2057 = vpop.f32.mrf.mxu0
  %v2058 = vadd.f32 0.0, %v2057
  %v2059 = vpop.f32.mrf.mxu0
  %v2060 = vadd.f32 0.0, %v2059
  %2061 = vdwg.mxu0
  %v2062 = vand.u32 %v112, 4294901760
  %v2063 = vsub.f32 %v112, %v2062
  %v2064 = vand.u32 %v2063, 4294901760
  %v2065 = vsub.f32 %v2063, %v2064
  %v2066 = vand.u32 %v2065, 4294901760
  %2067 = vmatprep.subr.mxu0 %v2066
  %v2068 = vand.u32 %v111, 4294901760
  %v2069 = vsub.f32 %v111, %v2068
  %v2070 = vand.u32 %v2069, 4294901760
  %v2071 = vsub.f32 %v2069, %v2070
  %v2072 = vand.u32 %v2071, 4294901760
  %2073 = vmatpush1.msra.mxu0 %v2072
  %v2074 = vand.u32 %v110, 4294901760
  %v2075 = vsub.f32 %v110, %v2074
  %v2076 = vand.u32 %v2075, 4294901760
  %v2077 = vsub.f32 %v2075, %v2076
  %v2078 = vand.u32 %v2077, 4294901760
  %2079 = vmatprep.subr.mxu0 %v2078
  %v2080 = vand.u32 %v109, 4294901760
  %v2081 = vsub.f32 %v109, %v2080
  %v2082 = vand.u32 %v2081, 4294901760
  %v2083 = vsub.f32 %v2081, %v2082
  %v2084 = vand.u32 %v2083, 4294901760
  %2085 = vmatpush1.msra.mxu0 %v2084
  %v2086 = vand.u32 %v108, 4294901760
  %v2087 = vsub.f32 %v108, %v2086
  %v2088 = vand.u32 %v2087, 4294901760
  %v2089 = vsub.f32 %v2087, %v2088
  %v2090 = vand.u32 %v2089, 4294901760
  %2091 = vmatprep.subr.mxu0 %v2090
  %v2092 = vand.u32 %v107, 4294901760
  %v2093 = vsub.f32 %v107, %v2092
  %v2094 = vand.u32 %v2093, 4294901760
  %v2095 = vsub.f32 %v2093, %v2094
  %v2096 = vand.u32 %v2095, 4294901760
  %2097 = vmatpush1.msra.mxu0 %v2096
  %v2098 = vand.u32 %v106, 4294901760
  %v2099 = vsub.f32 %v106, %v2098
  %v2100 = vand.u32 %v2099, 4294901760
  %v2101 = vsub.f32 %v2099, %v2100
  %v2102 = vand.u32 %v2101, 4294901760
  %2103 = vmatprep.subr.mxu0 %v2102
  %v2104 = vand.u32 %v105, 4294901760
  %v2105 = vsub.f32 %v105, %v2104
  %v2106 = vand.u32 %v2105, 4294901760
  %v2107 = vsub.f32 %v2105, %v2106
  %v2108 = vand.u32 %v2107, 4294901760
  %2109 = vmatpush1.msra.mxu0 %v2108
  %v2110 = vand.u32 %v104, 4294901760
  %v2111 = vsub.f32 %v104, %v2110
  %v2112 = vand.u32 %v2111, 4294901760
  %v2113 = vsub.f32 %v2111, %v2112
  %v2114 = vand.u32 %v2113, 4294901760
  %2115 = vmatprep.subr.mxu0 %v2114
  %v2116 = vand.u32 %v103, 4294901760
  %v2117 = vsub.f32 %v103, %v2116
  %v2118 = vand.u32 %v2117, 4294901760
  %v2119 = vsub.f32 %v2117, %v2118
  %v2120 = vand.u32 %v2119, 4294901760
  %2121 = vmatpush1.msra.mxu0 %v2120
  %v2122 = vand.u32 %v102, 4294901760
  %v2123 = vsub.f32 %v102, %v2122
  %v2124 = vand.u32 %v2123, 4294901760
  %v2125 = vsub.f32 %v2123, %v2124
  %v2126 = vand.u32 %v2125, 4294901760
  %2127 = vmatprep.subr.mxu0 %v2126
  %v2128 = vand.u32 %v101, 4294901760
  %v2129 = vsub.f32 %v101, %v2128
  %v2130 = vand.u32 %v2129, 4294901760
  %v2131 = vsub.f32 %v2129, %v2130
  %v2132 = vand.u32 %v2131, 4294901760
  %2133 = vmatpush1.msra.mxu0 %v2132
  %v2134 = vand.u32 %v100, 4294901760
  %v2135 = vsub.f32 %v100, %v2134
  %v2136 = vand.u32 %v2135, 4294901760
  %v2137 = vsub.f32 %v2135, %v2136
  %v2138 = vand.u32 %v2137, 4294901760
  %2139 = vmatprep.subr.mxu0 %v2138
  %v2140 = vand.u32 %v99, 4294901760
  %v2141 = vsub.f32 %v99, %v2140
  %v2142 = vand.u32 %v2141, 4294901760
  %v2143 = vsub.f32 %v2141, %v2142
  %v2144 = vand.u32 %v2143, 4294901760
  %2145 = vmatpush1.msra.mxu0 %v2144
  %v2146 = vand.u32 %v98, 4294901760
  %v2147 = vsub.f32 %v98, %v2146
  %v2148 = vand.u32 %v2147, 4294901760
  %v2149 = vsub.f32 %v2147, %v2148
  %v2150 = vand.u32 %v2149, 4294901760
  %2151 = vmatprep.subr.mxu0 %v2150
  %v2152 = vand.u32 %v97, 4294901760
  %v2153 = vsub.f32 %v97, %v2152
  %v2154 = vand.u32 %v2153, 4294901760
  %v2155 = vsub.f32 %v2153, %v2154
  %v2156 = vand.u32 %v2155, 4294901760
  %2157 = vmatpush1.msra.mxu0 %v2156
  %v2158 = vand.u32 %v96, 4294901760
  %v2159 = vsub.f32 %v96, %v2158
  %v2160 = vand.u32 %v2159, 4294901760
  %v2161 = vsub.f32 %v2159, %v2160
  %v2162 = vand.u32 %v2161, 4294901760
  %2163 = vmatprep.subr.mxu0 %v2162
  %v2164 = vand.u32 %v95, 4294901760
  %v2165 = vsub.f32 %v95, %v2164
  %v2166 = vand.u32 %v2165, 4294901760
  %v2167 = vsub.f32 %v2165, %v2166
  %v2168 = vand.u32 %v2167, 4294901760
  %2169 = vmatpush1.msra.mxu0 %v2168
  %v2170 = vand.u32 %v94, 4294901760
  %v2171 = vsub.f32 %v94, %v2170
  %v2172 = vand.u32 %v2171, 4294901760
  %v2173 = vsub.f32 %v2171, %v2172
  %v2174 = vand.u32 %v2173, 4294901760
  %2175 = vmatprep.subr.mxu0 %v2174
  %v2176 = vand.u32 %v93, 4294901760
  %v2177 = vsub.f32 %v93, %v2176
  %v2178 = vand.u32 %v2177, 4294901760
  %v2179 = vsub.f32 %v2177, %v2178
  %v2180 = vand.u32 %v2179, 4294901760
  %2181 = vmatpush1.msra.mxu0 %v2180
  %v2182 = vand.u32 %v92, 4294901760
  %v2183 = vsub.f32 %v92, %v2182
  %v2184 = vand.u32 %v2183, 4294901760
  %v2185 = vsub.f32 %v2183, %v2184
  %v2186 = vand.u32 %v2185, 4294901760
  %2187 = vmatprep.subr.mxu0 %v2186
  %v2188 = vand.u32 %v91, 4294901760
  %v2189 = vsub.f32 %v91, %v2188
  %v2190 = vand.u32 %v2189, 4294901760
  %v2191 = vsub.f32 %v2189, %v2190
  %v2192 = vand.u32 %v2191, 4294901760
  %2193 = vmatpush1.msra.mxu0 %v2192
  %v2194 = vand.u32 %v90, 4294901760
  %v2195 = vsub.f32 %v90, %v2194
  %v2196 = vand.u32 %v2195, 4294901760
  %v2197 = vsub.f32 %v2195, %v2196
  %v2198 = vand.u32 %v2197, 4294901760
  %2199 = vmatprep.subr.mxu0 %v2198
  %v2200 = vand.u32 %v89, 4294901760
  %v2201 = vsub.f32 %v89, %v2200
  %v2202 = vand.u32 %v2201, 4294901760
  %v2203 = vsub.f32 %v2201, %v2202
  %v2204 = vand.u32 %v2203, 4294901760
  %2205 = vmatpush1.msra.mxu0 %v2204
  %v2206 = vand.u32 %v88, 4294901760
  %v2207 = vsub.f32 %v88, %v2206
  %v2208 = vand.u32 %v2207, 4294901760
  %v2209 = vsub.f32 %v2207, %v2208
  %v2210 = vand.u32 %v2209, 4294901760
  %2211 = vmatprep.subr.mxu0 %v2210
  %v2212 = vand.u32 %v87, 4294901760
  %v2213 = vsub.f32 %v87, %v2212
  %v2214 = vand.u32 %v2213, 4294901760
  %v2215 = vsub.f32 %v2213, %v2214
  %v2216 = vand.u32 %v2215, 4294901760
  %2217 = vmatpush1.msra.mxu0 %v2216
  %v2218 = vand.u32 %v86, 4294901760
  %v2219 = vsub.f32 %v86, %v2218
  %v2220 = vand.u32 %v2219, 4294901760
  %v2221 = vsub.f32 %v2219, %v2220
  %v2222 = vand.u32 %v2221, 4294901760
  %2223 = vmatprep.subr.mxu0 %v2222
  %v2224 = vand.u32 %v85, 4294901760
  %v2225 = vsub.f32 %v85, %v2224
  %v2226 = vand.u32 %v2225, 4294901760
  %v2227 = vsub.f32 %v2225, %v2226
  %v2228 = vand.u32 %v2227, 4294901760
  %2229 = vmatpush1.msra.mxu0 %v2228
  %v2230 = vand.u32 %v84, 4294901760
  %v2231 = vsub.f32 %v84, %v2230
  %v2232 = vand.u32 %v2231, 4294901760
  %v2233 = vsub.f32 %v2231, %v2232
  %v2234 = vand.u32 %v2233, 4294901760
  %2235 = vmatprep.subr.mxu0 %v2234
  %v2236 = vand.u32 %v83, 4294901760
  %v2237 = vsub.f32 %v83, %v2236
  %v2238 = vand.u32 %v2237, 4294901760
  %v2239 = vsub.f32 %v2237, %v2238
  %v2240 = vand.u32 %v2239, 4294901760
  %2241 = vmatpush1.msra.mxu0 %v2240
  %v2242 = vand.u32 %v82, 4294901760
  %v2243 = vsub.f32 %v82, %v2242
  %v2244 = vand.u32 %v2243, 4294901760
  %v2245 = vsub.f32 %v2243, %v2244
  %v2246 = vand.u32 %v2245, 4294901760
  %2247 = vmatprep.subr.mxu0 %v2246
  %v2248 = vand.u32 %v81, 4294901760
  %v2249 = vsub.f32 %v81, %v2248
  %v2250 = vand.u32 %v2249, 4294901760
  %v2251 = vsub.f32 %v2249, %v2250
  %v2252 = vand.u32 %v2251, 4294901760
  %2253 = vmatpush1.msra.mxu0 %v2252
  %2254 = vmatprep.subr.mxu0 0.0
  %2255 = vmatpush2.msra.mxu0 0.0
  %2256 = vmatprep.subr.mxu0 0.0
  %2257 = vmatpush2.msra.mxu0 0.0
  %2258 = vmatprep.subr.mxu0 0.0
  %2259 = vmatpush2.msra.mxu0 0.0
  %2260 = vmatprep.subr.mxu0 0.0
  %2261 = vmatpush2.msra.mxu0 0.0
  %2262 = vmatprep.subr.mxu0 0.0
  %2263 = vmatpush2.msra.mxu0 0.0
  %2264 = vmatprep.subr.mxu0 0.0
  %2265 = vmatpush2.msra.mxu0 0.0
  %2266 = vmatprep.subr.mxu0 0.0
  %2267 = vmatpush2.msra.mxu0 0.0
  %2268 = vmatprep.subr.mxu0 0.0
  %2269 = vmatpush2.msra.mxu0 0.0
  %2270 = vmatprep.subr.mxu0 0.0
  %2271 = vmatpush2.msra.mxu0 0.0
  %2272 = vmatprep.subr.mxu0 0.0
  %2273 = vmatpush2.msra.mxu0 0.0
  %2274 = vmatprep.subr.mxu0 0.0
  %2275 = vmatpush2.msra.mxu0 0.0
  %2276 = vmatprep.subr.mxu0 0.0
  %2277 = vmatpush2.msra.mxu0 0.0
  %2278 = vmatprep.subr.mxu0 0.0
  %2279 = vmatpush2.msra.mxu0 0.0
  %2280 = vmatprep.subr.mxu0 0.0
  %2281 = vmatpush2.msra.mxu0 0.0
  %2282 = vmatprep.subr.mxu0 0.0
  %2283 = vmatpush2.msra.mxu0 0.0
  %2284 = vmatprep.subr.mxu0 0.0
  %2285 = vmatpush2.msra.mxu0 0.0
  %2286 = vmatprep.mubr.f32.mxu0 0.0
  %v2287 = vand.u32 %v1938, 4294901760
  %2288 = vmatmul.mubr.f32.gmra.mxu0 %v2287
  %v2289 = vpop.f32.mrf.mxu0
  %v2290 = vadd.f32 %v2047, %v2289
  %v2291 = vpop.f32.mrf.mxu0
  %v2292 = vadd.f32 %v2049, %v2291
  %2293 = vmatprep.mubr.f32.mxu0 0.0
  %v2294 = vand.u32 %v1940, 4294901760
  %2295 = vmatmul.mubr.f32.gmra.mxu0 %v2294
  %v2296 = vpop.f32.mrf.mxu0
  %v2297 = vadd.f32 %v2058, %v2296
  %v2298 = vpop.f32.mrf.mxu0
  %v2299 = vadd.f32 %v2060, %v2298
  %2300 = vdwg.mxu0
  %v2301 = vand.u32 %v112, 4294901760
  %v2302 = vsub.f32 %v112, %v2301
  %2303 = vmatprep.subr.mxu0 %v2302
  %v2304 = vand.u32 %v111, 4294901760
  %v2305 = vsub.f32 %v111, %v2304
  %2306 = vmatpush1.msra.mxu0 %v2305
  %v2307 = vand.u32 %v110, 4294901760
  %v2308 = vsub.f32 %v110, %v2307
  %2309 = vmatprep.subr.mxu0 %v2308
  %v2310 = vand.u32 %v109, 4294901760
  %v2311 = vsub.f32 %v109, %v2310
  %2312 = vmatpush1.msra.mxu0 %v2311
  %v2313 = vand.u32 %v108, 4294901760
  %v2314 = vsub.f32 %v108, %v2313
  %2315 = vmatprep.subr.mxu0 %v2314
  %v2316 = vand.u32 %v107, 4294901760
  %v2317 = vsub.f32 %v107, %v2316
  %2318 = vmatpush1.msra.mxu0 %v2317
  %v2319 = vand.u32 %v106, 4294901760
  %v2320 = vsub.f32 %v106, %v2319
  %2321 = vmatprep.subr.mxu0 %v2320
  %v2322 = vand.u32 %v105, 4294901760
  %v2323 = vsub.f32 %v105, %v2322
  %2324 = vmatpush1.msra.mxu0 %v2323
  %v2325 = vand.u32 %v104, 4294901760
  %v2326 = vsub.f32 %v104, %v2325
  %2327 = vmatprep.subr.mxu0 %v2326
  %v2328 = vand.u32 %v103, 4294901760
  %v2329 = vsub.f32 %v103, %v2328
  %2330 = vmatpush1.msra.mxu0 %v2329
  %v2331 = vand.u32 %v102, 4294901760
  %v2332 = vsub.f32 %v102, %v2331
  %2333 = vmatprep.subr.mxu0 %v2332
  %v2334 = vand.u32 %v101, 4294901760
  %v2335 = vsub.f32 %v101, %v2334
  %2336 = vmatpush1.msra.mxu0 %v2335
  %v2337 = vand.u32 %v100, 4294901760
  %v2338 = vsub.f32 %v100, %v2337
  %2339 = vmatprep.subr.mxu0 %v2338
  %v2340 = vand.u32 %v99, 4294901760
  %v2341 = vsub.f32 %v99, %v2340
  %2342 = vmatpush1.msra.mxu0 %v2341
  %v2343 = vand.u32 %v98, 4294901760
  %v2344 = vsub.f32 %v98, %v2343
  %2345 = vmatprep.subr.mxu0 %v2344
  %v2346 = vand.u32 %v97, 4294901760
  %v2347 = vsub.f32 %v97, %v2346
  %2348 = vmatpush1.msra.mxu0 %v2347
  %v2349 = vand.u32 %v96, 4294901760
  %v2350 = vsub.f32 %v96, %v2349
  %2351 = vmatprep.subr.mxu0 %v2350
  %v2352 = vand.u32 %v95, 4294901760
  %v2353 = vsub.f32 %v95, %v2352
  %2354 = vmatpush1.msra.mxu0 %v2353
  %v2355 = vand.u32 %v94, 4294901760
  %v2356 = vsub.f32 %v94, %v2355
  %2357 = vmatprep.subr.mxu0 %v2356
  %v2358 = vand.u32 %v93, 4294901760
  %v2359 = vsub.f32 %v93, %v2358
  %2360 = vmatpush1.msra.mxu0 %v2359
  %v2361 = vand.u32 %v92, 4294901760
  %v2362 = vsub.f32 %v92, %v2361
  %2363 = vmatprep.subr.mxu0 %v2362
  %v2364 = vand.u32 %v91, 4294901760
  %v2365 = vsub.f32 %v91, %v2364
  %2366 = vmatpush1.msra.mxu0 %v2365
  %v2367 = vand.u32 %v90, 4294901760
  %v2368 = vsub.f32 %v90, %v2367
  %2369 = vmatprep.subr.mxu0 %v2368
  %v2370 = vand.u32 %v89, 4294901760
  %v2371 = vsub.f32 %v89, %v2370
  %2372 = vmatpush1.msra.mxu0 %v2371
  %v2373 = vand.u32 %v88, 4294901760
  %v2374 = vsub.f32 %v88, %v2373
  %2375 = vmatprep.subr.mxu0 %v2374
  %v2376 = vand.u32 %v87, 4294901760
  %v2377 = vsub.f32 %v87, %v2376
  %2378 = vmatpush1.msra.mxu0 %v2377
  %v2379 = vand.u32 %v86, 4294901760
  %v2380 = vsub.f32 %v86, %v2379
  %2381 = vmatprep.subr.mxu0 %v2380
  %v2382 = vand.u32 %v85, 4294901760
  %v2383 = vsub.f32 %v85, %v2382
  %2384 = vmatpush1.msra.mxu0 %v2383
  %v2385 = vand.u32 %v84, 4294901760
  %v2386 = vsub.f32 %v84, %v2385
  %2387 = vmatprep.subr.mxu0 %v2386
  %v2388 = vand.u32 %v83, 4294901760
  %v2389 = vsub.f32 %v83, %v2388
  %2390 = vmatpush1.msra.mxu0 %v2389
  %v2391 = vand.u32 %v82, 4294901760
  %v2392 = vsub.f32 %v82, %v2391
  %2393 = vmatprep.subr.mxu0 %v2392
  %v2394 = vand.u32 %v81, 4294901760
  %v2395 = vsub.f32 %v81, %v2394
  %2396 = vmatpush1.msra.mxu0 %v2395
  %2397 = vmatprep.subr.mxu0 0.0
  %2398 = vmatpush2.msra.mxu0 0.0
  %2399 = vmatprep.subr.mxu0 0.0
  %2400 = vmatpush2.msra.mxu0 0.0
  %2401 = vmatprep.subr.mxu0 0.0
  %2402 = vmatpush2.msra.mxu0 0.0
  %2403 = vmatprep.subr.mxu0 0.0
  %2404 = vmatpush2.msra.mxu0 0.0
  %2405 = vmatprep.subr.mxu0 0.0
  %2406 = vmatpush2.msra.mxu0 0.0
  %2407 = vmatprep.subr.mxu0 0.0
  %2408 = vmatpush2.msra.mxu0 0.0
  %2409 = vmatprep.subr.mxu0 0.0
  %2410 = vmatpush2.msra.mxu0 0.0
  %2411 = vmatprep.subr.mxu0 0.0
  %2412 = vmatpush2.msra.mxu0 0.0
  %2413 = vmatprep.subr.mxu0 0.0
  %2414 = vmatpush2.msra.mxu0 0.0
  %2415 = vmatprep.subr.mxu0 0.0
  %2416 = vmatpush2.msra.mxu0 0.0
  %2417 = vmatprep.subr.mxu0 0.0
  %2418 = vmatpush2.msra.mxu0 0.0
  %2419 = vmatprep.subr.mxu0 0.0
  %2420 = vmatpush2.msra.mxu0 0.0
  %2421 = vmatprep.subr.mxu0 0.0
  %2422 = vmatpush2.msra.mxu0 0.0
  %2423 = vmatprep.subr.mxu0 0.0
  %2424 = vmatpush2.msra.mxu0 0.0
  %2425 = vmatprep.subr.mxu0 0.0
  %2426 = vmatpush2.msra.mxu0 0.0
  %2427 = vmatprep.subr.mxu0 0.0
  %2428 = vmatpush2.msra.mxu0 0.0
  %2429 = vmatprep.mubr.f32.mxu0 0.0
  %v2430 = vand.u32 %v1938, 4294901760
  %v2431 = vsub.f32 %v1938, %v2430
  %2432 = vmatmul.mubr.f32.gmra.mxu0 %v2431
  %v2433 = vpop.f32.mrf.mxu0
  %v2434 = vadd.f32 %v2290, %v2433
  %v2435 = vpop.f32.mrf.mxu0
  %v2436 = vadd.f32 %v2292, %v2435
  %2437 = vmatprep.mubr.f32.mxu0 0.0
  %v2438 = vand.u32 %v1940, 4294901760
  %v2439 = vsub.f32 %v1940, %v2438
  %2440 = vmatmul.mubr.f32.gmra.mxu0 %v2439
  %v2441 = vpop.f32.mrf.mxu0
  %v2442 = vadd.f32 %v2297, %v2441
  %v2443 = vpop.f32.mrf.mxu0
  %v2444 = vadd.f32 %v2299, %v2443
  %2445 = vdwg.mxu0
  %v2446 = vand.u32 %v112, 4294901760
  %2447 = vmatprep.subr.mxu0 %v2446
  %v2448 = vand.u32 %v111, 4294901760
  %2449 = vmatpush1.msra.mxu0 %v2448
  %v2450 = vand.u32 %v110, 4294901760
  %2451 = vmatprep.subr.mxu0 %v2450
  %v2452 = vand.u32 %v109, 4294901760
  %2453 = vmatpush1.msra.mxu0 %v2452
  %v2454 = vand.u32 %v108, 4294901760
  %2455 = vmatprep.subr.mxu0 %v2454
  %v2456 = vand.u32 %v107, 4294901760
  %2457 = vmatpush1.msra.mxu0 %v2456
  %v2458 = vand.u32 %v106, 4294901760
  %2459 = vmatprep.subr.mxu0 %v2458
  %v2460 = vand.u32 %v105, 4294901760
  %2461 = vmatpush1.msra.mxu0 %v2460
  %v2462 = vand.u32 %v104, 4294901760
  %2463 = vmatprep.subr.mxu0 %v2462
  %v2464 = vand.u32 %v103, 4294901760
  %2465 = vmatpush1.msra.mxu0 %v2464
  %v2466 = vand.u32 %v102, 4294901760
  %2467 = vmatprep.subr.mxu0 %v2466
  %v2468 = vand.u32 %v101, 4294901760
  %2469 = vmatpush1.msra.mxu0 %v2468
  %v2470 = vand.u32 %v100, 4294901760
  %2471 = vmatprep.subr.mxu0 %v2470
  %v2472 = vand.u32 %v99, 4294901760
  %2473 = vmatpush1.msra.mxu0 %v2472
  %v2474 = vand.u32 %v98, 4294901760
  %2475 = vmatprep.subr.mxu0 %v2474
  %v2476 = vand.u32 %v97, 4294901760
  %2477 = vmatpush1.msra.mxu0 %v2476
  %v2478 = vand.u32 %v96, 4294901760
  %2479 = vmatprep.subr.mxu0 %v2478
  %v2480 = vand.u32 %v95, 4294901760
  %2481 = vmatpush1.msra.mxu0 %v2480
  %v2482 = vand.u32 %v94, 4294901760
  %2483 = vmatprep.subr.mxu0 %v2482
  %v2484 = vand.u32 %v93, 4294901760
  %2485 = vmatpush1.msra.mxu0 %v2484
  %v2486 = vand.u32 %v92, 4294901760
  %2487 = vmatprep.subr.mxu0 %v2486
  %v2488 = vand.u32 %v91, 4294901760
  %2489 = vmatpush1.msra.mxu0 %v2488
  %v2490 = vand.u32 %v90, 4294901760
  %2491 = vmatprep.subr.mxu0 %v2490
  %v2492 = vand.u32 %v89, 4294901760
  %2493 = vmatpush1.msra.mxu0 %v2492
  %v2494 = vand.u32 %v88, 4294901760
  %2495 = vmatprep.subr.mxu0 %v2494
  %v2496 = vand.u32 %v87, 4294901760
  %2497 = vmatpush1.msra.mxu0 %v2496
  %v2498 = vand.u32 %v86, 4294901760
  %2499 = vmatprep.subr.mxu0 %v2498
  %v2500 = vand.u32 %v85, 4294901760
  %2501 = vmatpush1.msra.mxu0 %v2500
  %v2502 = vand.u32 %v84, 4294901760
  %2503 = vmatprep.subr.mxu0 %v2502
  %v2504 = vand.u32 %v83, 4294901760
  %2505 = vmatpush1.msra.mxu0 %v2504
  %v2506 = vand.u32 %v82, 4294901760
  %2507 = vmatprep.subr.mxu0 %v2506
  %v2508 = vand.u32 %v81, 4294901760
  %2509 = vmatpush1.msra.mxu0 %v2508
  %2510 = vmatprep.subr.mxu0 0.0
  %2511 = vmatpush2.msra.mxu0 0.0
  %2512 = vmatprep.subr.mxu0 0.0
  %2513 = vmatpush2.msra.mxu0 0.0
  %2514 = vmatprep.subr.mxu0 0.0
  %2515 = vmatpush2.msra.mxu0 0.0
  %2516 = vmatprep.subr.mxu0 0.0
  %2517 = vmatpush2.msra.mxu0 0.0
  %2518 = vmatprep.subr.mxu0 0.0
  %2519 = vmatpush2.msra.mxu0 0.0
  %2520 = vmatprep.subr.mxu0 0.0
  %2521 = vmatpush2.msra.mxu0 0.0
  %2522 = vmatprep.subr.mxu0 0.0
  %2523 = vmatpush2.msra.mxu0 0.0
  %2524 = vmatprep.subr.mxu0 0.0
  %2525 = vmatpush2.msra.mxu0 0.0
  %2526 = vmatprep.subr.mxu0 0.0
  %2527 = vmatpush2.msra.mxu0 0.0
  %2528 = vmatprep.subr.mxu0 0.0
  %2529 = vmatpush2.msra.mxu0 0.0
  %2530 = vmatprep.subr.mxu0 0.0
  %2531 = vmatpush2.msra.mxu0 0.0
  %2532 = vmatprep.subr.mxu0 0.0
  %2533 = vmatpush2.msra.mxu0 0.0
  %2534 = vmatprep.subr.mxu0 0.0
  %2535 = vmatpush2.msra.mxu0 0.0
  %2536 = vmatprep.subr.mxu0 0.0
  %2537 = vmatpush2.msra.mxu0 0.0
  %2538 = vmatprep.subr.mxu0 0.0
  %2539 = vmatpush2.msra.mxu0 0.0
  %2540 = vmatprep.subr.mxu0 0.0
  %2541 = vmatpush2.msra.mxu0 0.0
  %2542 = vmatprep.mubr.f32.mxu0 0.0
  %v2543 = vand.u32 %v1938, 4294901760
  %v2544 = vsub.f32 %v1938, %v2543
  %v2545 = vand.u32 %v2544, 4294901760
  %2546 = vmatmul.mubr.f32.gmra.mxu0 %v2545
  %v2547 = vpop.f32.mrf.mxu0
  %v2548 = vadd.f32 %v2434, %v2547
  %v2549 = vpop.f32.mrf.mxu0
  %v2550 = vadd.f32 %v2436, %v2549
  %2551 = vmatprep.mubr.f32.mxu0 0.0
  %v2552 = vand.u32 %v1940, 4294901760
  %v2553 = vsub.f32 %v1940, %v2552
  %v2554 = vand.u32 %v2553, 4294901760
  %2555 = vmatmul.mubr.f32.gmra.mxu0 %v2554
  %v2556 = vpop.f32.mrf.mxu0
  %v2557 = vadd.f32 %v2442, %v2556
  %v2558 = vpop.f32.mrf.mxu0
  %v2559 = vadd.f32 %v2444, %v2558
  %2560 = vdwg.mxu0
  %v2561 = vand.u32 %v112, 4294901760
  %v2562 = vsub.f32 %v112, %v2561
  %v2563 = vand.u32 %v2562, 4294901760
  %2564 = vmatprep.subr.mxu0 %v2563
  %v2565 = vand.u32 %v111, 4294901760
  %v2566 = vsub.f32 %v111, %v2565
  %v2567 = vand.u32 %v2566, 4294901760
  %2568 = vmatpush1.msra.mxu0 %v2567
  %v2569 = vand.u32 %v110, 4294901760
  %v2570 = vsub.f32 %v110, %v2569
  %v2571 = vand.u32 %v2570, 4294901760
  %2572 = vmatprep.subr.mxu0 %v2571
  %v2573 = vand.u32 %v109, 4294901760
  %v2574 = vsub.f32 %v109, %v2573
  %v2575 = vand.u32 %v2574, 4294901760
  %2576 = vmatpush1.msra.mxu0 %v2575
  %v2577 = vand.u32 %v108, 4294901760
  %v2578 = vsub.f32 %v108, %v2577
  %v2579 = vand.u32 %v2578, 4294901760
  %2580 = vmatprep.subr.mxu0 %v2579
  %v2581 = vand.u32 %v107, 4294901760
  %v2582 = vsub.f32 %v107, %v2581
  %v2583 = vand.u32 %v2582, 4294901760
  %2584 = vmatpush1.msra.mxu0 %v2583
  %v2585 = vand.u32 %v106, 4294901760
  %v2586 = vsub.f32 %v106, %v2585
  %v2587 = vand.u32 %v2586, 4294901760
  %2588 = vmatprep.subr.mxu0 %v2587
  %v2589 = vand.u32 %v105, 4294901760
  %v2590 = vsub.f32 %v105, %v2589
  %v2591 = vand.u32 %v2590, 4294901760
  %2592 = vmatpush1.msra.mxu0 %v2591
  %v2593 = vand.u32 %v104, 4294901760
  %v2594 = vsub.f32 %v104, %v2593
  %v2595 = vand.u32 %v2594, 4294901760
  %2596 = vmatprep.subr.mxu0 %v2595
  %v2597 = vand.u32 %v103, 4294901760
  %v2598 = vsub.f32 %v103, %v2597
  %v2599 = vand.u32 %v2598, 4294901760
  %2600 = vmatpush1.msra.mxu0 %v2599
  %v2601 = vand.u32 %v102, 4294901760
  %v2602 = vsub.f32 %v102, %v2601
  %v2603 = vand.u32 %v2602, 4294901760
  %2604 = vmatprep.subr.mxu0 %v2603
  %v2605 = vand.u32 %v101, 4294901760
  %v2606 = vsub.f32 %v101, %v2605
  %v2607 = vand.u32 %v2606, 4294901760
  %2608 = vmatpush1.msra.mxu0 %v2607
  %v2609 = vand.u32 %v100, 4294901760
  %v2610 = vsub.f32 %v100, %v2609
  %v2611 = vand.u32 %v2610, 4294901760
  %2612 = vmatprep.subr.mxu0 %v2611
  %v2613 = vand.u32 %v99, 4294901760
  %v2614 = vsub.f32 %v99, %v2613
  %v2615 = vand.u32 %v2614, 4294901760
  %2616 = vmatpush1.msra.mxu0 %v2615
  %v2617 = vand.u32 %v98, 4294901760
  %v2618 = vsub.f32 %v98, %v2617
  %v2619 = vand.u32 %v2618, 4294901760
  %2620 = vmatprep.subr.mxu0 %v2619
  %v2621 = vand.u32 %v97, 4294901760
  %v2622 = vsub.f32 %v97, %v2621
  %v2623 = vand.u32 %v2622, 4294901760
  %2624 = vmatpush1.msra.mxu0 %v2623
  %v2625 = vand.u32 %v96, 4294901760
  %v2626 = vsub.f32 %v96, %v2625
  %v2627 = vand.u32 %v2626, 4294901760
  %2628 = vmatprep.subr.mxu0 %v2627
  %v2629 = vand.u32 %v95, 4294901760
  %v2630 = vsub.f32 %v95, %v2629
  %v2631 = vand.u32 %v2630, 4294901760
  %2632 = vmatpush1.msra.mxu0 %v2631
  %v2633 = vand.u32 %v94, 4294901760
  %v2634 = vsub.f32 %v94, %v2633
  %v2635 = vand.u32 %v2634, 4294901760
  %2636 = vmatprep.subr.mxu0 %v2635
  %v2637 = vand.u32 %v93, 4294901760
  %v2638 = vsub.f32 %v93, %v2637
  %v2639 = vand.u32 %v2638, 4294901760
  %2640 = vmatpush1.msra.mxu0 %v2639
  %v2641 = vand.u32 %v92, 4294901760
  %v2642 = vsub.f32 %v92, %v2641
  %v2643 = vand.u32 %v2642, 4294901760
  %2644 = vmatprep.subr.mxu0 %v2643
  %v2645 = vand.u32 %v91, 4294901760
  %v2646 = vsub.f32 %v91, %v2645
  %v2647 = vand.u32 %v2646, 4294901760
  %2648 = vmatpush1.msra.mxu0 %v2647
  %v2649 = vand.u32 %v90, 4294901760
  %v2650 = vsub.f32 %v90, %v2649
  %v2651 = vand.u32 %v2650, 4294901760
  %2652 = vmatprep.subr.mxu0 %v2651
  %v2653 = vand.u32 %v89, 4294901760
  %v2654 = vsub.f32 %v89, %v2653
  %v2655 = vand.u32 %v2654, 4294901760
  %2656 = vmatpush1.msra.mxu0 %v2655
  %v2657 = vand.u32 %v88, 4294901760
  %v2658 = vsub.f32 %v88, %v2657
  %v2659 = vand.u32 %v2658, 4294901760
  %2660 = vmatprep.subr.mxu0 %v2659
  %v2661 = vand.u32 %v87, 4294901760
  %v2662 = vsub.f32 %v87, %v2661
  %v2663 = vand.u32 %v2662, 4294901760
  %2664 = vmatpush1.msra.mxu0 %v2663
  %v2665 = vand.u32 %v86, 4294901760
  %v2666 = vsub.f32 %v86, %v2665
  %v2667 = vand.u32 %v2666, 4294901760
  %2668 = vmatprep.subr.mxu0 %v2667
  %v2669 = vand.u32 %v85, 4294901760
  %v2670 = vsub.f32 %v85, %v2669
  %v2671 = vand.u32 %v2670, 4294901760
  %2672 = vmatpush1.msra.mxu0 %v2671
  %v2673 = vand.u32 %v84, 4294901760
  %v2674 = vsub.f32 %v84, %v2673
  %v2675 = vand.u32 %v2674, 4294901760
  %2676 = vmatprep.subr.mxu0 %v2675
  %v2677 = vand.u32 %v83, 4294901760
  %v2678 = vsub.f32 %v83, %v2677
  %v2679 = vand.u32 %v2678, 4294901760
  %2680 = vmatpush1.msra.mxu0 %v2679
  %v2681 = vand.u32 %v82, 4294901760
  %v2682 = vsub.f32 %v82, %v2681
  %v2683 = vand.u32 %v2682, 4294901760
  %2684 = vmatprep.subr.mxu0 %v2683
  %v2685 = vand.u32 %v81, 4294901760
  %v2686 = vsub.f32 %v81, %v2685
  %v2687 = vand.u32 %v2686, 4294901760
  %2688 = vmatpush1.msra.mxu0 %v2687
  %2689 = vmatprep.subr.mxu0 0.0
  %2690 = vmatpush2.msra.mxu0 0.0
  %2691 = vmatprep.subr.mxu0 0.0
  %2692 = vmatpush2.msra.mxu0 0.0
  %2693 = vmatprep.subr.mxu0 0.0
  %2694 = vmatpush2.msra.mxu0 0.0
  %2695 = vmatprep.subr.mxu0 0.0
  %2696 = vmatpush2.msra.mxu0 0.0
  %2697 = vmatprep.subr.mxu0 0.0
  %2698 = vmatpush2.msra.mxu0 0.0
  %2699 = vmatprep.subr.mxu0 0.0
  %2700 = vmatpush2.msra.mxu0 0.0
  %2701 = vmatprep.subr.mxu0 0.0
  %2702 = vmatpush2.msra.mxu0 0.0
  %2703 = vmatprep.subr.mxu0 0.0
  %2704 = vmatpush2.msra.mxu0 0.0
  %2705 = vmatprep.subr.mxu0 0.0
  %2706 = vmatpush2.msra.mxu0 0.0
  %2707 = vmatprep.subr.mxu0 0.0
  %2708 = vmatpush2.msra.mxu0 0.0
  %2709 = vmatprep.subr.mxu0 0.0
  %2710 = vmatpush2.msra.mxu0 0.0
  %2711 = vmatprep.subr.mxu0 0.0
  %2712 = vmatpush2.msra.mxu0 0.0
  %2713 = vmatprep.subr.mxu0 0.0
  %2714 = vmatpush2.msra.mxu0 0.0
  %2715 = vmatprep.subr.mxu0 0.0
  %2716 = vmatpush2.msra.mxu0 0.0
  %2717 = vmatprep.subr.mxu0 0.0
  %2718 = vmatpush2.msra.mxu0 0.0
  %2719 = vmatprep.subr.mxu0 0.0
  %2720 = vmatpush2.msra.mxu0 0.0
  %2721 = vmatprep.mubr.f32.mxu0 0.0
  %v2722 = vand.u32 %v1938, 4294901760
  %2723 = vmatmul.mubr.f32.gmra.mxu0 %v2722
  %v2724 = vpop.f32.mrf.mxu0
  %v2725 = vadd.f32 %v2548, %v2724
  %v2726 = vpop.f32.mrf.mxu0
  %v2727 = vadd.f32 %v2550, %v2726
  %2728 = vmatprep.mubr.f32.mxu0 0.0
  %v2729 = vand.u32 %v1940, 4294901760
  %2730 = vmatmul.mubr.f32.gmra.mxu0 %v2729
  %v2731 = vpop.f32.mrf.mxu0
  %v2732 = vadd.f32 %v2557, %v2731
  %v2733 = vpop.f32.mrf.mxu0
  %v2734 = vadd.f32 %v2559, %v2733
  %2735 = vdwg.mxu0
  %v2736 = vand.u32 %v112, 4294901760
  %2737 = vmatprep.subr.mxu0 %v2736
  %v2738 = vand.u32 %v111, 4294901760
  %2739 = vmatpush1.msra.mxu0 %v2738
  %v2740 = vand.u32 %v110, 4294901760
  %2741 = vmatprep.subr.mxu0 %v2740
  %v2742 = vand.u32 %v109, 4294901760
  %2743 = vmatpush1.msra.mxu0 %v2742
  %v2744 = vand.u32 %v108, 4294901760
  %2745 = vmatprep.subr.mxu0 %v2744
  %v2746 = vand.u32 %v107, 4294901760
  %2747 = vmatpush1.msra.mxu0 %v2746
  %v2748 = vand.u32 %v106, 4294901760
  %2749 = vmatprep.subr.mxu0 %v2748
  %v2750 = vand.u32 %v105, 4294901760
  %2751 = vmatpush1.msra.mxu0 %v2750
  %v2752 = vand.u32 %v104, 4294901760
  %2753 = vmatprep.subr.mxu0 %v2752
  %v2754 = vand.u32 %v103, 4294901760
  %2755 = vmatpush1.msra.mxu0 %v2754
  %v2756 = vand.u32 %v102, 4294901760
  %2757 = vmatprep.subr.mxu0 %v2756
  %v2758 = vand.u32 %v101, 4294901760
  %2759 = vmatpush1.msra.mxu0 %v2758
  %v2760 = vand.u32 %v100, 4294901760
  %2761 = vmatprep.subr.mxu0 %v2760
  %v2762 = vand.u32 %v99, 4294901760
  %2763 = vmatpush1.msra.mxu0 %v2762
  %v2764 = vand.u32 %v98, 4294901760
  %2765 = vmatprep.subr.mxu0 %v2764
  %v2766 = vand.u32 %v97, 4294901760
  %2767 = vmatpush1.msra.mxu0 %v2766
  %v2768 = vand.u32 %v96, 4294901760
  %2769 = vmatprep.subr.mxu0 %v2768
  %v2770 = vand.u32 %v95, 4294901760
  %2771 = vmatpush1.msra.mxu0 %v2770
  %v2772 = vand.u32 %v94, 4294901760
  %2773 = vmatprep.subr.mxu0 %v2772
  %v2774 = vand.u32 %v93, 4294901760
  %2775 = vmatpush1.msra.mxu0 %v2774
  %v2776 = vand.u32 %v92, 4294901760
  %2777 = vmatprep.subr.mxu0 %v2776
  %v2778 = vand.u32 %v91, 4294901760
  %2779 = vmatpush1.msra.mxu0 %v2778
  %v2780 = vand.u32 %v90, 4294901760
  %2781 = vmatprep.subr.mxu0 %v2780
  %v2782 = vand.u32 %v89, 4294901760
  %2783 = vmatpush1.msra.mxu0 %v2782
  %v2784 = vand.u32 %v88, 4294901760
  %2785 = vmatprep.subr.mxu0 %v2784
  %v2786 = vand.u32 %v87, 4294901760
  %2787 = vmatpush1.msra.mxu0 %v2786
  %v2788 = vand.u32 %v86, 4294901760
  %2789 = vmatprep.subr.mxu0 %v2788
  %v2790 = vand.u32 %v85, 4294901760
  %2791 = vmatpush1.msra.mxu0 %v2790
  %v2792 = vand.u32 %v84, 4294901760
  %2793 = vmatprep.subr.mxu0 %v2792
  %v2794 = vand.u32 %v83, 4294901760
  %2795 = vmatpush1.msra.mxu0 %v2794
  %v2796 = vand.u32 %v82, 4294901760
  %2797 = vmatprep.subr.mxu0 %v2796
  %v2798 = vand.u32 %v81, 4294901760
  %2799 = vmatpush1.msra.mxu0 %v2798
  %2800 = vmatprep.subr.mxu0 0.0
  %2801 = vmatpush2.msra.mxu0 0.0
  %2802 = vmatprep.subr.mxu0 0.0
  %2803 = vmatpush2.msra.mxu0 0.0
  %2804 = vmatprep.subr.mxu0 0.0
  %2805 = vmatpush2.msra.mxu0 0.0
  %2806 = vmatprep.subr.mxu0 0.0
  %2807 = vmatpush2.msra.mxu0 0.0
  %2808 = vmatprep.subr.mxu0 0.0
  %2809 = vmatpush2.msra.mxu0 0.0
  %2810 = vmatprep.subr.mxu0 0.0
  %2811 = vmatpush2.msra.mxu0 0.0
  %2812 = vmatprep.subr.mxu0 0.0
  %2813 = vmatpush2.msra.mxu0 0.0
  %2814 = vmatprep.subr.mxu0 0.0
  %2815 = vmatpush2.msra.mxu0 0.0
  %2816 = vmatprep.subr.mxu0 0.0
  %2817 = vmatpush2.msra.mxu0 0.0
  %2818 = vmatprep.subr.mxu0 0.0
  %2819 = vmatpush2.msra.mxu0 0.0
  %2820 = vmatprep.subr.mxu0 0.0
  %2821 = vmatpush2.msra.mxu0 0.0
  %2822 = vmatprep.subr.mxu0 0.0
  %2823 = vmatpush2.msra.mxu0 0.0
  %2824 = vmatprep.subr.mxu0 0.0
  %2825 = vmatpush2.msra.mxu0 0.0
  %2826 = vmatprep.subr.mxu0 0.0
  %2827 = vmatpush2.msra.mxu0 0.0
  %2828 = vmatprep.subr.mxu0 0.0
  %2829 = vmatpush2.msra.mxu0 0.0
  %2830 = vmatprep.subr.mxu0 0.0
  %2831 = vmatpush2.msra.mxu0 0.0
  %2832 = vmatprep.mubr.f32.mxu0 0.0
  %v2833 = vand.u32 %v1938, 4294901760
  %2834 = vmatmul.mubr.f32.gmra.mxu0 %v2833
  %v2835 = vpop.f32.mrf.mxu0
  %v2836 = vadd.f32 %v2725, %v2835
  %v2837 = vpop.f32.mrf.mxu0
  %v2838 = vadd.f32 %v2727, %v2837
  %2839 = vmatprep.mubr.f32.mxu0 0.0
  %v2840 = vand.u32 %v1940, 4294901760
  %2841 = vmatmul.mubr.f32.gmra.mxu0 %v2840
  %v2842 = vpop.f32.mrf.mxu0
  %v2843 = vadd.f32 %v2732, %v2842
  %v2844 = vpop.f32.mrf.mxu0
  %v2845 = vadd.f32 %v2734, %v2844
  %2846 = vdwg.mxu0
  %v2847 = vadd.f32 %v1924, %v2836
  %v2848 = vadd.f32 %v1926, %v2838
  %v2849 = vadd.f32 %v1931, %v2843
  %v2850 = vadd.f32 %v1933, %v2845
  %v2852 = vlaneseq
  %v2853 = vshrl.u32 %v2852, 7
  %v2854 = vsub.s32 0, %v2853
  %v2855 = vrot.slane %v14, %v2854
  %v2856 = vlaneseq
  %v2857 = vshrl.u32 %v2856, 7
  %v2858 = vsub.s32 1, %v2857
  %v2859 = vrot.slane %v14, %v2858
  %v2862 = vadd.f32 %v2847, %v2855
  %v2863 = vadd.f32 %v2848, %v2859
  %v2864 = vadd.f32 %v2849, %v2855
  %v2865 = vadd.f32 %v2850, %v2859
  %2866 = vst [vmem:[%s3] sm:$0xff] %v2862
  %2867 = vst [vmem:[%s3 + $0x8] sm:$0xff] %v2863
  %2868 = vst [vmem:[%s3 + $0x10] sm:$0xff] %v2864
  %2869 = vst [vmem:[%s3 + $0x18] sm:$0xff] %v2865
  %s2870 = scalar_lea.vmem %s0, 24
  %v2871 = vld [vmem:[%s2870] sm:$0xff]
  %v2872 = vld [vmem:[%s2870 + $0x8] sm:$0xff]
  %v2873 = vld [vmem:[%s2870 + $0x10] sm:$0x3]
  %v2877 = vrot.slane %v2871, 1
  %v2878 = vrot.slane %v2872, 1
  %v2879 = vsel %vm119, %v2877, %v2878
  %v2880 = vrot.slane %v2873, 1
  %v2881 = vsel %vm119, %v2878, %v2880
  %v2884 = vand.u32 %v79, 4294901760
  %2885 = vmatprep.subr.mxu0 %v2884
  %v2886 = vand.u32 %v78, 4294901760
  %2887 = vmatpush1.msra.mxu0 %v2886
  %v2888 = vand.u32 %v77, 4294901760
  %2889 = vmatprep.subr.mxu0 %v2888
  %v2890 = vand.u32 %v76, 4294901760
  %2891 = vmatpush1.msra.mxu0 %v2890
  %v2892 = vand.u32 %v75, 4294901760
  %2893 = vmatprep.subr.mxu0 %v2892
  %v2894 = vand.u32 %v74, 4294901760
  %2895 = vmatpush1.msra.mxu0 %v2894
  %v2896 = vand.u32 %v73, 4294901760
  %2897 = vmatprep.subr.mxu0 %v2896
  %v2898 = vand.u32 %v72, 4294901760
  %2899 = vmatpush1.msra.mxu0 %v2898
  %v2900 = vand.u32 %v71, 4294901760
  %2901 = vmatprep.subr.mxu0 %v2900
  %v2902 = vand.u32 %v70, 4294901760
  %2903 = vmatpush1.msra.mxu0 %v2902
  %v2904 = vand.u32 %v69, 4294901760
  %2905 = vmatprep.subr.mxu0 %v2904
  %v2906 = vand.u32 %v68, 4294901760
  %2907 = vmatpush1.msra.mxu0 %v2906
  %v2908 = vand.u32 %v67, 4294901760
  %2909 = vmatprep.subr.mxu0 %v2908
  %v2910 = vand.u32 %v66, 4294901760
  %2911 = vmatpush1.msra.mxu0 %v2910
  %v2912 = vand.u32 %v65, 4294901760
  %2913 = vmatprep.subr.mxu0 %v2912
  %v2914 = vand.u32 %v64, 4294901760
  %2915 = vmatpush1.msra.mxu0 %v2914
  %v2916 = vand.u32 %v63, 4294901760
  %2917 = vmatprep.subr.mxu0 %v2916
  %v2918 = vand.u32 %v62, 4294901760
  %2919 = vmatpush1.msra.mxu0 %v2918
  %v2920 = vand.u32 %v61, 4294901760
  %2921 = vmatprep.subr.mxu0 %v2920
  %v2922 = vand.u32 %v60, 4294901760
  %2923 = vmatpush1.msra.mxu0 %v2922
  %v2924 = vand.u32 %v59, 4294901760
  %2925 = vmatprep.subr.mxu0 %v2924
  %v2926 = vand.u32 %v58, 4294901760
  %2927 = vmatpush1.msra.mxu0 %v2926
  %v2928 = vand.u32 %v57, 4294901760
  %2929 = vmatprep.subr.mxu0 %v2928
  %v2930 = vand.u32 %v56, 4294901760
  %2931 = vmatpush1.msra.mxu0 %v2930
  %v2932 = vand.u32 %v55, 4294901760
  %2933 = vmatprep.subr.mxu0 %v2932
  %v2934 = vand.u32 %v54, 4294901760
  %2935 = vmatpush1.msra.mxu0 %v2934
  %v2936 = vand.u32 %v53, 4294901760
  %2937 = vmatprep.subr.mxu0 %v2936
  %v2938 = vand.u32 %v52, 4294901760
  %2939 = vmatpush1.msra.mxu0 %v2938
  %v2940 = vand.u32 %v51, 4294901760
  %2941 = vmatprep.subr.mxu0 %v2940
  %v2942 = vand.u32 %v50, 4294901760
  %2943 = vmatpush1.msra.mxu0 %v2942
  %v2944 = vand.u32 %v49, 4294901760
  %2945 = vmatprep.subr.mxu0 %v2944
  %v2946 = vand.u32 %v48, 4294901760
  %2947 = vmatpush1.msra.mxu0 %v2946
  %2948 = vmatprep.subr.mxu0 0.0
  %2949 = vmatpush2.msra.mxu0 0.0
  %2950 = vmatprep.subr.mxu0 0.0
  %2951 = vmatpush2.msra.mxu0 0.0
  %2952 = vmatprep.subr.mxu0 0.0
  %2953 = vmatpush2.msra.mxu0 0.0
  %2954 = vmatprep.subr.mxu0 0.0
  %2955 = vmatpush2.msra.mxu0 0.0
  %2956 = vmatprep.subr.mxu0 0.0
  %2957 = vmatpush2.msra.mxu0 0.0
  %2958 = vmatprep.subr.mxu0 0.0
  %2959 = vmatpush2.msra.mxu0 0.0
  %2960 = vmatprep.subr.mxu0 0.0
  %2961 = vmatpush2.msra.mxu0 0.0
  %2962 = vmatprep.subr.mxu0 0.0
  %2963 = vmatpush2.msra.mxu0 0.0
  %2964 = vmatprep.subr.mxu0 0.0
  %2965 = vmatpush2.msra.mxu0 0.0
  %2966 = vmatprep.subr.mxu0 0.0
  %2967 = vmatpush2.msra.mxu0 0.0
  %2968 = vmatprep.subr.mxu0 0.0
  %2969 = vmatpush2.msra.mxu0 0.0
  %2970 = vmatprep.subr.mxu0 0.0
  %2971 = vmatpush2.msra.mxu0 0.0
  %2972 = vmatprep.subr.mxu0 0.0
  %2973 = vmatpush2.msra.mxu0 0.0
  %2974 = vmatprep.subr.mxu0 0.0
  %2975 = vmatpush2.msra.mxu0 0.0
  %2976 = vmatprep.subr.mxu0 0.0
  %2977 = vmatpush2.msra.mxu0 0.0
  %2978 = vmatprep.subr.mxu0 0.0
  %2979 = vmatpush2.msra.mxu0 0.0
  %2980 = vmatprep.mubr.f32.mxu0 0.0
  %v2981 = vand.u32 %v2879, 4294901760
  %v2982 = vsub.f32 %v2879, %v2981
  %v2983 = vand.u32 %v2982, 4294901760
  %v2984 = vsub.f32 %v2982, %v2983
  %v2985 = vand.u32 %v2984, 4294901760
  %2986 = vmatmul.mubr.f32.gmra.mxu0 %v2985
  %v2987 = vpop.f32.mrf.mxu0
  %v2988 = vadd.f32 0.0, %v2987
  %v2989 = vpop.f32.mrf.mxu0
  %v2990 = vadd.f32 0.0, %v2989
  %2991 = vmatprep.mubr.f32.mxu0 0.0
  %v2992 = vand.u32 %v2881, 4294901760
  %v2993 = vsub.f32 %v2881, %v2992
  %v2994 = vand.u32 %v2993, 4294901760
  %v2995 = vsub.f32 %v2993, %v2994
  %v2996 = vand.u32 %v2995, 4294901760
  %2997 = vmatmul.mubr.f32.gmra.mxu0 %v2996
  %v2998 = vpop.f32.mrf.mxu0
  %v2999 = vadd.f32 0.0, %v2998
  %v3000 = vpop.f32.mrf.mxu0
  %v3001 = vadd.f32 0.0, %v3000
  %3002 = vdwg.mxu0
  %v3003 = vand.u32 %v79, 4294901760
  %v3004 = vsub.f32 %v79, %v3003
  %v3005 = vand.u32 %v3004, 4294901760
  %v3006 = vsub.f32 %v3004, %v3005
  %v3007 = vand.u32 %v3006, 4294901760
  %3008 = vmatprep.subr.mxu0 %v3007
  %v3009 = vand.u32 %v78, 4294901760
  %v3010 = vsub.f32 %v78, %v3009
  %v3011 = vand.u32 %v3010, 4294901760
  %v3012 = vsub.f32 %v3010, %v3011
  %v3013 = vand.u32 %v3012, 4294901760
  %3014 = vmatpush1.msra.mxu0 %v3013
  %v3015 = vand.u32 %v77, 4294901760
  %v3016 = vsub.f32 %v77, %v3015
  %v3017 = vand.u32 %v3016, 4294901760
  %v3018 = vsub.f32 %v3016, %v3017
  %v3019 = vand.u32 %v3018, 4294901760
  %3020 = vmatprep.subr.mxu0 %v3019
  %v3021 = vand.u32 %v76, 4294901760
  %v3022 = vsub.f32 %v76, %v3021
  %v3023 = vand.u32 %v3022, 4294901760
  %v3024 = vsub.f32 %v3022, %v3023
  %v3025 = vand.u32 %v3024, 4294901760
  %3026 = vmatpush1.msra.mxu0 %v3025
  %v3027 = vand.u32 %v75, 4294901760
  %v3028 = vsub.f32 %v75, %v3027
  %v3029 = vand.u32 %v3028, 4294901760
  %v3030 = vsub.f32 %v3028, %v3029
  %v3031 = vand.u32 %v3030, 4294901760
  %3032 = vmatprep.subr.mxu0 %v3031
  %v3033 = vand.u32 %v74, 4294901760
  %v3034 = vsub.f32 %v74, %v3033
  %v3035 = vand.u32 %v3034, 4294901760
  %v3036 = vsub.f32 %v3034, %v3035
  %v3037 = vand.u32 %v3036, 4294901760
  %3038 = vmatpush1.msra.mxu0 %v3037
  %v3039 = vand.u32 %v73, 4294901760
  %v3040 = vsub.f32 %v73, %v3039
  %v3041 = vand.u32 %v3040, 4294901760
  %v3042 = vsub.f32 %v3040, %v3041
  %v3043 = vand.u32 %v3042, 4294901760
  %3044 = vmatprep.subr.mxu0 %v3043
  %v3045 = vand.u32 %v72, 4294901760
  %v3046 = vsub.f32 %v72, %v3045
  %v3047 = vand.u32 %v3046, 4294901760
  %v3048 = vsub.f32 %v3046, %v3047
  %v3049 = vand.u32 %v3048, 4294901760
  %3050 = vmatpush1.msra.mxu0 %v3049
  %v3051 = vand.u32 %v71, 4294901760
  %v3052 = vsub.f32 %v71, %v3051
  %v3053 = vand.u32 %v3052, 4294901760
  %v3054 = vsub.f32 %v3052, %v3053
  %v3055 = vand.u32 %v3054, 4294901760
  %3056 = vmatprep.subr.mxu0 %v3055
  %v3057 = vand.u32 %v70, 4294901760
  %v3058 = vsub.f32 %v70, %v3057
  %v3059 = vand.u32 %v3058, 4294901760
  %v3060 = vsub.f32 %v3058, %v3059
  %v3061 = vand.u32 %v3060, 4294901760
  %3062 = vmatpush1.msra.mxu0 %v3061
  %v3063 = vand.u32 %v69, 4294901760
  %v3064 = vsub.f32 %v69, %v3063
  %v3065 = vand.u32 %v3064, 4294901760
  %v3066 = vsub.f32 %v3064, %v3065
  %v3067 = vand.u32 %v3066, 4294901760
  %3068 = vmatprep.subr.mxu0 %v3067
  %v3069 = vand.u32 %v68, 4294901760
  %v3070 = vsub.f32 %v68, %v3069
  %v3071 = vand.u32 %v3070, 4294901760
  %v3072 = vsub.f32 %v3070, %v3071
  %v3073 = vand.u32 %v3072, 4294901760
  %3074 = vmatpush1.msra.mxu0 %v3073
  %v3075 = vand.u32 %v67, 4294901760
  %v3076 = vsub.f32 %v67, %v3075
  %v3077 = vand.u32 %v3076, 4294901760
  %v3078 = vsub.f32 %v3076, %v3077
  %v3079 = vand.u32 %v3078, 4294901760
  %3080 = vmatprep.subr.mxu0 %v3079
  %v3081 = vand.u32 %v66, 4294901760
  %v3082 = vsub.f32 %v66, %v3081
  %v3083 = vand.u32 %v3082, 4294901760
  %v3084 = vsub.f32 %v3082, %v3083
  %v3085 = vand.u32 %v3084, 4294901760
  %3086 = vmatpush1.msra.mxu0 %v3085
  %v3087 = vand.u32 %v65, 4294901760
  %v3088 = vsub.f32 %v65, %v3087
  %v3089 = vand.u32 %v3088, 4294901760
  %v3090 = vsub.f32 %v3088, %v3089
  %v3091 = vand.u32 %v3090, 4294901760
  %3092 = vmatprep.subr.mxu0 %v3091
  %v3093 = vand.u32 %v64, 4294901760
  %v3094 = vsub.f32 %v64, %v3093
  %v3095 = vand.u32 %v3094, 4294901760
  %v3096 = vsub.f32 %v3094, %v3095
  %v3097 = vand.u32 %v3096, 4294901760
  %3098 = vmatpush1.msra.mxu0 %v3097
  %v3099 = vand.u32 %v63, 4294901760
  %v3100 = vsub.f32 %v63, %v3099
  %v3101 = vand.u32 %v3100, 4294901760
  %v3102 = vsub.f32 %v3100, %v3101
  %v3103 = vand.u32 %v3102, 4294901760
  %3104 = vmatprep.subr.mxu0 %v3103
  %v3105 = vand.u32 %v62, 4294901760
  %v3106 = vsub.f32 %v62, %v3105
  %v3107 = vand.u32 %v3106, 4294901760
  %v3108 = vsub.f32 %v3106, %v3107
  %v3109 = vand.u32 %v3108, 4294901760
  %3110 = vmatpush1.msra.mxu0 %v3109
  %v3111 = vand.u32 %v61, 4294901760
  %v3112 = vsub.f32 %v61, %v3111
  %v3113 = vand.u32 %v3112, 4294901760
  %v3114 = vsub.f32 %v3112, %v3113
  %v3115 = vand.u32 %v3114, 4294901760
  %3116 = vmatprep.subr.mxu0 %v3115
  %v3117 = vand.u32 %v60, 4294901760
  %v3118 = vsub.f32 %v60, %v3117
  %v3119 = vand.u32 %v3118, 4294901760
  %v3120 = vsub.f32 %v3118, %v3119
  %v3121 = vand.u32 %v3120, 4294901760
  %3122 = vmatpush1.msra.mxu0 %v3121
  %v3123 = vand.u32 %v59, 4294901760
  %v3124 = vsub.f32 %v59, %v3123
  %v3125 = vand.u32 %v3124, 4294901760
  %v3126 = vsub.f32 %v3124, %v3125
  %v3127 = vand.u32 %v3126, 4294901760
  %3128 = vmatprep.subr.mxu0 %v3127
  %v3129 = vand.u32 %v58, 4294901760
  %v3130 = vsub.f32 %v58, %v3129
  %v3131 = vand.u32 %v3130, 4294901760
  %v3132 = vsub.f32 %v3130, %v3131
  %v3133 = vand.u32 %v3132, 4294901760
  %3134 = vmatpush1.msra.mxu0 %v3133
  %v3135 = vand.u32 %v57, 4294901760
  %v3136 = vsub.f32 %v57, %v3135
  %v3137 = vand.u32 %v3136, 4294901760
  %v3138 = vsub.f32 %v3136, %v3137
  %v3139 = vand.u32 %v3138, 4294901760
  %3140 = vmatprep.subr.mxu0 %v3139
  %v3141 = vand.u32 %v56, 4294901760
  %v3142 = vsub.f32 %v56, %v3141
  %v3143 = vand.u32 %v3142, 4294901760
  %v3144 = vsub.f32 %v3142, %v3143
  %v3145 = vand.u32 %v3144, 4294901760
  %3146 = vmatpush1.msra.mxu0 %v3145
  %v3147 = vand.u32 %v55, 4294901760
  %v3148 = vsub.f32 %v55, %v3147
  %v3149 = vand.u32 %v3148, 4294901760
  %v3150 = vsub.f32 %v3148, %v3149
  %v3151 = vand.u32 %v3150, 4294901760
  %3152 = vmatprep.subr.mxu0 %v3151
  %v3153 = vand.u32 %v54, 4294901760
  %v3154 = vsub.f32 %v54, %v3153
  %v3155 = vand.u32 %v3154, 4294901760
  %v3156 = vsub.f32 %v3154, %v3155
  %v3157 = vand.u32 %v3156, 4294901760
  %3158 = vmatpush1.msra.mxu0 %v3157
  %v3159 = vand.u32 %v53, 4294901760
  %v3160 = vsub.f32 %v53, %v3159
  %v3161 = vand.u32 %v3160, 4294901760
  %v3162 = vsub.f32 %v3160, %v3161
  %v3163 = vand.u32 %v3162, 4294901760
  %3164 = vmatprep.subr.mxu0 %v3163
  %v3165 = vand.u32 %v52, 4294901760
  %v3166 = vsub.f32 %v52, %v3165
  %v3167 = vand.u32 %v3166, 4294901760
  %v3168 = vsub.f32 %v3166, %v3167
  %v3169 = vand.u32 %v3168, 4294901760
  %3170 = vmatpush1.msra.mxu0 %v3169
  %v3171 = vand.u32 %v51, 4294901760
  %v3172 = vsub.f32 %v51, %v3171
  %v3173 = vand.u32 %v3172, 4294901760
  %v3174 = vsub.f32 %v3172, %v3173
  %v3175 = vand.u32 %v3174, 4294901760
  %3176 = vmatprep.subr.mxu0 %v3175
  %v3177 = vand.u32 %v50, 4294901760
  %v3178 = vsub.f32 %v50, %v3177
  %v3179 = vand.u32 %v3178, 4294901760
  %v3180 = vsub.f32 %v3178, %v3179
  %v3181 = vand.u32 %v3180, 4294901760
  %3182 = vmatpush1.msra.mxu0 %v3181
  %v3183 = vand.u32 %v49, 4294901760
  %v3184 = vsub.f32 %v49, %v3183
  %v3185 = vand.u32 %v3184, 4294901760
  %v3186 = vsub.f32 %v3184, %v3185
  %v3187 = vand.u32 %v3186, 4294901760
  %3188 = vmatprep.subr.mxu0 %v3187
  %v3189 = vand.u32 %v48, 4294901760
  %v3190 = vsub.f32 %v48, %v3189
  %v3191 = vand.u32 %v3190, 4294901760
  %v3192 = vsub.f32 %v3190, %v3191
  %v3193 = vand.u32 %v3192, 4294901760
  %3194 = vmatpush1.msra.mxu0 %v3193
  %3195 = vmatprep.subr.mxu0 0.0
  %3196 = vmatpush2.msra.mxu0 0.0
  %3197 = vmatprep.subr.mxu0 0.0
  %3198 = vmatpush2.msra.mxu0 0.0
  %3199 = vmatprep.subr.mxu0 0.0
  %3200 = vmatpush2.msra.mxu0 0.0
  %3201 = vmatprep.subr.mxu0 0.0
  %3202 = vmatpush2.msra.mxu0 0.0
  %3203 = vmatprep.subr.mxu0 0.0
  %3204 = vmatpush2.msra.mxu0 0.0
  %3205 = vmatprep.subr.mxu0 0.0
  %3206 = vmatpush2.msra.mxu0 0.0
  %3207 = vmatprep.subr.mxu0 0.0
  %3208 = vmatpush2.msra.mxu0 0.0
  %3209 = vmatprep.subr.mxu0 0.0
  %3210 = vmatpush2.msra.mxu0 0.0
  %3211 = vmatprep.subr.mxu0 0.0
  %3212 = vmatpush2.msra.mxu0 0.0
  %3213 = vmatprep.subr.mxu0 0.0
  %3214 = vmatpush2.msra.mxu0 0.0
  %3215 = vmatprep.subr.mxu0 0.0
  %3216 = vmatpush2.msra.mxu0 0.0
  %3217 = vmatprep.subr.mxu0 0.0
  %3218 = vmatpush2.msra.mxu0 0.0
  %3219 = vmatprep.subr.mxu0 0.0
  %3220 = vmatpush2.msra.mxu0 0.0
  %3221 = vmatprep.subr.mxu0 0.0
  %3222 = vmatpush2.msra.mxu0 0.0
  %3223 = vmatprep.subr.mxu0 0.0
  %3224 = vmatpush2.msra.mxu0 0.0
  %3225 = vmatprep.subr.mxu0 0.0
  %3226 = vmatpush2.msra.mxu0 0.0
  %3227 = vmatprep.mubr.f32.mxu0 0.0
  %v3228 = vand.u32 %v2879, 4294901760
  %3229 = vmatmul.mubr.f32.gmra.mxu0 %v3228
  %v3230 = vpop.f32.mrf.mxu0
  %v3231 = vadd.f32 %v2988, %v3230
  %v3232 = vpop.f32.mrf.mxu0
  %v3233 = vadd.f32 %v2990, %v3232
  %3234 = vmatprep.mubr.f32.mxu0 0.0
  %v3235 = vand.u32 %v2881, 4294901760
  %3236 = vmatmul.mubr.f32.gmra.mxu0 %v3235
  %v3237 = vpop.f32.mrf.mxu0
  %v3238 = vadd.f32 %v2999, %v3237
  %v3239 = vpop.f32.mrf.mxu0
  %v3240 = vadd.f32 %v3001, %v3239
  %3241 = vdwg.mxu0
  %v3242 = vand.u32 %v79, 4294901760
  %v3243 = vsub.f32 %v79, %v3242
  %3244 = vmatprep.subr.mxu0 %v3243
  %v3245 = vand.u32 %v78, 4294901760
  %v3246 = vsub.f32 %v78, %v3245
  %3247 = vmatpush1.msra.mxu0 %v3246
  %v3248 = vand.u32 %v77, 4294901760
  %v3249 = vsub.f32 %v77, %v3248
  %3250 = vmatprep.subr.mxu0 %v3249
  %v3251 = vand.u32 %v76, 4294901760
  %v3252 = vsub.f32 %v76, %v3251
  %3253 = vmatpush1.msra.mxu0 %v3252
  %v3254 = vand.u32 %v75, 4294901760
  %v3255 = vsub.f32 %v75, %v3254
  %3256 = vmatprep.subr.mxu0 %v3255
  %v3257 = vand.u32 %v74, 4294901760
  %v3258 = vsub.f32 %v74, %v3257
  %3259 = vmatpush1.msra.mxu0 %v3258
  %v3260 = vand.u32 %v73, 4294901760
  %v3261 = vsub.f32 %v73, %v3260
  %3262 = vmatprep.subr.mxu0 %v3261
  %v3263 = vand.u32 %v72, 4294901760
  %v3264 = vsub.f32 %v72, %v3263
  %3265 = vmatpush1.msra.mxu0 %v3264
  %v3266 = vand.u32 %v71, 4294901760
  %v3267 = vsub.f32 %v71, %v3266
  %3268 = vmatprep.subr.mxu0 %v3267
  %v3269 = vand.u32 %v70, 4294901760
  %v3270 = vsub.f32 %v70, %v3269
  %3271 = vmatpush1.msra.mxu0 %v3270
  %v3272 = vand.u32 %v69, 4294901760
  %v3273 = vsub.f32 %v69, %v3272
  %3274 = vmatprep.subr.mxu0 %v3273
  %v3275 = vand.u32 %v68, 4294901760
  %v3276 = vsub.f32 %v68, %v3275
  %3277 = vmatpush1.msra.mxu0 %v3276
  %v3278 = vand.u32 %v67, 4294901760
  %v3279 = vsub.f32 %v67, %v3278
  %3280 = vmatprep.subr.mxu0 %v3279
  %v3281 = vand.u32 %v66, 4294901760
  %v3282 = vsub.f32 %v66, %v3281
  %3283 = vmatpush1.msra.mxu0 %v3282
  %v3284 = vand.u32 %v65, 4294901760
  %v3285 = vsub.f32 %v65, %v3284
  %3286 = vmatprep.subr.mxu0 %v3285
  %v3287 = vand.u32 %v64, 4294901760
  %v3288 = vsub.f32 %v64, %v3287
  %3289 = vmatpush1.msra.mxu0 %v3288
  %v3290 = vand.u32 %v63, 4294901760
  %v3291 = vsub.f32 %v63, %v3290
  %3292 = vmatprep.subr.mxu0 %v3291
  %v3293 = vand.u32 %v62, 4294901760
  %v3294 = vsub.f32 %v62, %v3293
  %3295 = vmatpush1.msra.mxu0 %v3294
  %v3296 = vand.u32 %v61, 4294901760
  %v3297 = vsub.f32 %v61, %v3296
  %3298 = vmatprep.subr.mxu0 %v3297
  %v3299 = vand.u32 %v60, 4294901760
  %v3300 = vsub.f32 %v60, %v3299
  %3301 = vmatpush1.msra.mxu0 %v3300
  %v3302 = vand.u32 %v59, 4294901760
  %v3303 = vsub.f32 %v59, %v3302
  %3304 = vmatprep.subr.mxu0 %v3303
  %v3305 = vand.u32 %v58, 4294901760
  %v3306 = vsub.f32 %v58, %v3305
  %3307 = vmatpush1.msra.mxu0 %v3306
  %v3308 = vand.u32 %v57, 4294901760
  %v3309 = vsub.f32 %v57, %v3308
  %3310 = vmatprep.subr.mxu0 %v3309
  %v3311 = vand.u32 %v56, 4294901760
  %v3312 = vsub.f32 %v56, %v3311
  %3313 = vmatpush1.msra.mxu0 %v3312
  %v3314 = vand.u32 %v55, 4294901760
  %v3315 = vsub.f32 %v55, %v3314
  %3316 = vmatprep.subr.mxu0 %v3315
  %v3317 = vand.u32 %v54, 4294901760
  %v3318 = vsub.f32 %v54, %v3317
  %3319 = vmatpush1.msra.mxu0 %v3318
  %v3320 = vand.u32 %v53, 4294901760
  %v3321 = vsub.f32 %v53, %v3320
  %3322 = vmatprep.subr.mxu0 %v3321
  %v3323 = vand.u32 %v52, 4294901760
  %v3324 = vsub.f32 %v52, %v3323
  %3325 = vmatpush1.msra.mxu0 %v3324
  %v3326 = vand.u32 %v51, 4294901760
  %v3327 = vsub.f32 %v51, %v3326
  %3328 = vmatprep.subr.mxu0 %v3327
  %v3329 = vand.u32 %v50, 4294901760
  %v3330 = vsub.f32 %v50, %v3329
  %3331 = vmatpush1.msra.mxu0 %v3330
  %v3332 = vand.u32 %v49, 4294901760
  %v3333 = vsub.f32 %v49, %v3332
  %3334 = vmatprep.subr.mxu0 %v3333
  %v3335 = vand.u32 %v48, 4294901760
  %v3336 = vsub.f32 %v48, %v3335
  %3337 = vmatpush1.msra.mxu0 %v3336
  %3338 = vmatprep.subr.mxu0 0.0
  %3339 = vmatpush2.msra.mxu0 0.0
  %3340 = vmatprep.subr.mxu0 0.0
  %3341 = vmatpush2.msra.mxu0 0.0
  %3342 = vmatprep.subr.mxu0 0.0
  %3343 = vmatpush2.msra.mxu0 0.0
  %3344 = vmatprep.subr.mxu0 0.0
  %3345 = vmatpush2.msra.mxu0 0.0
  %3346 = vmatprep.subr.mxu0 0.0
  %3347 = vmatpush2.msra.mxu0 0.0
  %3348 = vmatprep.subr.mxu0 0.0
  %3349 = vmatpush2.msra.mxu0 0.0
  %3350 = vmatprep.subr.mxu0 0.0
  %3351 = vmatpush2.msra.mxu0 0.0
  %3352 = vmatprep.subr.mxu0 0.0
  %3353 = vmatpush2.msra.mxu0 0.0
  %3354 = vmatprep.subr.mxu0 0.0
  %3355 = vmatpush2.msra.mxu0 0.0
  %3356 = vmatprep.subr.mxu0 0.0
  %3357 = vmatpush2.msra.mxu0 0.0
  %3358 = vmatprep.subr.mxu0 0.0
  %3359 = vmatpush2.msra.mxu0 0.0
  %3360 = vmatprep.subr.mxu0 0.0
  %3361 = vmatpush2.msra.mxu0 0.0
  %3362 = vmatprep.subr.mxu0 0.0
  %3363 = vmatpush2.msra.mxu0 0.0
  %3364 = vmatprep.subr.mxu0 0.0
  %3365 = vmatpush2.msra.mxu0 0.0
  %3366 = vmatprep.subr.mxu0 0.0
  %3367 = vmatpush2.msra.mxu0 0.0
  %3368 = vmatprep.subr.mxu0 0.0
  %3369 = vmatpush2.msra.mxu0 0.0
  %3370 = vmatprep.mubr.f32.mxu0 0.0
  %v3371 = vand.u32 %v2879, 4294901760
  %v3372 = vsub.f32 %v2879, %v3371
  %3373 = vmatmul.mubr.f32.gmra.mxu0 %v3372
  %v3374 = vpop.f32.mrf.mxu0
  %v3375 = vadd.f32 %v3231, %v3374
  %v3376 = vpop.f32.mrf.mxu0
  %v3377 = vadd.f32 %v3233, %v3376
  %3378 = vmatprep.mubr.f32.mxu0 0.0
  %v3379 = vand.u32 %v2881, 4294901760
  %v3380 = vsub.f32 %v2881, %v3379
  %3381 = vmatmul.mubr.f32.gmra.mxu0 %v3380
  %v3382 = vpop.f32.mrf.mxu0
  %v3383 = vadd.f32 %v3238, %v3382
  %v3384 = vpop.f32.mrf.mxu0
  %v3385 = vadd.f32 %v3240, %v3384
  %3386 = vdwg.mxu0
  %v3387 = vand.u32 %v79, 4294901760
  %3388 = vmatprep.subr.mxu0 %v3387
  %v3389 = vand.u32 %v78, 4294901760
  %3390 = vmatpush1.msra.mxu0 %v3389
  %v3391 = vand.u32 %v77, 4294901760
  %3392 = vmatprep.subr.mxu0 %v3391
  %v3393 = vand.u32 %v76, 4294901760
  %3394 = vmatpush1.msra.mxu0 %v3393
  %v3395 = vand.u32 %v75, 4294901760
  %3396 = vmatprep.subr.mxu0 %v3395
  %v3397 = vand.u32 %v74, 4294901760
  %3398 = vmatpush1.msra.mxu0 %v3397
  %v3399 = vand.u32 %v73, 4294901760
  %3400 = vmatprep.subr.mxu0 %v3399
  %v3401 = vand.u32 %v72, 4294901760
  %3402 = vmatpush1.msra.mxu0 %v3401
  %v3403 = vand.u32 %v71, 4294901760
  %3404 = vmatprep.subr.mxu0 %v3403
  %v3405 = vand.u32 %v70, 4294901760
  %3406 = vmatpush1.msra.mxu0 %v3405
  %v3407 = vand.u32 %v69, 4294901760
  %3408 = vmatprep.subr.mxu0 %v3407
  %v3409 = vand.u32 %v68, 4294901760
  %3410 = vmatpush1.msra.mxu0 %v3409
  %v3411 = vand.u32 %v67, 4294901760
  %3412 = vmatprep.subr.mxu0 %v3411
  %v3413 = vand.u32 %v66, 4294901760
  %3414 = vmatpush1.msra.mxu0 %v3413
  %v3415 = vand.u32 %v65, 4294901760
  %3416 = vmatprep.subr.mxu0 %v3415
  %v3417 = vand.u32 %v64, 4294901760
  %3418 = vmatpush1.msra.mxu0 %v3417
  %v3419 = vand.u32 %v63, 4294901760
  %3420 = vmatprep.subr.mxu0 %v3419
  %v3421 = vand.u32 %v62, 4294901760
  %3422 = vmatpush1.msra.mxu0 %v3421
  %v3423 = vand.u32 %v61, 4294901760
  %3424 = vmatprep.subr.mxu0 %v3423
  %v3425 = vand.u32 %v60, 4294901760
  %3426 = vmatpush1.msra.mxu0 %v3425
  %v3427 = vand.u32 %v59, 4294901760
  %3428 = vmatprep.subr.mxu0 %v3427
  %v3429 = vand.u32 %v58, 4294901760
  %3430 = vmatpush1.msra.mxu0 %v3429
  %v3431 = vand.u32 %v57, 4294901760
  %3432 = vmatprep.subr.mxu0 %v3431
  %v3433 = vand.u32 %v56, 4294901760
  %3434 = vmatpush1.msra.mxu0 %v3433
  %v3435 = vand.u32 %v55, 4294901760
  %3436 = vmatprep.subr.mxu0 %v3435
  %v3437 = vand.u32 %v54, 4294901760
  %3438 = vmatpush1.msra.mxu0 %v3437
  %v3439 = vand.u32 %v53, 4294901760
  %3440 = vmatprep.subr.mxu0 %v3439
  %v3441 = vand.u32 %v52, 4294901760
  %3442 = vmatpush1.msra.mxu0 %v3441
  %v3443 = vand.u32 %v51, 4294901760
  %3444 = vmatprep.subr.mxu0 %v3443
  %v3445 = vand.u32 %v50, 4294901760
  %3446 = vmatpush1.msra.mxu0 %v3445
  %v3447 = vand.u32 %v49, 4294901760
  %3448 = vmatprep.subr.mxu0 %v3447
  %v3449 = vand.u32 %v48, 4294901760
  %3450 = vmatpush1.msra.mxu0 %v3449
  %3451 = vmatprep.subr.mxu0 0.0
  %3452 = vmatpush2.msra.mxu0 0.0
  %3453 = vmatprep.subr.mxu0 0.0
  %3454 = vmatpush2.msra.mxu0 0.0
  %3455 = vmatprep.subr.mxu0 0.0
  %3456 = vmatpush2.msra.mxu0 0.0
  %3457 = vmatprep.subr.mxu0 0.0
  %3458 = vmatpush2.msra.mxu0 0.0
  %3459 = vmatprep.subr.mxu0 0.0
  %3460 = vmatpush2.msra.mxu0 0.0
  %3461 = vmatprep.subr.mxu0 0.0
  %3462 = vmatpush2.msra.mxu0 0.0
  %3463 = vmatprep.subr.mxu0 0.0
  %3464 = vmatpush2.msra.mxu0 0.0
  %3465 = vmatprep.subr.mxu0 0.0
  %3466 = vmatpush2.msra.mxu0 0.0
  %3467 = vmatprep.subr.mxu0 0.0
  %3468 = vmatpush2.msra.mxu0 0.0
  %3469 = vmatprep.subr.mxu0 0.0
  %3470 = vmatpush2.msra.mxu0 0.0
  %3471 = vmatprep.subr.mxu0 0.0
  %3472 = vmatpush2.msra.mxu0 0.0
  %3473 = vmatprep.subr.mxu0 0.0
  %3474 = vmatpush2.msra.mxu0 0.0
  %3475 = vmatprep.subr.mxu0 0.0
  %3476 = vmatpush2.msra.mxu0 0.0
  %3477 = vmatprep.subr.mxu0 0.0
  %3478 = vmatpush2.msra.mxu0 0.0
  %3479 = vmatprep.subr.mxu0 0.0
  %3480 = vmatpush2.msra.mxu0 0.0
  %3481 = vmatprep.subr.mxu0 0.0
  %3482 = vmatpush2.msra.mxu0 0.0
  %3483 = vmatprep.mubr.f32.mxu0 0.0
  %v3484 = vand.u32 %v2879, 4294901760
  %v3485 = vsub.f32 %v2879, %v3484
  %v3486 = vand.u32 %v3485, 4294901760
  %3487 = vmatmul.mubr.f32.gmra.mxu0 %v3486
  %v3488 = vpop.f32.mrf.mxu0
  %v3489 = vadd.f32 %v3375, %v3488
  %v3490 = vpop.f32.mrf.mxu0
  %v3491 = vadd.f32 %v3377, %v3490
  %3492 = vmatprep.mubr.f32.mxu0 0.0
  %v3493 = vand.u32 %v2881, 4294901760
  %v3494 = vsub.f32 %v2881, %v3493
  %v3495 = vand.u32 %v3494, 4294901760
  %3496 = vmatmul.mubr.f32.gmra.mxu0 %v3495
  %v3497 = vpop.f32.mrf.mxu0
  %v3498 = vadd.f32 %v3383, %v3497
  %v3499 = vpop.f32.mrf.mxu0
  %v3500 = vadd.f32 %v3385, %v3499
  %3501 = vdwg.mxu0
  %v3502 = vand.u32 %v79, 4294901760
  %v3503 = vsub.f32 %v79, %v3502
  %v3504 = vand.u32 %v3503, 4294901760
  %3505 = vmatprep.subr.mxu0 %v3504
  %v3506 = vand.u32 %v78, 4294901760
  %v3507 = vsub.f32 %v78, %v3506
  %v3508 = vand.u32 %v3507, 4294901760
  %3509 = vmatpush1.msra.mxu0 %v3508
  %v3510 = vand.u32 %v77, 4294901760
  %v3511 = vsub.f32 %v77, %v3510
  %v3512 = vand.u32 %v3511, 4294901760
  %3513 = vmatprep.subr.mxu0 %v3512
  %v3514 = vand.u32 %v76, 4294901760
  %v3515 = vsub.f32 %v76, %v3514
  %v3516 = vand.u32 %v3515, 4294901760
  %3517 = vmatpush1.msra.mxu0 %v3516
  %v3518 = vand.u32 %v75, 4294901760
  %v3519 = vsub.f32 %v75, %v3518
  %v3520 = vand.u32 %v3519, 4294901760
  %3521 = vmatprep.subr.mxu0 %v3520
  %v3522 = vand.u32 %v74, 4294901760
  %v3523 = vsub.f32 %v74, %v3522
  %v3524 = vand.u32 %v3523, 4294901760
  %3525 = vmatpush1.msra.mxu0 %v3524
  %v3526 = vand.u32 %v73, 4294901760
  %v3527 = vsub.f32 %v73, %v3526
  %v3528 = vand.u32 %v3527, 4294901760
  %3529 = vmatprep.subr.mxu0 %v3528
  %v3530 = vand.u32 %v72, 4294901760
  %v3531 = vsub.f32 %v72, %v3530
  %v3532 = vand.u32 %v3531, 4294901760
  %3533 = vmatpush1.msra.mxu0 %v3532
  %v3534 = vand.u32 %v71, 4294901760
  %v3535 = vsub.f32 %v71, %v3534
  %v3536 = vand.u32 %v3535, 4294901760
  %3537 = vmatprep.subr.mxu0 %v3536
  %v3538 = vand.u32 %v70, 4294901760
  %v3539 = vsub.f32 %v70, %v3538
  %v3540 = vand.u32 %v3539, 4294901760
  %3541 = vmatpush1.msra.mxu0 %v3540
  %v3542 = vand.u32 %v69, 4294901760
  %v3543 = vsub.f32 %v69, %v3542
  %v3544 = vand.u32 %v3543, 4294901760
  %3545 = vmatprep.subr.mxu0 %v3544
  %v3546 = vand.u32 %v68, 4294901760
  %v3547 = vsub.f32 %v68, %v3546
  %v3548 = vand.u32 %v3547, 4294901760
  %3549 = vmatpush1.msra.mxu0 %v3548
  %v3550 = vand.u32 %v67, 4294901760
  %v3551 = vsub.f32 %v67, %v3550
  %v3552 = vand.u32 %v3551, 4294901760
  %3553 = vmatprep.subr.mxu0 %v3552
  %v3554 = vand.u32 %v66, 4294901760
  %v3555 = vsub.f32 %v66, %v3554
  %v3556 = vand.u32 %v3555, 4294901760
  %3557 = vmatpush1.msra.mxu0 %v3556
  %v3558 = vand.u32 %v65, 4294901760
  %v3559 = vsub.f32 %v65, %v3558
  %v3560 = vand.u32 %v3559, 4294901760
  %3561 = vmatprep.subr.mxu0 %v3560
  %v3562 = vand.u32 %v64, 4294901760
  %v3563 = vsub.f32 %v64, %v3562
  %v3564 = vand.u32 %v3563, 4294901760
  %3565 = vmatpush1.msra.mxu0 %v3564
  %v3566 = vand.u32 %v63, 4294901760
  %v3567 = vsub.f32 %v63, %v3566
  %v3568 = vand.u32 %v3567, 4294901760
  %3569 = vmatprep.subr.mxu0 %v3568
  %v3570 = vand.u32 %v62, 4294901760
  %v3571 = vsub.f32 %v62, %v3570
  %v3572 = vand.u32 %v3571, 4294901760
  %3573 = vmatpush1.msra.mxu0 %v3572
  %v3574 = vand.u32 %v61, 4294901760
  %v3575 = vsub.f32 %v61, %v3574
  %v3576 = vand.u32 %v3575, 4294901760
  %3577 = vmatprep.subr.mxu0 %v3576
  %v3578 = vand.u32 %v60, 4294901760
  %v3579 = vsub.f32 %v60, %v3578
  %v3580 = vand.u32 %v3579, 4294901760
  %3581 = vmatpush1.msra.mxu0 %v3580
  %v3582 = vand.u32 %v59, 4294901760
  %v3583 = vsub.f32 %v59, %v3582
  %v3584 = vand.u32 %v3583, 4294901760
  %3585 = vmatprep.subr.mxu0 %v3584
  %v3586 = vand.u32 %v58, 4294901760
  %v3587 = vsub.f32 %v58, %v3586
  %v3588 = vand.u32 %v3587, 4294901760
  %3589 = vmatpush1.msra.mxu0 %v3588
  %v3590 = vand.u32 %v57, 4294901760
  %v3591 = vsub.f32 %v57, %v3590
  %v3592 = vand.u32 %v3591, 4294901760
  %3593 = vmatprep.subr.mxu0 %v3592
  %v3594 = vand.u32 %v56, 4294901760
  %v3595 = vsub.f32 %v56, %v3594
  %v3596 = vand.u32 %v3595, 4294901760
  %3597 = vmatpush1.msra.mxu0 %v3596
  %v3598 = vand.u32 %v55, 4294901760
  %v3599 = vsub.f32 %v55, %v3598
  %v3600 = vand.u32 %v3599, 4294901760
  %3601 = vmatprep.subr.mxu0 %v3600
  %v3602 = vand.u32 %v54, 4294901760
  %v3603 = vsub.f32 %v54, %v3602
  %v3604 = vand.u32 %v3603, 4294901760
  %3605 = vmatpush1.msra.mxu0 %v3604
  %v3606 = vand.u32 %v53, 4294901760
  %v3607 = vsub.f32 %v53, %v3606
  %v3608 = vand.u32 %v3607, 4294901760
  %3609 = vmatprep.subr.mxu0 %v3608
  %v3610 = vand.u32 %v52, 4294901760
  %v3611 = vsub.f32 %v52, %v3610
  %v3612 = vand.u32 %v3611, 4294901760
  %3613 = vmatpush1.msra.mxu0 %v3612
  %v3614 = vand.u32 %v51, 4294901760
  %v3615 = vsub.f32 %v51, %v3614
  %v3616 = vand.u32 %v3615, 4294901760
  %3617 = vmatprep.subr.mxu0 %v3616
  %v3618 = vand.u32 %v50, 4294901760
  %v3619 = vsub.f32 %v50, %v3618
  %v3620 = vand.u32 %v3619, 4294901760
  %3621 = vmatpush1.msra.mxu0 %v3620
  %v3622 = vand.u32 %v49, 4294901760
  %v3623 = vsub.f32 %v49, %v3622
  %v3624 = vand.u32 %v3623, 4294901760
  %3625 = vmatprep.subr.mxu0 %v3624
  %v3626 = vand.u32 %v48, 4294901760
  %v3627 = vsub.f32 %v48, %v3626
  %v3628 = vand.u32 %v3627, 4294901760
  %3629 = vmatpush1.msra.mxu0 %v3628
  %3630 = vmatprep.subr.mxu0 0.0
  %3631 = vmatpush2.msra.mxu0 0.0
  %3632 = vmatprep.subr.mxu0 0.0
  %3633 = vmatpush2.msra.mxu0 0.0
  %3634 = vmatprep.subr.mxu0 0.0
  %3635 = vmatpush2.msra.mxu0 0.0
  %3636 = vmatprep.subr.mxu0 0.0
  %3637 = vmatpush2.msra.mxu0 0.0
  %3638 = vmatprep.subr.mxu0 0.0
  %3639 = vmatpush2.msra.mxu0 0.0
  %3640 = vmatprep.subr.mxu0 0.0
  %3641 = vmatpush2.msra.mxu0 0.0
  %3642 = vmatprep.subr.mxu0 0.0
  %3643 = vmatpush2.msra.mxu0 0.0
  %3644 = vmatprep.subr.mxu0 0.0
  %3645 = vmatpush2.msra.mxu0 0.0
  %3646 = vmatprep.subr.mxu0 0.0
  %3647 = vmatpush2.msra.mxu0 0.0
  %3648 = vmatprep.subr.mxu0 0.0
  %3649 = vmatpush2.msra.mxu0 0.0
  %3650 = vmatprep.subr.mxu0 0.0
  %3651 = vmatpush2.msra.mxu0 0.0
  %3652 = vmatprep.subr.mxu0 0.0
  %3653 = vmatpush2.msra.mxu0 0.0
  %3654 = vmatprep.subr.mxu0 0.0
  %3655 = vmatpush2.msra.mxu0 0.0
  %3656 = vmatprep.subr.mxu0 0.0
  %3657 = vmatpush2.msra.mxu0 0.0
  %3658 = vmatprep.subr.mxu0 0.0
  %3659 = vmatpush2.msra.mxu0 0.0
  %3660 = vmatprep.subr.mxu0 0.0
  %3661 = vmatpush2.msra.mxu0 0.0
  %3662 = vmatprep.mubr.f32.mxu0 0.0
  %v3663 = vand.u32 %v2879, 4294901760
  %3664 = vmatmul.mubr.f32.gmra.mxu0 %v3663
  %v3665 = vpop.f32.mrf.mxu0
  %v3666 = vadd.f32 %v3489, %v3665
  %v3667 = vpop.f32.mrf.mxu0
  %v3668 = vadd.f32 %v3491, %v3667
  %3669 = vmatprep.mubr.f32.mxu0 0.0
  %v3670 = vand.u32 %v2881, 4294901760
  %3671 = vmatmul.mubr.f32.gmra.mxu0 %v3670
  %v3672 = vpop.f32.mrf.mxu0
  %v3673 = vadd.f32 %v3498, %v3672
  %v3674 = vpop.f32.mrf.mxu0
  %v3675 = vadd.f32 %v3500, %v3674
  %3676 = vdwg.mxu0
  %v3677 = vand.u32 %v79, 4294901760
  %3678 = vmatprep.subr.mxu0 %v3677
  %v3679 = vand.u32 %v78, 4294901760
  %3680 = vmatpush1.msra.mxu0 %v3679
  %v3681 = vand.u32 %v77, 4294901760
  %3682 = vmatprep.subr.mxu0 %v3681
  %v3683 = vand.u32 %v76, 4294901760
  %3684 = vmatpush1.msra.mxu0 %v3683
  %v3685 = vand.u32 %v75, 4294901760
  %3686 = vmatprep.subr.mxu0 %v3685
  %v3687 = vand.u32 %v74, 4294901760
  %3688 = vmatpush1.msra.mxu0 %v3687
  %v3689 = vand.u32 %v73, 4294901760
  %3690 = vmatprep.subr.mxu0 %v3689
  %v3691 = vand.u32 %v72, 4294901760
  %3692 = vmatpush1.msra.mxu0 %v3691
  %v3693 = vand.u32 %v71, 4294901760
  %3694 = vmatprep.subr.mxu0 %v3693
  %v3695 = vand.u32 %v70, 4294901760
  %3696 = vmatpush1.msra.mxu0 %v3695
  %v3697 = vand.u32 %v69, 4294901760
  %3698 = vmatprep.subr.mxu0 %v3697
  %v3699 = vand.u32 %v68, 4294901760
  %3700 = vmatpush1.msra.mxu0 %v3699
  %v3701 = vand.u32 %v67, 4294901760
  %3702 = vmatprep.subr.mxu0 %v3701
  %v3703 = vand.u32 %v66, 4294901760
  %3704 = vmatpush1.msra.mxu0 %v3703
  %v3705 = vand.u32 %v65, 4294901760
  %3706 = vmatprep.subr.mxu0 %v3705
  %v3707 = vand.u32 %v64, 4294901760
  %3708 = vmatpush1.msra.mxu0 %v3707
  %v3709 = vand.u32 %v63, 4294901760
  %3710 = vmatprep.subr.mxu0 %v3709
  %v3711 = vand.u32 %v62, 4294901760
  %3712 = vmatpush1.msra.mxu0 %v3711
  %v3713 = vand.u32 %v61, 4294901760
  %3714 = vmatprep.subr.mxu0 %v3713
  %v3715 = vand.u32 %v60, 4294901760
  %3716 = vmatpush1.msra.mxu0 %v3715
  %v3717 = vand.u32 %v59, 4294901760
  %3718 = vmatprep.subr.mxu0 %v3717
  %v3719 = vand.u32 %v58, 4294901760
  %3720 = vmatpush1.msra.mxu0 %v3719
  %v3721 = vand.u32 %v57, 4294901760
  %3722 = vmatprep.subr.mxu0 %v3721
  %v3723 = vand.u32 %v56, 4294901760
  %3724 = vmatpush1.msra.mxu0 %v3723
  %v3725 = vand.u32 %v55, 4294901760
  %3726 = vmatprep.subr.mxu0 %v3725
  %v3727 = vand.u32 %v54, 4294901760
  %3728 = vmatpush1.msra.mxu0 %v3727
  %v3729 = vand.u32 %v53, 4294901760
  %3730 = vmatprep.subr.mxu0 %v3729
  %v3731 = vand.u32 %v52, 4294901760
  %3732 = vmatpush1.msra.mxu0 %v3731
  %v3733 = vand.u32 %v51, 4294901760
  %3734 = vmatprep.subr.mxu0 %v3733
  %v3735 = vand.u32 %v50, 4294901760
  %3736 = vmatpush1.msra.mxu0 %v3735
  %v3737 = vand.u32 %v49, 4294901760
  %3738 = vmatprep.subr.mxu0 %v3737
  %v3739 = vand.u32 %v48, 4294901760
  %3740 = vmatpush1.msra.mxu0 %v3739
  %3741 = vmatprep.subr.mxu0 0.0
  %3742 = vmatpush2.msra.mxu0 0.0
  %3743 = vmatprep.subr.mxu0 0.0
  %3744 = vmatpush2.msra.mxu0 0.0
  %3745 = vmatprep.subr.mxu0 0.0
  %3746 = vmatpush2.msra.mxu0 0.0
  %3747 = vmatprep.subr.mxu0 0.0
  %3748 = vmatpush2.msra.mxu0 0.0
  %3749 = vmatprep.subr.mxu0 0.0
  %3750 = vmatpush2.msra.mxu0 0.0
  %3751 = vmatprep.subr.mxu0 0.0
  %3752 = vmatpush2.msra.mxu0 0.0
  %3753 = vmatprep.subr.mxu0 0.0
  %3754 = vmatpush2.msra.mxu0 0.0
  %3755 = vmatprep.subr.mxu0 0.0
  %3756 = vmatpush2.msra.mxu0 0.0
  %3757 = vmatprep.subr.mxu0 0.0
  %3758 = vmatpush2.msra.mxu0 0.0
  %3759 = vmatprep.subr.mxu0 0.0
  %3760 = vmatpush2.msra.mxu0 0.0
  %3761 = vmatprep.subr.mxu0 0.0
  %3762 = vmatpush2.msra.mxu0 0.0
  %3763 = vmatprep.subr.mxu0 0.0
  %3764 = vmatpush2.msra.mxu0 0.0
  %3765 = vmatprep.subr.mxu0 0.0
  %3766 = vmatpush2.msra.mxu0 0.0
  %3767 = vmatprep.subr.mxu0 0.0
  %3768 = vmatpush2.msra.mxu0 0.0
  %3769 = vmatprep.subr.mxu0 0.0
  %3770 = vmatpush2.msra.mxu0 0.0
  %3771 = vmatprep.subr.mxu0 0.0
  %3772 = vmatpush2.msra.mxu0 0.0
  %3773 = vmatprep.mubr.f32.mxu0 0.0
  %v3774 = vand.u32 %v2879, 4294901760
  %3775 = vmatmul.mubr.f32.gmra.mxu0 %v3774
  %v3776 = vpop.f32.mrf.mxu0
  %v3777 = vadd.f32 %v3666, %v3776
  %v3778 = vpop.f32.mrf.mxu0
  %v3779 = vadd.f32 %v3668, %v3778
  %3780 = vmatprep.mubr.f32.mxu0 0.0
  %v3781 = vand.u32 %v2881, 4294901760
  %3782 = vmatmul.mubr.f32.gmra.mxu0 %v3781
  %v3783 = vpop.f32.mrf.mxu0
  %v3784 = vadd.f32 %v3673, %v3783
  %v3785 = vpop.f32.mrf.mxu0
  %v3786 = vadd.f32 %v3675, %v3785
  %3787 = vdwg.mxu0
  %v3788 = vand.u32 %v46, 4294901760
  %3789 = vmatprep.subr.mxu0 %v3788
  %v3790 = vand.u32 %v45, 4294901760
  %3791 = vmatpush1.msra.mxu0 %v3790
  %v3792 = vand.u32 %v44, 4294901760
  %3793 = vmatprep.subr.mxu0 %v3792
  %v3794 = vand.u32 %v43, 4294901760
  %3795 = vmatpush1.msra.mxu0 %v3794
  %v3796 = vand.u32 %v42, 4294901760
  %3797 = vmatprep.subr.mxu0 %v3796
  %v3798 = vand.u32 %v41, 4294901760
  %3799 = vmatpush1.msra.mxu0 %v3798
  %v3800 = vand.u32 %v40, 4294901760
  %3801 = vmatprep.subr.mxu0 %v3800
  %v3802 = vand.u32 %v39, 4294901760
  %3803 = vmatpush1.msra.mxu0 %v3802
  %v3804 = vand.u32 %v38, 4294901760
  %3805 = vmatprep.subr.mxu0 %v3804
  %v3806 = vand.u32 %v37, 4294901760
  %3807 = vmatpush1.msra.mxu0 %v3806
  %v3808 = vand.u32 %v36, 4294901760
  %3809 = vmatprep.subr.mxu0 %v3808
  %v3810 = vand.u32 %v35, 4294901760
  %3811 = vmatpush1.msra.mxu0 %v3810
  %v3812 = vand.u32 %v34, 4294901760
  %3813 = vmatprep.subr.mxu0 %v3812
  %v3814 = vand.u32 %v33, 4294901760
  %3815 = vmatpush1.msra.mxu0 %v3814
  %v3816 = vand.u32 %v32, 4294901760
  %3817 = vmatprep.subr.mxu0 %v3816
  %v3818 = vand.u32 %v31, 4294901760
  %3819 = vmatpush1.msra.mxu0 %v3818
  %v3820 = vand.u32 %v30, 4294901760
  %3821 = vmatprep.subr.mxu0 %v3820
  %v3822 = vand.u32 %v29, 4294901760
  %3823 = vmatpush1.msra.mxu0 %v3822
  %v3824 = vand.u32 %v28, 4294901760
  %3825 = vmatprep.subr.mxu0 %v3824
  %v3826 = vand.u32 %v27, 4294901760
  %3827 = vmatpush1.msra.mxu0 %v3826
  %v3828 = vand.u32 %v26, 4294901760
  %3829 = vmatprep.subr.mxu0 %v3828
  %v3830 = vand.u32 %v25, 4294901760
  %3831 = vmatpush1.msra.mxu0 %v3830
  %v3832 = vand.u32 %v24, 4294901760
  %3833 = vmatprep.subr.mxu0 %v3832
  %v3834 = vand.u32 %v23, 4294901760
  %3835 = vmatpush1.msra.mxu0 %v3834
  %v3836 = vand.u32 %v22, 4294901760
  %3837 = vmatprep.subr.mxu0 %v3836
  %v3838 = vand.u32 %v21, 4294901760
  %3839 = vmatpush1.msra.mxu0 %v3838
  %v3840 = vand.u32 %v20, 4294901760
  %3841 = vmatprep.subr.mxu0 %v3840
  %v3842 = vand.u32 %v19, 4294901760
  %3843 = vmatpush1.msra.mxu0 %v3842
  %v3844 = vand.u32 %v18, 4294901760
  %3845 = vmatprep.subr.mxu0 %v3844
  %v3846 = vand.u32 %v17, 4294901760
  %3847 = vmatpush1.msra.mxu0 %v3846
  %v3848 = vand.u32 %v16, 4294901760
  %3849 = vmatprep.subr.mxu0 %v3848
  %v3850 = vand.u32 %v15, 4294901760
  %3851 = vmatpush1.msra.mxu0 %v3850
  %3852 = vmatprep.subr.mxu0 0.0
  %3853 = vmatpush2.msra.mxu0 0.0
  %3854 = vmatprep.subr.mxu0 0.0
  %3855 = vmatpush2.msra.mxu0 0.0
  %3856 = vmatprep.subr.mxu0 0.0
  %3857 = vmatpush2.msra.mxu0 0.0
  %3858 = vmatprep.subr.mxu0 0.0
  %3859 = vmatpush2.msra.mxu0 0.0
  %3860 = vmatprep.subr.mxu0 0.0
  %3861 = vmatpush2.msra.mxu0 0.0
  %3862 = vmatprep.subr.mxu0 0.0
  %3863 = vmatpush2.msra.mxu0 0.0
  %3864 = vmatprep.subr.mxu0 0.0
  %3865 = vmatpush2.msra.mxu0 0.0
  %3866 = vmatprep.subr.mxu0 0.0
  %3867 = vmatpush2.msra.mxu0 0.0
  %3868 = vmatprep.subr.mxu0 0.0
  %3869 = vmatpush2.msra.mxu0 0.0
  %3870 = vmatprep.subr.mxu0 0.0
  %3871 = vmatpush2.msra.mxu0 0.0
  %3872 = vmatprep.subr.mxu0 0.0
  %3873 = vmatpush2.msra.mxu0 0.0
  %3874 = vmatprep.subr.mxu0 0.0
  %3875 = vmatpush2.msra.mxu0 0.0
  %3876 = vmatprep.subr.mxu0 0.0
  %3877 = vmatpush2.msra.mxu0 0.0
  %3878 = vmatprep.subr.mxu0 0.0
  %3879 = vmatpush2.msra.mxu0 0.0
  %3880 = vmatprep.subr.mxu0 0.0
  %3881 = vmatpush2.msra.mxu0 0.0
  %3882 = vmatprep.subr.mxu0 0.0
  %3883 = vmatpush2.msra.mxu0 0.0
  %3884 = vmatprep.mubr.f32.mxu0 0.0
  %v3885 = vand.u32 %v2871, 4294901760
  %v3886 = vsub.f32 %v2871, %v3885
  %v3887 = vand.u32 %v3886, 4294901760
  %v3888 = vsub.f32 %v3886, %v3887
  %v3889 = vand.u32 %v3888, 4294901760
  %3890 = vmatmul.mubr.f32.gmra.mxu0 %v3889
  %v3891 = vpop.f32.mrf.mxu0
  %v3892 = vadd.f32 %v3777, %v3891
  %v3893 = vpop.f32.mrf.mxu0
  %v3894 = vadd.f32 %v3779, %v3893
  %3895 = vmatprep.mubr.f32.mxu0 0.0
  %v3896 = vand.u32 %v2872, 4294901760
  %v3897 = vsub.f32 %v2872, %v3896
  %v3898 = vand.u32 %v3897, 4294901760
  %v3899 = vsub.f32 %v3897, %v3898
  %v3900 = vand.u32 %v3899, 4294901760
  %3901 = vmatmul.mubr.f32.gmra.mxu0 %v3900
  %v3902 = vpop.f32.mrf.mxu0
  %v3903 = vadd.f32 %v3784, %v3902
  %v3904 = vpop.f32.mrf.mxu0
  %v3905 = vadd.f32 %v3786, %v3904
  %3906 = vdwg.mxu0
  %v3907 = vand.u32 %v46, 4294901760
  %v3908 = vsub.f32 %v46, %v3907
  %v3909 = vand.u32 %v3908, 4294901760
  %v3910 = vsub.f32 %v3908, %v3909
  %v3911 = vand.u32 %v3910, 4294901760
  %3912 = vmatprep.subr.mxu0 %v3911
  %v3913 = vand.u32 %v45, 4294901760
  %v3914 = vsub.f32 %v45, %v3913
  %v3915 = vand.u32 %v3914, 4294901760
  %v3916 = vsub.f32 %v3914, %v3915
  %v3917 = vand.u32 %v3916, 4294901760
  %3918 = vmatpush1.msra.mxu0 %v3917
  %v3919 = vand.u32 %v44, 4294901760
  %v3920 = vsub.f32 %v44, %v3919
  %v3921 = vand.u32 %v3920, 4294901760
  %v3922 = vsub.f32 %v3920, %v3921
  %v3923 = vand.u32 %v3922, 4294901760
  %3924 = vmatprep.subr.mxu0 %v3923
  %v3925 = vand.u32 %v43, 4294901760
  %v3926 = vsub.f32 %v43, %v3925
  %v3927 = vand.u32 %v3926, 4294901760
  %v3928 = vsub.f32 %v3926, %v3927
  %v3929 = vand.u32 %v3928, 4294901760
  %3930 = vmatpush1.msra.mxu0 %v3929
  %v3931 = vand.u32 %v42, 4294901760
  %v3932 = vsub.f32 %v42, %v3931
  %v3933 = vand.u32 %v3932, 4294901760
  %v3934 = vsub.f32 %v3932, %v3933
  %v3935 = vand.u32 %v3934, 4294901760
  %3936 = vmatprep.subr.mxu0 %v3935
  %v3937 = vand.u32 %v41, 4294901760
  %v3938 = vsub.f32 %v41, %v3937
  %v3939 = vand.u32 %v3938, 4294901760
  %v3940 = vsub.f32 %v3938, %v3939
  %v3941 = vand.u32 %v3940, 4294901760
  %3942 = vmatpush1.msra.mxu0 %v3941
  %v3943 = vand.u32 %v40, 4294901760
  %v3944 = vsub.f32 %v40, %v3943
  %v3945 = vand.u32 %v3944, 4294901760
  %v3946 = vsub.f32 %v3944, %v3945
  %v3947 = vand.u32 %v3946, 4294901760
  %3948 = vmatprep.subr.mxu0 %v3947
  %v3949 = vand.u32 %v39, 4294901760
  %v3950 = vsub.f32 %v39, %v3949
  %v3951 = vand.u32 %v3950, 4294901760
  %v3952 = vsub.f32 %v3950, %v3951
  %v3953 = vand.u32 %v3952, 4294901760
  %3954 = vmatpush1.msra.mxu0 %v3953
  %v3955 = vand.u32 %v38, 4294901760
  %v3956 = vsub.f32 %v38, %v3955
  %v3957 = vand.u32 %v3956, 4294901760
  %v3958 = vsub.f32 %v3956, %v3957
  %v3959 = vand.u32 %v3958, 4294901760
  %3960 = vmatprep.subr.mxu0 %v3959
  %v3961 = vand.u32 %v37, 4294901760
  %v3962 = vsub.f32 %v37, %v3961
  %v3963 = vand.u32 %v3962, 4294901760
  %v3964 = vsub.f32 %v3962, %v3963
  %v3965 = vand.u32 %v3964, 4294901760
  %3966 = vmatpush1.msra.mxu0 %v3965
  %v3967 = vand.u32 %v36, 4294901760
  %v3968 = vsub.f32 %v36, %v3967
  %v3969 = vand.u32 %v3968, 4294901760
  %v3970 = vsub.f32 %v3968, %v3969
  %v3971 = vand.u32 %v3970, 4294901760
  %3972 = vmatprep.subr.mxu0 %v3971
  %v3973 = vand.u32 %v35, 4294901760
  %v3974 = vsub.f32 %v35, %v3973
  %v3975 = vand.u32 %v3974, 4294901760
  %v3976 = vsub.f32 %v3974, %v3975
  %v3977 = vand.u32 %v3976, 4294901760
  %3978 = vmatpush1.msra.mxu0 %v3977
  %v3979 = vand.u32 %v34, 4294901760
  %v3980 = vsub.f32 %v34, %v3979
  %v3981 = vand.u32 %v3980, 4294901760
  %v3982 = vsub.f32 %v3980, %v3981
  %v3983 = vand.u32 %v3982, 4294901760
  %3984 = vmatprep.subr.mxu0 %v3983
  %v3985 = vand.u32 %v33, 4294901760
  %v3986 = vsub.f32 %v33, %v3985
  %v3987 = vand.u32 %v3986, 4294901760
  %v3988 = vsub.f32 %v3986, %v3987
  %v3989 = vand.u32 %v3988, 4294901760
  %3990 = vmatpush1.msra.mxu0 %v3989
  %v3991 = vand.u32 %v32, 4294901760
  %v3992 = vsub.f32 %v32, %v3991
  %v3993 = vand.u32 %v3992, 4294901760
  %v3994 = vsub.f32 %v3992, %v3993
  %v3995 = vand.u32 %v3994, 4294901760
  %3996 = vmatprep.subr.mxu0 %v3995
  %v3997 = vand.u32 %v31, 4294901760
  %v3998 = vsub.f32 %v31, %v3997
  %v3999 = vand.u32 %v3998, 4294901760
  %v4000 = vsub.f32 %v3998, %v3999
  %v4001 = vand.u32 %v4000, 4294901760
  %4002 = vmatpush1.msra.mxu0 %v4001
  %v4003 = vand.u32 %v30, 4294901760
  %v4004 = vsub.f32 %v30, %v4003
  %v4005 = vand.u32 %v4004, 4294901760
  %v4006 = vsub.f32 %v4004, %v4005
  %v4007 = vand.u32 %v4006, 4294901760
  %4008 = vmatprep.subr.mxu0 %v4007
  %v4009 = vand.u32 %v29, 4294901760
  %v4010 = vsub.f32 %v29, %v4009
  %v4011 = vand.u32 %v4010, 4294901760
  %v4012 = vsub.f32 %v4010, %v4011
  %v4013 = vand.u32 %v4012, 4294901760
  %4014 = vmatpush1.msra.mxu0 %v4013
  %v4015 = vand.u32 %v28, 4294901760
  %v4016 = vsub.f32 %v28, %v4015
  %v4017 = vand.u32 %v4016, 4294901760
  %v4018 = vsub.f32 %v4016, %v4017
  %v4019 = vand.u32 %v4018, 4294901760
  %4020 = vmatprep.subr.mxu0 %v4019
  %v4021 = vand.u32 %v27, 4294901760
  %v4022 = vsub.f32 %v27, %v4021
  %v4023 = vand.u32 %v4022, 4294901760
  %v4024 = vsub.f32 %v4022, %v4023
  %v4025 = vand.u32 %v4024, 4294901760
  %4026 = vmatpush1.msra.mxu0 %v4025
  %v4027 = vand.u32 %v26, 4294901760
  %v4028 = vsub.f32 %v26, %v4027
  %v4029 = vand.u32 %v4028, 4294901760
  %v4030 = vsub.f32 %v4028, %v4029
  %v4031 = vand.u32 %v4030, 4294901760
  %4032 = vmatprep.subr.mxu0 %v4031
  %v4033 = vand.u32 %v25, 4294901760
  %v4034 = vsub.f32 %v25, %v4033
  %v4035 = vand.u32 %v4034, 4294901760
  %v4036 = vsub.f32 %v4034, %v4035
  %v4037 = vand.u32 %v4036, 4294901760
  %4038 = vmatpush1.msra.mxu0 %v4037
  %v4039 = vand.u32 %v24, 4294901760
  %v4040 = vsub.f32 %v24, %v4039
  %v4041 = vand.u32 %v4040, 4294901760
  %v4042 = vsub.f32 %v4040, %v4041
  %v4043 = vand.u32 %v4042, 4294901760
  %4044 = vmatprep.subr.mxu0 %v4043
  %v4045 = vand.u32 %v23, 4294901760
  %v4046 = vsub.f32 %v23, %v4045
  %v4047 = vand.u32 %v4046, 4294901760
  %v4048 = vsub.f32 %v4046, %v4047
  %v4049 = vand.u32 %v4048, 4294901760
  %4050 = vmatpush1.msra.mxu0 %v4049
  %v4051 = vand.u32 %v22, 4294901760
  %v4052 = vsub.f32 %v22, %v4051
  %v4053 = vand.u32 %v4052, 4294901760
  %v4054 = vsub.f32 %v4052, %v4053
  %v4055 = vand.u32 %v4054, 4294901760
  %4056 = vmatprep.subr.mxu0 %v4055
  %v4057 = vand.u32 %v21, 4294901760
  %v4058 = vsub.f32 %v21, %v4057
  %v4059 = vand.u32 %v4058, 4294901760
  %v4060 = vsub.f32 %v4058, %v4059
  %v4061 = vand.u32 %v4060, 4294901760
  %4062 = vmatpush1.msra.mxu0 %v4061
  %v4063 = vand.u32 %v20, 4294901760
  %v4064 = vsub.f32 %v20, %v4063
  %v4065 = vand.u32 %v4064, 4294901760
  %v4066 = vsub.f32 %v4064, %v4065
  %v4067 = vand.u32 %v4066, 4294901760
  %4068 = vmatprep.subr.mxu0 %v4067
  %v4069 = vand.u32 %v19, 4294901760
  %v4070 = vsub.f32 %v19, %v4069
  %v4071 = vand.u32 %v4070, 4294901760
  %v4072 = vsub.f32 %v4070, %v4071
  %v4073 = vand.u32 %v4072, 4294901760
  %4074 = vmatpush1.msra.mxu0 %v4073
  %v4075 = vand.u32 %v18, 4294901760
  %v4076 = vsub.f32 %v18, %v4075
  %v4077 = vand.u32 %v4076, 4294901760
  %v4078 = vsub.f32 %v4076, %v4077
  %v4079 = vand.u32 %v4078, 4294901760
  %4080 = vmatprep.subr.mxu0 %v4079
  %v4081 = vand.u32 %v17, 4294901760
  %v4082 = vsub.f32 %v17, %v4081
  %v4083 = vand.u32 %v4082, 4294901760
  %v4084 = vsub.f32 %v4082, %v4083
  %v4085 = vand.u32 %v4084, 4294901760
  %4086 = vmatpush1.msra.mxu0 %v4085
  %v4087 = vand.u32 %v16, 4294901760
  %v4088 = vsub.f32 %v16, %v4087
  %v4089 = vand.u32 %v4088, 4294901760
  %v4090 = vsub.f32 %v4088, %v4089
  %v4091 = vand.u32 %v4090, 4294901760
  %4092 = vmatprep.subr.mxu0 %v4091
  %v4093 = vand.u32 %v15, 4294901760
  %v4094 = vsub.f32 %v15, %v4093
  %v4095 = vand.u32 %v4094, 4294901760
  %v4096 = vsub.f32 %v4094, %v4095
  %v4097 = vand.u32 %v4096, 4294901760
  %4098 = vmatpush1.msra.mxu0 %v4097
  %4099 = vmatprep.subr.mxu0 0.0
  %4100 = vmatpush2.msra.mxu0 0.0
  %4101 = vmatprep.subr.mxu0 0.0
  %4102 = vmatpush2.msra.mxu0 0.0
  %4103 = vmatprep.subr.mxu0 0.0
  %4104 = vmatpush2.msra.mxu0 0.0
  %4105 = vmatprep.subr.mxu0 0.0
  %4106 = vmatpush2.msra.mxu0 0.0
  %4107 = vmatprep.subr.mxu0 0.0
  %4108 = vmatpush2.msra.mxu0 0.0
  %4109 = vmatprep.subr.mxu0 0.0
  %4110 = vmatpush2.msra.mxu0 0.0
  %4111 = vmatprep.subr.mxu0 0.0
  %4112 = vmatpush2.msra.mxu0 0.0
  %4113 = vmatprep.subr.mxu0 0.0
  %4114 = vmatpush2.msra.mxu0 0.0
  %4115 = vmatprep.subr.mxu0 0.0
  %4116 = vmatpush2.msra.mxu0 0.0
  %4117 = vmatprep.subr.mxu0 0.0
  %4118 = vmatpush2.msra.mxu0 0.0
  %4119 = vmatprep.subr.mxu0 0.0
  %4120 = vmatpush2.msra.mxu0 0.0
  %4121 = vmatprep.subr.mxu0 0.0
  %4122 = vmatpush2.msra.mxu0 0.0
  %4123 = vmatprep.subr.mxu0 0.0
  %4124 = vmatpush2.msra.mxu0 0.0
  %4125 = vmatprep.subr.mxu0 0.0
  %4126 = vmatpush2.msra.mxu0 0.0
  %4127 = vmatprep.subr.mxu0 0.0
  %4128 = vmatpush2.msra.mxu0 0.0
  %4129 = vmatprep.subr.mxu0 0.0
  %4130 = vmatpush2.msra.mxu0 0.0
  %4131 = vmatprep.mubr.f32.mxu0 0.0
  %v4132 = vand.u32 %v2871, 4294901760
  %4133 = vmatmul.mubr.f32.gmra.mxu0 %v4132
  %v4134 = vpop.f32.mrf.mxu0
  %v4135 = vadd.f32 %v3892, %v4134
  %v4136 = vpop.f32.mrf.mxu0
  %v4137 = vadd.f32 %v3894, %v4136
  %4138 = vmatprep.mubr.f32.mxu0 0.0
  %v4139 = vand.u32 %v2872, 4294901760
  %4140 = vmatmul.mubr.f32.gmra.mxu0 %v4139
  %v4141 = vpop.f32.mrf.mxu0
  %v4142 = vadd.f32 %v3903, %v4141
  %v4143 = vpop.f32.mrf.mxu0
  %v4144 = vadd.f32 %v3905, %v4143
  %4145 = vdwg.mxu0
  %v4146 = vand.u32 %v46, 4294901760
  %v4147 = vsub.f32 %v46, %v4146
  %4148 = vmatprep.subr.mxu0 %v4147
  %v4149 = vand.u32 %v45, 4294901760
  %v4150 = vsub.f32 %v45, %v4149
  %4151 = vmatpush1.msra.mxu0 %v4150
  %v4152 = vand.u32 %v44, 4294901760
  %v4153 = vsub.f32 %v44, %v4152
  %4154 = vmatprep.subr.mxu0 %v4153
  %v4155 = vand.u32 %v43, 4294901760
  %v4156 = vsub.f32 %v43, %v4155
  %4157 = vmatpush1.msra.mxu0 %v4156
  %v4158 = vand.u32 %v42, 4294901760
  %v4159 = vsub.f32 %v42, %v4158
  %4160 = vmatprep.subr.mxu0 %v4159
  %v4161 = vand.u32 %v41, 4294901760
  %v4162 = vsub.f32 %v41, %v4161
  %4163 = vmatpush1.msra.mxu0 %v4162
  %v4164 = vand.u32 %v40, 4294901760
  %v4165 = vsub.f32 %v40, %v4164
  %4166 = vmatprep.subr.mxu0 %v4165
  %v4167 = vand.u32 %v39, 4294901760
  %v4168 = vsub.f32 %v39, %v4167
  %4169 = vmatpush1.msra.mxu0 %v4168
  %v4170 = vand.u32 %v38, 4294901760
  %v4171 = vsub.f32 %v38, %v4170
  %4172 = vmatprep.subr.mxu0 %v4171
  %v4173 = vand.u32 %v37, 4294901760
  %v4174 = vsub.f32 %v37, %v4173
  %4175 = vmatpush1.msra.mxu0 %v4174
  %v4176 = vand.u32 %v36, 4294901760
  %v4177 = vsub.f32 %v36, %v4176
  %4178 = vmatprep.subr.mxu0 %v4177
  %v4179 = vand.u32 %v35, 4294901760
  %v4180 = vsub.f32 %v35, %v4179
  %4181 = vmatpush1.msra.mxu0 %v4180
  %v4182 = vand.u32 %v34, 4294901760
  %v4183 = vsub.f32 %v34, %v4182
  %4184 = vmatprep.subr.mxu0 %v4183
  %v4185 = vand.u32 %v33, 4294901760
  %v4186 = vsub.f32 %v33, %v4185
  %4187 = vmatpush1.msra.mxu0 %v4186
  %v4188 = vand.u32 %v32, 4294901760
  %v4189 = vsub.f32 %v32, %v4188
  %4190 = vmatprep.subr.mxu0 %v4189
  %v4191 = vand.u32 %v31, 4294901760
  %v4192 = vsub.f32 %v31, %v4191
  %4193 = vmatpush1.msra.mxu0 %v4192
  %v4194 = vand.u32 %v30, 4294901760
  %v4195 = vsub.f32 %v30, %v4194
  %4196 = vmatprep.subr.mxu0 %v4195
  %v4197 = vand.u32 %v29, 4294901760
  %v4198 = vsub.f32 %v29, %v4197
  %4199 = vmatpush1.msra.mxu0 %v4198
  %v4200 = vand.u32 %v28, 4294901760
  %v4201 = vsub.f32 %v28, %v4200
  %4202 = vmatprep.subr.mxu0 %v4201
  %v4203 = vand.u32 %v27, 4294901760
  %v4204 = vsub.f32 %v27, %v4203
  %4205 = vmatpush1.msra.mxu0 %v4204
  %v4206 = vand.u32 %v26, 4294901760
  %v4207 = vsub.f32 %v26, %v4206
  %4208 = vmatprep.subr.mxu0 %v4207
  %v4209 = vand.u32 %v25, 4294901760
  %v4210 = vsub.f32 %v25, %v4209
  %4211 = vmatpush1.msra.mxu0 %v4210
  %v4212 = vand.u32 %v24, 4294901760
  %v4213 = vsub.f32 %v24, %v4212
  %4214 = vmatprep.subr.mxu0 %v4213
  %v4215 = vand.u32 %v23, 4294901760
  %v4216 = vsub.f32 %v23, %v4215
  %4217 = vmatpush1.msra.mxu0 %v4216
  %v4218 = vand.u32 %v22, 4294901760
  %v4219 = vsub.f32 %v22, %v4218
  %4220 = vmatprep.subr.mxu0 %v4219
  %v4221 = vand.u32 %v21, 4294901760
  %v4222 = vsub.f32 %v21, %v4221
  %4223 = vmatpush1.msra.mxu0 %v4222
  %v4224 = vand.u32 %v20, 4294901760
  %v4225 = vsub.f32 %v20, %v4224
  %4226 = vmatprep.subr.mxu0 %v4225
  %v4227 = vand.u32 %v19, 4294901760
  %v4228 = vsub.f32 %v19, %v4227
  %4229 = vmatpush1.msra.mxu0 %v4228
  %v4230 = vand.u32 %v18, 4294901760
  %v4231 = vsub.f32 %v18, %v4230
  %4232 = vmatprep.subr.mxu0 %v4231
  %v4233 = vand.u32 %v17, 4294901760
  %v4234 = vsub.f32 %v17, %v4233
  %4235 = vmatpush1.msra.mxu0 %v4234
  %v4236 = vand.u32 %v16, 4294901760
  %v4237 = vsub.f32 %v16, %v4236
  %4238 = vmatprep.subr.mxu0 %v4237
  %v4239 = vand.u32 %v15, 4294901760
  %v4240 = vsub.f32 %v15, %v4239
  %4241 = vmatpush1.msra.mxu0 %v4240
  %4242 = vmatprep.subr.mxu0 0.0
  %4243 = vmatpush2.msra.mxu0 0.0
  %4244 = vmatprep.subr.mxu0 0.0
  %4245 = vmatpush2.msra.mxu0 0.0
  %4246 = vmatprep.subr.mxu0 0.0
  %4247 = vmatpush2.msra.mxu0 0.0
  %4248 = vmatprep.subr.mxu0 0.0
  %4249 = vmatpush2.msra.mxu0 0.0
  %4250 = vmatprep.subr.mxu0 0.0
  %4251 = vmatpush2.msra.mxu0 0.0
  %4252 = vmatprep.subr.mxu0 0.0
  %4253 = vmatpush2.msra.mxu0 0.0
  %4254 = vmatprep.subr.mxu0 0.0
  %4255 = vmatpush2.msra.mxu0 0.0
  %4256 = vmatprep.subr.mxu0 0.0
  %4257 = vmatpush2.msra.mxu0 0.0
  %4258 = vmatprep.subr.mxu0 0.0
  %4259 = vmatpush2.msra.mxu0 0.0
  %4260 = vmatprep.subr.mxu0 0.0
  %4261 = vmatpush2.msra.mxu0 0.0
  %4262 = vmatprep.subr.mxu0 0.0
  %4263 = vmatpush2.msra.mxu0 0.0
  %4264 = vmatprep.subr.mxu0 0.0
  %4265 = vmatpush2.msra.mxu0 0.0
  %4266 = vmatprep.subr.mxu0 0.0
  %4267 = vmatpush2.msra.mxu0 0.0
  %4268 = vmatprep.subr.mxu0 0.0
  %4269 = vmatpush2.msra.mxu0 0.0
  %4270 = vmatprep.subr.mxu0 0.0
  %4271 = vmatpush2.msra.mxu0 0.0
  %4272 = vmatprep.subr.mxu0 0.0
  %4273 = vmatpush2.msra.mxu0 0.0
  %4274 = vmatprep.mubr.f32.mxu0 0.0
  %v4275 = vand.u32 %v2871, 4294901760
  %v4276 = vsub.f32 %v2871, %v4275
  %4277 = vmatmul.mubr.f32.gmra.mxu0 %v4276
  %v4278 = vpop.f32.mrf.mxu0
  %v4279 = vadd.f32 %v4135, %v4278
  %v4280 = vpop.f32.mrf.mxu0
  %v4281 = vadd.f32 %v4137, %v4280
  %4282 = vmatprep.mubr.f32.mxu0 0.0
  %v4283 = vand.u32 %v2872, 4294901760
  %v4284 = vsub.f32 %v2872, %v4283
  %4285 = vmatmul.mubr.f32.gmra.mxu0 %v4284
  %v4286 = vpop.f32.mrf.mxu0
  %v4287 = vadd.f32 %v4142, %v4286
  %v4288 = vpop.f32.mrf.mxu0
  %v4289 = vadd.f32 %v4144, %v4288
  %4290 = vdwg.mxu0
  %v4291 = vand.u32 %v46, 4294901760
  %4292 = vmatprep.subr.mxu0 %v4291
  %v4293 = vand.u32 %v45, 4294901760
  %4294 = vmatpush1.msra.mxu0 %v4293
  %v4295 = vand.u32 %v44, 4294901760
  %4296 = vmatprep.subr.mxu0 %v4295
  %v4297 = vand.u32 %v43, 4294901760
  %4298 = vmatpush1.msra.mxu0 %v4297
  %v4299 = vand.u32 %v42, 4294901760
  %4300 = vmatprep.subr.mxu0 %v4299
  %v4301 = vand.u32 %v41, 4294901760
  %4302 = vmatpush1.msra.mxu0 %v4301
  %v4303 = vand.u32 %v40, 4294901760
  %4304 = vmatprep.subr.mxu0 %v4303
  %v4305 = vand.u32 %v39, 4294901760
  %4306 = vmatpush1.msra.mxu0 %v4305
  %v4307 = vand.u32 %v38, 4294901760
  %4308 = vmatprep.subr.mxu0 %v4307
  %v4309 = vand.u32 %v37, 4294901760
  %4310 = vmatpush1.msra.mxu0 %v4309
  %v4311 = vand.u32 %v36, 4294901760
  %4312 = vmatprep.subr.mxu0 %v4311
  %v4313 = vand.u32 %v35, 4294901760
  %4314 = vmatpush1.msra.mxu0 %v4313
  %v4315 = vand.u32 %v34, 4294901760
  %4316 = vmatprep.subr.mxu0 %v4315
  %v4317 = vand.u32 %v33, 4294901760
  %4318 = vmatpush1.msra.mxu0 %v4317
  %v4319 = vand.u32 %v32, 4294901760
  %4320 = vmatprep.subr.mxu0 %v4319
  %v4321 = vand.u32 %v31, 4294901760
  %4322 = vmatpush1.msra.mxu0 %v4321
  %v4323 = vand.u32 %v30, 4294901760
  %4324 = vmatprep.subr.mxu0 %v4323
  %v4325 = vand.u32 %v29, 4294901760
  %4326 = vmatpush1.msra.mxu0 %v4325
  %v4327 = vand.u32 %v28, 4294901760
  %4328 = vmatprep.subr.mxu0 %v4327
  %v4329 = vand.u32 %v27, 4294901760
  %4330 = vmatpush1.msra.mxu0 %v4329
  %v4331 = vand.u32 %v26, 4294901760
  %4332 = vmatprep.subr.mxu0 %v4331
  %v4333 = vand.u32 %v25, 4294901760
  %4334 = vmatpush1.msra.mxu0 %v4333
  %v4335 = vand.u32 %v24, 4294901760
  %4336 = vmatprep.subr.mxu0 %v4335
  %v4337 = vand.u32 %v23, 4294901760
  %4338 = vmatpush1.msra.mxu0 %v4337
  %v4339 = vand.u32 %v22, 4294901760
  %4340 = vmatprep.subr.mxu0 %v4339
  %v4341 = vand.u32 %v21, 4294901760
  %4342 = vmatpush1.msra.mxu0 %v4341
  %v4343 = vand.u32 %v20, 4294901760
  %4344 = vmatprep.subr.mxu0 %v4343
  %v4345 = vand.u32 %v19, 4294901760
  %4346 = vmatpush1.msra.mxu0 %v4345
  %v4347 = vand.u32 %v18, 4294901760
  %4348 = vmatprep.subr.mxu0 %v4347
  %v4349 = vand.u32 %v17, 4294901760
  %4350 = vmatpush1.msra.mxu0 %v4349
  %v4351 = vand.u32 %v16, 4294901760
  %4352 = vmatprep.subr.mxu0 %v4351
  %v4353 = vand.u32 %v15, 4294901760
  %4354 = vmatpush1.msra.mxu0 %v4353
  %4355 = vmatprep.subr.mxu0 0.0
  %4356 = vmatpush2.msra.mxu0 0.0
  %4357 = vmatprep.subr.mxu0 0.0
  %4358 = vmatpush2.msra.mxu0 0.0
  %4359 = vmatprep.subr.mxu0 0.0
  %4360 = vmatpush2.msra.mxu0 0.0
  %4361 = vmatprep.subr.mxu0 0.0
  %4362 = vmatpush2.msra.mxu0 0.0
  %4363 = vmatprep.subr.mxu0 0.0
  %4364 = vmatpush2.msra.mxu0 0.0
  %4365 = vmatprep.subr.mxu0 0.0
  %4366 = vmatpush2.msra.mxu0 0.0
  %4367 = vmatprep.subr.mxu0 0.0
  %4368 = vmatpush2.msra.mxu0 0.0
  %4369 = vmatprep.subr.mxu0 0.0
  %4370 = vmatpush2.msra.mxu0 0.0
  %4371 = vmatprep.subr.mxu0 0.0
  %4372 = vmatpush2.msra.mxu0 0.0
  %4373 = vmatprep.subr.mxu0 0.0
  %4374 = vmatpush2.msra.mxu0 0.0
  %4375 = vmatprep.subr.mxu0 0.0
  %4376 = vmatpush2.msra.mxu0 0.0
  %4377 = vmatprep.subr.mxu0 0.0
  %4378 = vmatpush2.msra.mxu0 0.0
  %4379 = vmatprep.subr.mxu0 0.0
  %4380 = vmatpush2.msra.mxu0 0.0
  %4381 = vmatprep.subr.mxu0 0.0
  %4382 = vmatpush2.msra.mxu0 0.0
  %4383 = vmatprep.subr.mxu0 0.0
  %4384 = vmatpush2.msra.mxu0 0.0
  %4385 = vmatprep.subr.mxu0 0.0
  %4386 = vmatpush2.msra.mxu0 0.0
  %4387 = vmatprep.mubr.f32.mxu0 0.0
  %v4388 = vand.u32 %v2871, 4294901760
  %v4389 = vsub.f32 %v2871, %v4388
  %v4390 = vand.u32 %v4389, 4294901760
  %4391 = vmatmul.mubr.f32.gmra.mxu0 %v4390
  %v4392 = vpop.f32.mrf.mxu0
  %v4393 = vadd.f32 %v4279, %v4392
  %v4394 = vpop.f32.mrf.mxu0
  %v4395 = vadd.f32 %v4281, %v4394
  %4396 = vmatprep.mubr.f32.mxu0 0.0
  %v4397 = vand.u32 %v2872, 4294901760
  %v4398 = vsub.f32 %v2872, %v4397
  %v4399 = vand.u32 %v4398, 4294901760
  %4400 = vmatmul.mubr.f32.gmra.mxu0 %v4399
  %v4401 = vpop.f32.mrf.mxu0
  %v4402 = vadd.f32 %v4287, %v4401
  %v4403 = vpop.f32.mrf.mxu0
  %v4404 = vadd.f32 %v4289, %v4403
  %4405 = vdwg.mxu0
  %v4406 = vand.u32 %v46, 4294901760
  %v4407 = vsub.f32 %v46, %v4406
  %v4408 = vand.u32 %v4407, 4294901760
  %4409 = vmatprep.subr.mxu0 %v4408
  %v4410 = vand.u32 %v45, 4294901760
  %v4411 = vsub.f32 %v45, %v4410
  %v4412 = vand.u32 %v4411, 4294901760
  %4413 = vmatpush1.msra.mxu0 %v4412
  %v4414 = vand.u32 %v44, 4294901760
  %v4415 = vsub.f32 %v44, %v4414
  %v4416 = vand.u32 %v4415, 4294901760
  %4417 = vmatprep.subr.mxu0 %v4416
  %v4418 = vand.u32 %v43, 4294901760
  %v4419 = vsub.f32 %v43, %v4418
  %v4420 = vand.u32 %v4419, 4294901760
  %4421 = vmatpush1.msra.mxu0 %v4420
  %v4422 = vand.u32 %v42, 4294901760
  %v4423 = vsub.f32 %v42, %v4422
  %v4424 = vand.u32 %v4423, 4294901760
  %4425 = vmatprep.subr.mxu0 %v4424
  %v4426 = vand.u32 %v41, 4294901760
  %v4427 = vsub.f32 %v41, %v4426
  %v4428 = vand.u32 %v4427, 4294901760
  %4429 = vmatpush1.msra.mxu0 %v4428
  %v4430 = vand.u32 %v40, 4294901760
  %v4431 = vsub.f32 %v40, %v4430
  %v4432 = vand.u32 %v4431, 4294901760
  %4433 = vmatprep.subr.mxu0 %v4432
  %v4434 = vand.u32 %v39, 4294901760
  %v4435 = vsub.f32 %v39, %v4434
  %v4436 = vand.u32 %v4435, 4294901760
  %4437 = vmatpush1.msra.mxu0 %v4436
  %v4438 = vand.u32 %v38, 4294901760
  %v4439 = vsub.f32 %v38, %v4438
  %v4440 = vand.u32 %v4439, 4294901760
  %4441 = vmatprep.subr.mxu0 %v4440
  %v4442 = vand.u32 %v37, 4294901760
  %v4443 = vsub.f32 %v37, %v4442
  %v4444 = vand.u32 %v4443, 4294901760
  %4445 = vmatpush1.msra.mxu0 %v4444
  %v4446 = vand.u32 %v36, 4294901760
  %v4447 = vsub.f32 %v36, %v4446
  %v4448 = vand.u32 %v4447, 4294901760
  %4449 = vmatprep.subr.mxu0 %v4448
  %v4450 = vand.u32 %v35, 4294901760
  %v4451 = vsub.f32 %v35, %v4450
  %v4452 = vand.u32 %v4451, 4294901760
  %4453 = vmatpush1.msra.mxu0 %v4452
  %v4454 = vand.u32 %v34, 4294901760
  %v4455 = vsub.f32 %v34, %v4454
  %v4456 = vand.u32 %v4455, 4294901760
  %4457 = vmatprep.subr.mxu0 %v4456
  %v4458 = vand.u32 %v33, 4294901760
  %v4459 = vsub.f32 %v33, %v4458
  %v4460 = vand.u32 %v4459, 4294901760
  %4461 = vmatpush1.msra.mxu0 %v4460
  %v4462 = vand.u32 %v32, 4294901760
  %v4463 = vsub.f32 %v32, %v4462
  %v4464 = vand.u32 %v4463, 4294901760
  %4465 = vmatprep.subr.mxu0 %v4464
  %v4466 = vand.u32 %v31, 4294901760
  %v4467 = vsub.f32 %v31, %v4466
  %v4468 = vand.u32 %v4467, 4294901760
  %4469 = vmatpush1.msra.mxu0 %v4468
  %v4470 = vand.u32 %v30, 4294901760
  %v4471 = vsub.f32 %v30, %v4470
  %v4472 = vand.u32 %v4471, 4294901760
  %4473 = vmatprep.subr.mxu0 %v4472
  %v4474 = vand.u32 %v29, 4294901760
  %v4475 = vsub.f32 %v29, %v4474
  %v4476 = vand.u32 %v4475, 4294901760
  %4477 = vmatpush1.msra.mxu0 %v4476
  %v4478 = vand.u32 %v28, 4294901760
  %v4479 = vsub.f32 %v28, %v4478
  %v4480 = vand.u32 %v4479, 4294901760
  %4481 = vmatprep.subr.mxu0 %v4480
  %v4482 = vand.u32 %v27, 4294901760
  %v4483 = vsub.f32 %v27, %v4482
  %v4484 = vand.u32 %v4483, 4294901760
  %4485 = vmatpush1.msra.mxu0 %v4484
  %v4486 = vand.u32 %v26, 4294901760
  %v4487 = vsub.f32 %v26, %v4486
  %v4488 = vand.u32 %v4487, 4294901760
  %4489 = vmatprep.subr.mxu0 %v4488
  %v4490 = vand.u32 %v25, 4294901760
  %v4491 = vsub.f32 %v25, %v4490
  %v4492 = vand.u32 %v4491, 4294901760
  %4493 = vmatpush1.msra.mxu0 %v4492
  %v4494 = vand.u32 %v24, 4294901760
  %v4495 = vsub.f32 %v24, %v4494
  %v4496 = vand.u32 %v4495, 4294901760
  %4497 = vmatprep.subr.mxu0 %v4496
  %v4498 = vand.u32 %v23, 4294901760
  %v4499 = vsub.f32 %v23, %v4498
  %v4500 = vand.u32 %v4499, 4294901760
  %4501 = vmatpush1.msra.mxu0 %v4500
  %v4502 = vand.u32 %v22, 4294901760
  %v4503 = vsub.f32 %v22, %v4502
  %v4504 = vand.u32 %v4503, 4294901760
  %4505 = vmatprep.subr.mxu0 %v4504
  %v4506 = vand.u32 %v21, 4294901760
  %v4507 = vsub.f32 %v21, %v4506
  %v4508 = vand.u32 %v4507, 4294901760
  %4509 = vmatpush1.msra.mxu0 %v4508
  %v4510 = vand.u32 %v20, 4294901760
  %v4511 = vsub.f32 %v20, %v4510
  %v4512 = vand.u32 %v4511, 4294901760
  %4513 = vmatprep.subr.mxu0 %v4512
  %v4514 = vand.u32 %v19, 4294901760
  %v4515 = vsub.f32 %v19, %v4514
  %v4516 = vand.u32 %v4515, 4294901760
  %4517 = vmatpush1.msra.mxu0 %v4516
  %v4518 = vand.u32 %v18, 4294901760
  %v4519 = vsub.f32 %v18, %v4518
  %v4520 = vand.u32 %v4519, 4294901760
  %4521 = vmatprep.subr.mxu0 %v4520
  %v4522 = vand.u32 %v17, 4294901760
  %v4523 = vsub.f32 %v17, %v4522
  %v4524 = vand.u32 %v4523, 4294901760
  %4525 = vmatpush1.msra.mxu0 %v4524
  %v4526 = vand.u32 %v16, 4294901760
  %v4527 = vsub.f32 %v16, %v4526
  %v4528 = vand.u32 %v4527, 4294901760
  %4529 = vmatprep.subr.mxu0 %v4528
  %v4530 = vand.u32 %v15, 4294901760
  %v4531 = vsub.f32 %v15, %v4530
  %v4532 = vand.u32 %v4531, 4294901760
  %4533 = vmatpush1.msra.mxu0 %v4532
  %4534 = vmatprep.subr.mxu0 0.0
  %4535 = vmatpush2.msra.mxu0 0.0
  %4536 = vmatprep.subr.mxu0 0.0
  %4537 = vmatpush2.msra.mxu0 0.0
  %4538 = vmatprep.subr.mxu0 0.0
  %4539 = vmatpush2.msra.mxu0 0.0
  %4540 = vmatprep.subr.mxu0 0.0
  %4541 = vmatpush2.msra.mxu0 0.0
  %4542 = vmatprep.subr.mxu0 0.0
  %4543 = vmatpush2.msra.mxu0 0.0
  %4544 = vmatprep.subr.mxu0 0.0
  %4545 = vmatpush2.msra.mxu0 0.0
  %4546 = vmatprep.subr.mxu0 0.0
  %4547 = vmatpush2.msra.mxu0 0.0
  %4548 = vmatprep.subr.mxu0 0.0
  %4549 = vmatpush2.msra.mxu0 0.0
  %4550 = vmatprep.subr.mxu0 0.0
  %4551 = vmatpush2.msra.mxu0 0.0
  %4552 = vmatprep.subr.mxu0 0.0
  %4553 = vmatpush2.msra.mxu0 0.0
  %4554 = vmatprep.subr.mxu0 0.0
  %4555 = vmatpush2.msra.mxu0 0.0
  %4556 = vmatprep.subr.mxu0 0.0
  %4557 = vmatpush2.msra.mxu0 0.0
  %4558 = vmatprep.subr.mxu0 0.0
  %4559 = vmatpush2.msra.mxu0 0.0
  %4560 = vmatprep.subr.mxu0 0.0
  %4561 = vmatpush2.msra.mxu0 0.0
  %4562 = vmatprep.subr.mxu0 0.0
  %4563 = vmatpush2.msra.mxu0 0.0
  %4564 = vmatprep.subr.mxu0 0.0
  %4565 = vmatpush2.msra.mxu0 0.0
  %4566 = vmatprep.mubr.f32.mxu0 0.0
  %v4567 = vand.u32 %v2871, 4294901760
  %4568 = vmatmul.mubr.f32.gmra.mxu0 %v4567
  %v4569 = vpop.f32.mrf.mxu0
  %v4570 = vadd.f32 %v4393, %v4569
  %v4571 = vpop.f32.mrf.mxu0
  %v4572 = vadd.f32 %v4395, %v4571
  %4573 = vmatprep.mubr.f32.mxu0 0.0
  %v4574 = vand.u32 %v2872, 4294901760
  %4575 = vmatmul.mubr.f32.gmra.mxu0 %v4574
  %v4576 = vpop.f32.mrf.mxu0
  %v4577 = vadd.f32 %v4402, %v4576
  %v4578 = vpop.f32.mrf.mxu0
  %v4579 = vadd.f32 %v4404, %v4578
  %4580 = vdwg.mxu0
  %v4581 = vand.u32 %v46, 4294901760
  %4582 = vmatprep.subr.mxu0 %v4581
  %v4583 = vand.u32 %v45, 4294901760
  %4584 = vmatpush1.msra.mxu0 %v4583
  %v4585 = vand.u32 %v44, 4294901760
  %4586 = vmatprep.subr.mxu0 %v4585
  %v4587 = vand.u32 %v43, 4294901760
  %4588 = vmatpush1.msra.mxu0 %v4587
  %v4589 = vand.u32 %v42, 4294901760
  %4590 = vmatprep.subr.mxu0 %v4589
  %v4591 = vand.u32 %v41, 4294901760
  %4592 = vmatpush1.msra.mxu0 %v4591
  %v4593 = vand.u32 %v40, 4294901760
  %4594 = vmatprep.subr.mxu0 %v4593
  %v4595 = vand.u32 %v39, 4294901760
  %4596 = vmatpush1.msra.mxu0 %v4595
  %v4597 = vand.u32 %v38, 4294901760
  %4598 = vmatprep.subr.mxu0 %v4597
  %v4599 = vand.u32 %v37, 4294901760
  %4600 = vmatpush1.msra.mxu0 %v4599
  %v4601 = vand.u32 %v36, 4294901760
  %4602 = vmatprep.subr.mxu0 %v4601
  %v4603 = vand.u32 %v35, 4294901760
  %4604 = vmatpush1.msra.mxu0 %v4603
  %v4605 = vand.u32 %v34, 4294901760
  %4606 = vmatprep.subr.mxu0 %v4605
  %v4607 = vand.u32 %v33, 4294901760
  %4608 = vmatpush1.msra.mxu0 %v4607
  %v4609 = vand.u32 %v32, 4294901760
  %4610 = vmatprep.subr.mxu0 %v4609
  %v4611 = vand.u32 %v31, 4294901760
  %4612 = vmatpush1.msra.mxu0 %v4611
  %v4613 = vand.u32 %v30, 4294901760
  %4614 = vmatprep.subr.mxu0 %v4613
  %v4615 = vand.u32 %v29, 4294901760
  %4616 = vmatpush1.msra.mxu0 %v4615
  %v4617 = vand.u32 %v28, 4294901760
  %4618 = vmatprep.subr.mxu0 %v4617
  %v4619 = vand.u32 %v27, 4294901760
  %4620 = vmatpush1.msra.mxu0 %v4619
  %v4621 = vand.u32 %v26, 4294901760
  %4622 = vmatprep.subr.mxu0 %v4621
  %v4623 = vand.u32 %v25, 4294901760
  %4624 = vmatpush1.msra.mxu0 %v4623
  %v4625 = vand.u32 %v24, 4294901760
  %4626 = vmatprep.subr.mxu0 %v4625
  %v4627 = vand.u32 %v23, 4294901760
  %4628 = vmatpush1.msra.mxu0 %v4627
  %v4629 = vand.u32 %v22, 4294901760
  %4630 = vmatprep.subr.mxu0 %v4629
  %v4631 = vand.u32 %v21, 4294901760
  %4632 = vmatpush1.msra.mxu0 %v4631
  %v4633 = vand.u32 %v20, 4294901760
  %4634 = vmatprep.subr.mxu0 %v4633
  %v4635 = vand.u32 %v19, 4294901760
  %4636 = vmatpush1.msra.mxu0 %v4635
  %v4637 = vand.u32 %v18, 4294901760
  %4638 = vmatprep.subr.mxu0 %v4637
  %v4639 = vand.u32 %v17, 4294901760
  %4640 = vmatpush1.msra.mxu0 %v4639
  %v4641 = vand.u32 %v16, 4294901760
  %4642 = vmatprep.subr.mxu0 %v4641
  %v4643 = vand.u32 %v15, 4294901760
  %4644 = vmatpush1.msra.mxu0 %v4643
  %4645 = vmatprep.subr.mxu0 0.0
  %4646 = vmatpush2.msra.mxu0 0.0
  %4647 = vmatprep.subr.mxu0 0.0
  %4648 = vmatpush2.msra.mxu0 0.0
  %4649 = vmatprep.subr.mxu0 0.0
  %4650 = vmatpush2.msra.mxu0 0.0
  %4651 = vmatprep.subr.mxu0 0.0
  %4652 = vmatpush2.msra.mxu0 0.0
  %4653 = vmatprep.subr.mxu0 0.0
  %4654 = vmatpush2.msra.mxu0 0.0
  %4655 = vmatprep.subr.mxu0 0.0
  %4656 = vmatpush2.msra.mxu0 0.0
  %4657 = vmatprep.subr.mxu0 0.0
  %4658 = vmatpush2.msra.mxu0 0.0
  %4659 = vmatprep.subr.mxu0 0.0
  %4660 = vmatpush2.msra.mxu0 0.0
  %4661 = vmatprep.subr.mxu0 0.0
  %4662 = vmatpush2.msra.mxu0 0.0
  %4663 = vmatprep.subr.mxu0 0.0
  %4664 = vmatpush2.msra.mxu0 0.0
  %4665 = vmatprep.subr.mxu0 0.0
  %4666 = vmatpush2.msra.mxu0 0.0
  %4667 = vmatprep.subr.mxu0 0.0
  %4668 = vmatpush2.msra.mxu0 0.0
  %4669 = vmatprep.subr.mxu0 0.0
  %4670 = vmatpush2.msra.mxu0 0.0
  %4671 = vmatprep.subr.mxu0 0.0
  %4672 = vmatpush2.msra.mxu0 0.0
  %4673 = vmatprep.subr.mxu0 0.0
  %4674 = vmatpush2.msra.mxu0 0.0
  %4675 = vmatprep.subr.mxu0 0.0
  %4676 = vmatpush2.msra.mxu0 0.0
  %4677 = vmatprep.mubr.f32.mxu0 0.0
  %v4678 = vand.u32 %v2871, 4294901760
  %4679 = vmatmul.mubr.f32.gmra.mxu0 %v4678
  %v4680 = vpop.f32.mrf.mxu0
  %v4681 = vadd.f32 %v4570, %v4680
  %v4682 = vpop.f32.mrf.mxu0
  %v4683 = vadd.f32 %v4572, %v4682
  %4684 = vmatprep.mubr.f32.mxu0 0.0
  %v4685 = vand.u32 %v2872, 4294901760
  %4686 = vmatmul.mubr.f32.gmra.mxu0 %v4685
  %v4687 = vpop.f32.mrf.mxu0
  %v4688 = vadd.f32 %v4577, %v4687
  %v4689 = vpop.f32.mrf.mxu0
  %v4690 = vadd.f32 %v4579, %v4689
  %4691 = vdwg.mxu0
  %v4692 = vrot.slane %v2871, 2
  %v4693 = vrot.slane %v2872, 2
  %v4694 = vsel %vm1935, %v4692, %v4693
  %v4695 = vrot.slane %v2873, 2
  %v4696 = vsel %vm1935, %v4693, %v4695
  %v4699 = vand.u32 %v112, 4294901760
  %4700 = vmatprep.subr.mxu0 %v4699
  %v4701 = vand.u32 %v111, 4294901760
  %4702 = vmatpush1.msra.mxu0 %v4701
  %v4703 = vand.u32 %v110, 4294901760
  %4704 = vmatprep.subr.mxu0 %v4703
  %v4705 = vand.u32 %v109, 4294901760
  %4706 = vmatpush1.msra.mxu0 %v4705
  %v4707 = vand.u32 %v108, 4294901760
  %4708 = vmatprep.subr.mxu0 %v4707
  %v4709 = vand.u32 %v107, 4294901760
  %4710 = vmatpush1.msra.mxu0 %v4709
  %v4711 = vand.u32 %v106, 4294901760
  %4712 = vmatprep.subr.mxu0 %v4711
  %v4713 = vand.u32 %v105, 4294901760
  %4714 = vmatpush1.msra.mxu0 %v4713
  %v4715 = vand.u32 %v104, 4294901760
  %4716 = vmatprep.subr.mxu0 %v4715
  %v4717 = vand.u32 %v103, 4294901760
  %4718 = vmatpush1.msra.mxu0 %v4717
  %v4719 = vand.u32 %v102, 4294901760
  %4720 = vmatprep.subr.mxu0 %v4719
  %v4721 = vand.u32 %v101, 4294901760
  %4722 = vmatpush1.msra.mxu0 %v4721
  %v4723 = vand.u32 %v100, 4294901760
  %4724 = vmatprep.subr.mxu0 %v4723
  %v4725 = vand.u32 %v99, 4294901760
  %4726 = vmatpush1.msra.mxu0 %v4725
  %v4727 = vand.u32 %v98, 4294901760
  %4728 = vmatprep.subr.mxu0 %v4727
  %v4729 = vand.u32 %v97, 4294901760
  %4730 = vmatpush1.msra.mxu0 %v4729
  %v4731 = vand.u32 %v96, 4294901760
  %4732 = vmatprep.subr.mxu0 %v4731
  %v4733 = vand.u32 %v95, 4294901760
  %4734 = vmatpush1.msra.mxu0 %v4733
  %v4735 = vand.u32 %v94, 4294901760
  %4736 = vmatprep.subr.mxu0 %v4735
  %v4737 = vand.u32 %v93, 4294901760
  %4738 = vmatpush1.msra.mxu0 %v4737
  %v4739 = vand.u32 %v92, 4294901760
  %4740 = vmatprep.subr.mxu0 %v4739
  %v4741 = vand.u32 %v91, 4294901760
  %4742 = vmatpush1.msra.mxu0 %v4741
  %v4743 = vand.u32 %v90, 4294901760
  %4744 = vmatprep.subr.mxu0 %v4743
  %v4745 = vand.u32 %v89, 4294901760
  %4746 = vmatpush1.msra.mxu0 %v4745
  %v4747 = vand.u32 %v88, 4294901760
  %4748 = vmatprep.subr.mxu0 %v4747
  %v4749 = vand.u32 %v87, 4294901760
  %4750 = vmatpush1.msra.mxu0 %v4749
  %v4751 = vand.u32 %v86, 4294901760
  %4752 = vmatprep.subr.mxu0 %v4751
  %v4753 = vand.u32 %v85, 4294901760
  %4754 = vmatpush1.msra.mxu0 %v4753
  %v4755 = vand.u32 %v84, 4294901760
  %4756 = vmatprep.subr.mxu0 %v4755
  %v4757 = vand.u32 %v83, 4294901760
  %4758 = vmatpush1.msra.mxu0 %v4757
  %v4759 = vand.u32 %v82, 4294901760
  %4760 = vmatprep.subr.mxu0 %v4759
  %v4761 = vand.u32 %v81, 4294901760
  %4762 = vmatpush1.msra.mxu0 %v4761
  %4763 = vmatprep.subr.mxu0 0.0
  %4764 = vmatpush2.msra.mxu0 0.0
  %4765 = vmatprep.subr.mxu0 0.0
  %4766 = vmatpush2.msra.mxu0 0.0
  %4767 = vmatprep.subr.mxu0 0.0
  %4768 = vmatpush2.msra.mxu0 0.0
  %4769 = vmatprep.subr.mxu0 0.0
  %4770 = vmatpush2.msra.mxu0 0.0
  %4771 = vmatprep.subr.mxu0 0.0
  %4772 = vmatpush2.msra.mxu0 0.0
  %4773 = vmatprep.subr.mxu0 0.0
  %4774 = vmatpush2.msra.mxu0 0.0
  %4775 = vmatprep.subr.mxu0 0.0
  %4776 = vmatpush2.msra.mxu0 0.0
  %4777 = vmatprep.subr.mxu0 0.0
  %4778 = vmatpush2.msra.mxu0 0.0
  %4779 = vmatprep.subr.mxu0 0.0
  %4780 = vmatpush2.msra.mxu0 0.0
  %4781 = vmatprep.subr.mxu0 0.0
  %4782 = vmatpush2.msra.mxu0 0.0
  %4783 = vmatprep.subr.mxu0 0.0
  %4784 = vmatpush2.msra.mxu0 0.0
  %4785 = vmatprep.subr.mxu0 0.0
  %4786 = vmatpush2.msra.mxu0 0.0
  %4787 = vmatprep.subr.mxu0 0.0
  %4788 = vmatpush2.msra.mxu0 0.0
  %4789 = vmatprep.subr.mxu0 0.0
  %4790 = vmatpush2.msra.mxu0 0.0
  %4791 = vmatprep.subr.mxu0 0.0
  %4792 = vmatpush2.msra.mxu0 0.0
  %4793 = vmatprep.subr.mxu0 0.0
  %4794 = vmatpush2.msra.mxu0 0.0
  %4795 = vmatprep.mubr.f32.mxu0 0.0
  %v4796 = vand.u32 %v4694, 4294901760
  %v4797 = vsub.f32 %v4694, %v4796
  %v4798 = vand.u32 %v4797, 4294901760
  %v4799 = vsub.f32 %v4797, %v4798
  %v4800 = vand.u32 %v4799, 4294901760
  %4801 = vmatmul.mubr.f32.gmra.mxu0 %v4800
  %v4802 = vpop.f32.mrf.mxu0
  %v4803 = vadd.f32 0.0, %v4802
  %v4804 = vpop.f32.mrf.mxu0
  %v4805 = vadd.f32 0.0, %v4804
  %4806 = vmatprep.mubr.f32.mxu0 0.0
  %v4807 = vand.u32 %v4696, 4294901760
  %v4808 = vsub.f32 %v4696, %v4807
  %v4809 = vand.u32 %v4808, 4294901760
  %v4810 = vsub.f32 %v4808, %v4809
  %v4811 = vand.u32 %v4810, 4294901760
  %4812 = vmatmul.mubr.f32.gmra.mxu0 %v4811
  %v4813 = vpop.f32.mrf.mxu0
  %v4814 = vadd.f32 0.0, %v4813
  %v4815 = vpop.f32.mrf.mxu0
  %v4816 = vadd.f32 0.0, %v4815
  %4817 = vdwg.mxu0
  %v4818 = vand.u32 %v112, 4294901760
  %v4819 = vsub.f32 %v112, %v4818
  %v4820 = vand.u32 %v4819, 4294901760
  %v4821 = vsub.f32 %v4819, %v4820
  %v4822 = vand.u32 %v4821, 4294901760
  %4823 = vmatprep.subr.mxu0 %v4822
  %v4824 = vand.u32 %v111, 4294901760
  %v4825 = vsub.f32 %v111, %v4824
  %v4826 = vand.u32 %v4825, 4294901760
  %v4827 = vsub.f32 %v4825, %v4826
  %v4828 = vand.u32 %v4827, 4294901760
  %4829 = vmatpush1.msra.mxu0 %v4828
  %v4830 = vand.u32 %v110, 4294901760
  %v4831 = vsub.f32 %v110, %v4830
  %v4832 = vand.u32 %v4831, 4294901760
  %v4833 = vsub.f32 %v4831, %v4832
  %v4834 = vand.u32 %v4833, 4294901760
  %4835 = vmatprep.subr.mxu0 %v4834
  %v4836 = vand.u32 %v109, 4294901760
  %v4837 = vsub.f32 %v109, %v4836
  %v4838 = vand.u32 %v4837, 4294901760
  %v4839 = vsub.f32 %v4837, %v4838
  %v4840 = vand.u32 %v4839, 4294901760
  %4841 = vmatpush1.msra.mxu0 %v4840
  %v4842 = vand.u32 %v108, 4294901760
  %v4843 = vsub.f32 %v108, %v4842
  %v4844 = vand.u32 %v4843, 4294901760
  %v4845 = vsub.f32 %v4843, %v4844
  %v4846 = vand.u32 %v4845, 4294901760
  %4847 = vmatprep.subr.mxu0 %v4846
  %v4848 = vand.u32 %v107, 4294901760
  %v4849 = vsub.f32 %v107, %v4848
  %v4850 = vand.u32 %v4849, 4294901760
  %v4851 = vsub.f32 %v4849, %v4850
  %v4852 = vand.u32 %v4851, 4294901760
  %4853 = vmatpush1.msra.mxu0 %v4852
  %v4854 = vand.u32 %v106, 4294901760
  %v4855 = vsub.f32 %v106, %v4854
  %v4856 = vand.u32 %v4855, 4294901760
  %v4857 = vsub.f32 %v4855, %v4856
  %v4858 = vand.u32 %v4857, 4294901760
  %4859 = vmatprep.subr.mxu0 %v4858
  %v4860 = vand.u32 %v105, 4294901760
  %v4861 = vsub.f32 %v105, %v4860
  %v4862 = vand.u32 %v4861, 4294901760
  %v4863 = vsub.f32 %v4861, %v4862
  %v4864 = vand.u32 %v4863, 4294901760
  %4865 = vmatpush1.msra.mxu0 %v4864
  %v4866 = vand.u32 %v104, 4294901760
  %v4867 = vsub.f32 %v104, %v4866
  %v4868 = vand.u32 %v4867, 4294901760
  %v4869 = vsub.f32 %v4867, %v4868
  %v4870 = vand.u32 %v4869, 4294901760
  %4871 = vmatprep.subr.mxu0 %v4870
  %v4872 = vand.u32 %v103, 4294901760
  %v4873 = vsub.f32 %v103, %v4872
  %v4874 = vand.u32 %v4873, 4294901760
  %v4875 = vsub.f32 %v4873, %v4874
  %v4876 = vand.u32 %v4875, 4294901760
  %4877 = vmatpush1.msra.mxu0 %v4876
  %v4878 = vand.u32 %v102, 4294901760
  %v4879 = vsub.f32 %v102, %v4878
  %v4880 = vand.u32 %v4879, 4294901760
  %v4881 = vsub.f32 %v4879, %v4880
  %v4882 = vand.u32 %v4881, 4294901760
  %4883 = vmatprep.subr.mxu0 %v4882
  %v4884 = vand.u32 %v101, 4294901760
  %v4885 = vsub.f32 %v101, %v4884
  %v4886 = vand.u32 %v4885, 4294901760
  %v4887 = vsub.f32 %v4885, %v4886
  %v4888 = vand.u32 %v4887, 4294901760
  %4889 = vmatpush1.msra.mxu0 %v4888
  %v4890 = vand.u32 %v100, 4294901760
  %v4891 = vsub.f32 %v100, %v4890
  %v4892 = vand.u32 %v4891, 4294901760
  %v4893 = vsub.f32 %v4891, %v4892
  %v4894 = vand.u32 %v4893, 4294901760
  %4895 = vmatprep.subr.mxu0 %v4894
  %v4896 = vand.u32 %v99, 4294901760
  %v4897 = vsub.f32 %v99, %v4896
  %v4898 = vand.u32 %v4897, 4294901760
  %v4899 = vsub.f32 %v4897, %v4898
  %v4900 = vand.u32 %v4899, 4294901760
  %4901 = vmatpush1.msra.mxu0 %v4900
  %v4902 = vand.u32 %v98, 4294901760
  %v4903 = vsub.f32 %v98, %v4902
  %v4904 = vand.u32 %v4903, 4294901760
  %v4905 = vsub.f32 %v4903, %v4904
  %v4906 = vand.u32 %v4905, 4294901760
  %4907 = vmatprep.subr.mxu0 %v4906
  %v4908 = vand.u32 %v97, 4294901760
  %v4909 = vsub.f32 %v97, %v4908
  %v4910 = vand.u32 %v4909, 4294901760
  %v4911 = vsub.f32 %v4909, %v4910
  %v4912 = vand.u32 %v4911, 4294901760
  %4913 = vmatpush1.msra.mxu0 %v4912
  %v4914 = vand.u32 %v96, 4294901760
  %v4915 = vsub.f32 %v96, %v4914
  %v4916 = vand.u32 %v4915, 4294901760
  %v4917 = vsub.f32 %v4915, %v4916
  %v4918 = vand.u32 %v4917, 4294901760
  %4919 = vmatprep.subr.mxu0 %v4918
  %v4920 = vand.u32 %v95, 4294901760
  %v4921 = vsub.f32 %v95, %v4920
  %v4922 = vand.u32 %v4921, 4294901760
  %v4923 = vsub.f32 %v4921, %v4922
  %v4924 = vand.u32 %v4923, 4294901760
  %4925 = vmatpush1.msra.mxu0 %v4924
  %v4926 = vand.u32 %v94, 4294901760
  %v4927 = vsub.f32 %v94, %v4926
  %v4928 = vand.u32 %v4927, 4294901760
  %v4929 = vsub.f32 %v4927, %v4928
  %v4930 = vand.u32 %v4929, 4294901760
  %4931 = vmatprep.subr.mxu0 %v4930
  %v4932 = vand.u32 %v93, 4294901760
  %v4933 = vsub.f32 %v93, %v4932
  %v4934 = vand.u32 %v4933, 4294901760
  %v4935 = vsub.f32 %v4933, %v4934
  %v4936 = vand.u32 %v4935, 4294901760
  %4937 = vmatpush1.msra.mxu0 %v4936
  %v4938 = vand.u32 %v92, 4294901760
  %v4939 = vsub.f32 %v92, %v4938
  %v4940 = vand.u32 %v4939, 4294901760
  %v4941 = vsub.f32 %v4939, %v4940
  %v4942 = vand.u32 %v4941, 4294901760
  %4943 = vmatprep.subr.mxu0 %v4942
  %v4944 = vand.u32 %v91, 4294901760
  %v4945 = vsub.f32 %v91, %v4944
  %v4946 = vand.u32 %v4945, 4294901760
  %v4947 = vsub.f32 %v4945, %v4946
  %v4948 = vand.u32 %v4947, 4294901760
  %4949 = vmatpush1.msra.mxu0 %v4948
  %v4950 = vand.u32 %v90, 4294901760
  %v4951 = vsub.f32 %v90, %v4950
  %v4952 = vand.u32 %v4951, 4294901760
  %v4953 = vsub.f32 %v4951, %v4952
  %v4954 = vand.u32 %v4953, 4294901760
  %4955 = vmatprep.subr.mxu0 %v4954
  %v4956 = vand.u32 %v89, 4294901760
  %v4957 = vsub.f32 %v89, %v4956
  %v4958 = vand.u32 %v4957, 4294901760
  %v4959 = vsub.f32 %v4957, %v4958
  %v4960 = vand.u32 %v4959, 4294901760
  %4961 = vmatpush1.msra.mxu0 %v4960
  %v4962 = vand.u32 %v88, 4294901760
  %v4963 = vsub.f32 %v88, %v4962
  %v4964 = vand.u32 %v4963, 4294901760
  %v4965 = vsub.f32 %v4963, %v4964
  %v4966 = vand.u32 %v4965, 4294901760
  %4967 = vmatprep.subr.mxu0 %v4966
  %v4968 = vand.u32 %v87, 4294901760
  %v4969 = vsub.f32 %v87, %v4968
  %v4970 = vand.u32 %v4969, 4294901760
  %v4971 = vsub.f32 %v4969, %v4970
  %v4972 = vand.u32 %v4971, 4294901760
  %4973 = vmatpush1.msra.mxu0 %v4972
  %v4974 = vand.u32 %v86, 4294901760
  %v4975 = vsub.f32 %v86, %v4974
  %v4976 = vand.u32 %v4975, 4294901760
  %v4977 = vsub.f32 %v4975, %v4976
  %v4978 = vand.u32 %v4977, 4294901760
  %4979 = vmatprep.subr.mxu0 %v4978
  %v4980 = vand.u32 %v85, 4294901760
  %v4981 = vsub.f32 %v85, %v4980
  %v4982 = vand.u32 %v4981, 4294901760
  %v4983 = vsub.f32 %v4981, %v4982
  %v4984 = vand.u32 %v4983, 4294901760
  %4985 = vmatpush1.msra.mxu0 %v4984
  %v4986 = vand.u32 %v84, 4294901760
  %v4987 = vsub.f32 %v84, %v4986
  %v4988 = vand.u32 %v4987, 4294901760
  %v4989 = vsub.f32 %v4987, %v4988
  %v4990 = vand.u32 %v4989, 4294901760
  %4991 = vmatprep.subr.mxu0 %v4990
  %v4992 = vand.u32 %v83, 4294901760
  %v4993 = vsub.f32 %v83, %v4992
  %v4994 = vand.u32 %v4993, 4294901760
  %v4995 = vsub.f32 %v4993, %v4994
  %v4996 = vand.u32 %v4995, 4294901760
  %4997 = vmatpush1.msra.mxu0 %v4996
  %v4998 = vand.u32 %v82, 4294901760
  %v4999 = vsub.f32 %v82, %v4998
  %v5000 = vand.u32 %v4999, 4294901760
  %v5001 = vsub.f32 %v4999, %v5000
  %v5002 = vand.u32 %v5001, 4294901760
  %5003 = vmatprep.subr.mxu0 %v5002
  %v5004 = vand.u32 %v81, 4294901760
  %v5005 = vsub.f32 %v81, %v5004
  %v5006 = vand.u32 %v5005, 4294901760
  %v5007 = vsub.f32 %v5005, %v5006
  %v5008 = vand.u32 %v5007, 4294901760
  %5009 = vmatpush1.msra.mxu0 %v5008
  %5010 = vmatprep.subr.mxu0 0.0
  %5011 = vmatpush2.msra.mxu0 0.0
  %5012 = vmatprep.subr.mxu0 0.0
  %5013 = vmatpush2.msra.mxu0 0.0
  %5014 = vmatprep.subr.mxu0 0.0
  %5015 = vmatpush2.msra.mxu0 0.0
  %5016 = vmatprep.subr.mxu0 0.0
  %5017 = vmatpush2.msra.mxu0 0.0
  %5018 = vmatprep.subr.mxu0 0.0
  %5019 = vmatpush2.msra.mxu0 0.0
  %5020 = vmatprep.subr.mxu0 0.0
  %5021 = vmatpush2.msra.mxu0 0.0
  %5022 = vmatprep.subr.mxu0 0.0
  %5023 = vmatpush2.msra.mxu0 0.0
  %5024 = vmatprep.subr.mxu0 0.0
  %5025 = vmatpush2.msra.mxu0 0.0
  %5026 = vmatprep.subr.mxu0 0.0
  %5027 = vmatpush2.msra.mxu0 0.0
  %5028 = vmatprep.subr.mxu0 0.0
  %5029 = vmatpush2.msra.mxu0 0.0
  %5030 = vmatprep.subr.mxu0 0.0
  %5031 = vmatpush2.msra.mxu0 0.0
  %5032 = vmatprep.subr.mxu0 0.0
  %5033 = vmatpush2.msra.mxu0 0.0
  %5034 = vmatprep.subr.mxu0 0.0
  %5035 = vmatpush2.msra.mxu0 0.0
  %5036 = vmatprep.subr.mxu0 0.0
  %5037 = vmatpush2.msra.mxu0 0.0
  %5038 = vmatprep.subr.mxu0 0.0
  %5039 = vmatpush2.msra.mxu0 0.0
  %5040 = vmatprep.subr.mxu0 0.0
  %5041 = vmatpush2.msra.mxu0 0.0
  %5042 = vmatprep.mubr.f32.mxu0 0.0
  %v5043 = vand.u32 %v4694, 4294901760
  %5044 = vmatmul.mubr.f32.gmra.mxu0 %v5043
  %v5045 = vpop.f32.mrf.mxu0
  %v5046 = vadd.f32 %v4803, %v5045
  %v5047 = vpop.f32.mrf.mxu0
  %v5048 = vadd.f32 %v4805, %v5047
  %5049 = vmatprep.mubr.f32.mxu0 0.0
  %v5050 = vand.u32 %v4696, 4294901760
  %5051 = vmatmul.mubr.f32.gmra.mxu0 %v5050
  %v5052 = vpop.f32.mrf.mxu0
  %v5053 = vadd.f32 %v4814, %v5052
  %v5054 = vpop.f32.mrf.mxu0
  %v5055 = vadd.f32 %v4816, %v5054
  %5056 = vdwg.mxu0
  %v5057 = vand.u32 %v112, 4294901760
  %v5058 = vsub.f32 %v112, %v5057
  %5059 = vmatprep.subr.mxu0 %v5058
  %v5060 = vand.u32 %v111, 4294901760
  %v5061 = vsub.f32 %v111, %v5060
  %5062 = vmatpush1.msra.mxu0 %v5061
  %v5063 = vand.u32 %v110, 4294901760
  %v5064 = vsub.f32 %v110, %v5063
  %5065 = vmatprep.subr.mxu0 %v5064
  %v5066 = vand.u32 %v109, 4294901760
  %v5067 = vsub.f32 %v109, %v5066
  %5068 = vmatpush1.msra.mxu0 %v5067
  %v5069 = vand.u32 %v108, 4294901760
  %v5070 = vsub.f32 %v108, %v5069
  %5071 = vmatprep.subr.mxu0 %v5070
  %v5072 = vand.u32 %v107, 4294901760
  %v5073 = vsub.f32 %v107, %v5072
  %5074 = vmatpush1.msra.mxu0 %v5073
  %v5075 = vand.u32 %v106, 4294901760
  %v5076 = vsub.f32 %v106, %v5075
  %5077 = vmatprep.subr.mxu0 %v5076
  %v5078 = vand.u32 %v105, 4294901760
  %v5079 = vsub.f32 %v105, %v5078
  %5080 = vmatpush1.msra.mxu0 %v5079
  %v5081 = vand.u32 %v104, 4294901760
  %v5082 = vsub.f32 %v104, %v5081
  %5083 = vmatprep.subr.mxu0 %v5082
  %v5084 = vand.u32 %v103, 4294901760
  %v5085 = vsub.f32 %v103, %v5084
  %5086 = vmatpush1.msra.mxu0 %v5085
  %v5087 = vand.u32 %v102, 4294901760
  %v5088 = vsub.f32 %v102, %v5087
  %5089 = vmatprep.subr.mxu0 %v5088
  %v5090 = vand.u32 %v101, 4294901760
  %v5091 = vsub.f32 %v101, %v5090
  %5092 = vmatpush1.msra.mxu0 %v5091
  %v5093 = vand.u32 %v100, 4294901760
  %v5094 = vsub.f32 %v100, %v5093
  %5095 = vmatprep.subr.mxu0 %v5094
  %v5096 = vand.u32 %v99, 4294901760
  %v5097 = vsub.f32 %v99, %v5096
  %5098 = vmatpush1.msra.mxu0 %v5097
  %v5099 = vand.u32 %v98, 4294901760
  %v5100 = vsub.f32 %v98, %v5099
  %5101 = vmatprep.subr.mxu0 %v5100
  %v5102 = vand.u32 %v97, 4294901760
  %v5103 = vsub.f32 %v97, %v5102
  %5104 = vmatpush1.msra.mxu0 %v5103
  %v5105 = vand.u32 %v96, 4294901760
  %v5106 = vsub.f32 %v96, %v5105
  %5107 = vmatprep.subr.mxu0 %v5106
  %v5108 = vand.u32 %v95, 4294901760
  %v5109 = vsub.f32 %v95, %v5108
  %5110 = vmatpush1.msra.mxu0 %v5109
  %v5111 = vand.u32 %v94, 4294901760
  %v5112 = vsub.f32 %v94, %v5111
  %5113 = vmatprep.subr.mxu0 %v5112
  %v5114 = vand.u32 %v93, 4294901760
  %v5115 = vsub.f32 %v93, %v5114
  %5116 = vmatpush1.msra.mxu0 %v5115
  %v5117 = vand.u32 %v92, 4294901760
  %v5118 = vsub.f32 %v92, %v5117
  %5119 = vmatprep.subr.mxu0 %v5118
  %v5120 = vand.u32 %v91, 4294901760
  %v5121 = vsub.f32 %v91, %v5120
  %5122 = vmatpush1.msra.mxu0 %v5121
  %v5123 = vand.u32 %v90, 4294901760
  %v5124 = vsub.f32 %v90, %v5123
  %5125 = vmatprep.subr.mxu0 %v5124
  %v5126 = vand.u32 %v89, 4294901760
  %v5127 = vsub.f32 %v89, %v5126
  %5128 = vmatpush1.msra.mxu0 %v5127
  %v5129 = vand.u32 %v88, 4294901760
  %v5130 = vsub.f32 %v88, %v5129
  %5131 = vmatprep.subr.mxu0 %v5130
  %v5132 = vand.u32 %v87, 4294901760
  %v5133 = vsub.f32 %v87, %v5132
  %5134 = vmatpush1.msra.mxu0 %v5133
  %v5135 = vand.u32 %v86, 4294901760
  %v5136 = vsub.f32 %v86, %v5135
  %5137 = vmatprep.subr.mxu0 %v5136
  %v5138 = vand.u32 %v85, 4294901760
  %v5139 = vsub.f32 %v85, %v5138
  %5140 = vmatpush1.msra.mxu0 %v5139
  %v5141 = vand.u32 %v84, 4294901760
  %v5142 = vsub.f32 %v84, %v5141
  %5143 = vmatprep.subr.mxu0 %v5142
  %v5144 = vand.u32 %v83, 4294901760
  %v5145 = vsub.f32 %v83, %v5144
  %5146 = vmatpush1.msra.mxu0 %v5145
  %v5147 = vand.u32 %v82, 4294901760
  %v5148 = vsub.f32 %v82, %v5147
  %5149 = vmatprep.subr.mxu0 %v5148
  %v5150 = vand.u32 %v81, 4294901760
  %v5151 = vsub.f32 %v81, %v5150
  %5152 = vmatpush1.msra.mxu0 %v5151
  %5153 = vmatprep.subr.mxu0 0.0
  %5154 = vmatpush2.msra.mxu0 0.0
  %5155 = vmatprep.subr.mxu0 0.0
  %5156 = vmatpush2.msra.mxu0 0.0
  %5157 = vmatprep.subr.mxu0 0.0
  %5158 = vmatpush2.msra.mxu0 0.0
  %5159 = vmatprep.subr.mxu0 0.0
  %5160 = vmatpush2.msra.mxu0 0.0
  %5161 = vmatprep.subr.mxu0 0.0
  %5162 = vmatpush2.msra.mxu0 0.0
  %5163 = vmatprep.subr.mxu0 0.0
  %5164 = vmatpush2.msra.mxu0 0.0
  %5165 = vmatprep.subr.mxu0 0.0
  %5166 = vmatpush2.msra.mxu0 0.0
  %5167 = vmatprep.subr.mxu0 0.0
  %5168 = vmatpush2.msra.mxu0 0.0
  %5169 = vmatprep.subr.mxu0 0.0
  %5170 = vmatpush2.msra.mxu0 0.0
  %5171 = vmatprep.subr.mxu0 0.0
  %5172 = vmatpush2.msra.mxu0 0.0
  %5173 = vmatprep.subr.mxu0 0.0
  %5174 = vmatpush2.msra.mxu0 0.0
  %5175 = vmatprep.subr.mxu0 0.0
  %5176 = vmatpush2.msra.mxu0 0.0
  %5177 = vmatprep.subr.mxu0 0.0
  %5178 = vmatpush2.msra.mxu0 0.0
  %5179 = vmatprep.subr.mxu0 0.0
  %5180 = vmatpush2.msra.mxu0 0.0
  %5181 = vmatprep.subr.mxu0 0.0
  %5182 = vmatpush2.msra.mxu0 0.0
  %5183 = vmatprep.subr.mxu0 0.0
  %5184 = vmatpush2.msra.mxu0 0.0
  %5185 = vmatprep.mubr.f32.mxu0 0.0
  %v5186 = vand.u32 %v4694, 4294901760
  %v5187 = vsub.f32 %v4694, %v5186
  %5188 = vmatmul.mubr.f32.gmra.mxu0 %v5187
  %v5189 = vpop.f32.mrf.mxu0
  %v5190 = vadd.f32 %v5046, %v5189
  %v5191 = vpop.f32.mrf.mxu0
  %v5192 = vadd.f32 %v5048, %v5191
  %5193 = vmatprep.mubr.f32.mxu0 0.0
  %v5194 = vand.u32 %v4696, 4294901760
  %v5195 = vsub.f32 %v4696, %v5194
  %5196 = vmatmul.mubr.f32.gmra.mxu0 %v5195
  %v5197 = vpop.f32.mrf.mxu0
  %v5198 = vadd.f32 %v5053, %v5197
  %v5199 = vpop.f32.mrf.mxu0
  %v5200 = vadd.f32 %v5055, %v5199
  %5201 = vdwg.mxu0
  %v5202 = vand.u32 %v112, 4294901760
  %5203 = vmatprep.subr.mxu0 %v5202
  %v5204 = vand.u32 %v111, 4294901760
  %5205 = vmatpush1.msra.mxu0 %v5204
  %v5206 = vand.u32 %v110, 4294901760
  %5207 = vmatprep.subr.mxu0 %v5206
  %v5208 = vand.u32 %v109, 4294901760
  %5209 = vmatpush1.msra.mxu0 %v5208
  %v5210 = vand.u32 %v108, 4294901760
  %5211 = vmatprep.subr.mxu0 %v5210
  %v5212 = vand.u32 %v107, 4294901760
  %5213 = vmatpush1.msra.mxu0 %v5212
  %v5214 = vand.u32 %v106, 4294901760
  %5215 = vmatprep.subr.mxu0 %v5214
  %v5216 = vand.u32 %v105, 4294901760
  %5217 = vmatpush1.msra.mxu0 %v5216
  %v5218 = vand.u32 %v104, 4294901760
  %5219 = vmatprep.subr.mxu0 %v5218
  %v5220 = vand.u32 %v103, 4294901760
  %5221 = vmatpush1.msra.mxu0 %v5220
  %v5222 = vand.u32 %v102, 4294901760
  %5223 = vmatprep.subr.mxu0 %v5222
  %v5224 = vand.u32 %v101, 4294901760
  %5225 = vmatpush1.msra.mxu0 %v5224
  %v5226 = vand.u32 %v100, 4294901760
  %5227 = vmatprep.subr.mxu0 %v5226
  %v5228 = vand.u32 %v99, 4294901760
  %5229 = vmatpush1.msra.mxu0 %v5228
  %v5230 = vand.u32 %v98, 4294901760
  %5231 = vmatprep.subr.mxu0 %v5230
  %v5232 = vand.u32 %v97, 4294901760
  %5233 = vmatpush1.msra.mxu0 %v5232
  %v5234 = vand.u32 %v96, 4294901760
  %5235 = vmatprep.subr.mxu0 %v5234
  %v5236 = vand.u32 %v95, 4294901760
  %5237 = vmatpush1.msra.mxu0 %v5236
  %v5238 = vand.u32 %v94, 4294901760
  %5239 = vmatprep.subr.mxu0 %v5238
  %v5240 = vand.u32 %v93, 4294901760
  %5241 = vmatpush1.msra.mxu0 %v5240
  %v5242 = vand.u32 %v92, 4294901760
  %5243 = vmatprep.subr.mxu0 %v5242
  %v5244 = vand.u32 %v91, 4294901760
  %5245 = vmatpush1.msra.mxu0 %v5244
  %v5246 = vand.u32 %v90, 4294901760
  %5247 = vmatprep.subr.mxu0 %v5246
  %v5248 = vand.u32 %v89, 4294901760
  %5249 = vmatpush1.msra.mxu0 %v5248
  %v5250 = vand.u32 %v88, 4294901760
  %5251 = vmatprep.subr.mxu0 %v5250
  %v5252 = vand.u32 %v87, 4294901760
  %5253 = vmatpush1.msra.mxu0 %v5252
  %v5254 = vand.u32 %v86, 4294901760
  %5255 = vmatprep.subr.mxu0 %v5254
  %v5256 = vand.u32 %v85, 4294901760
  %5257 = vmatpush1.msra.mxu0 %v5256
  %v5258 = vand.u32 %v84, 4294901760
  %5259 = vmatprep.subr.mxu0 %v5258
  %v5260 = vand.u32 %v83, 4294901760
  %5261 = vmatpush1.msra.mxu0 %v5260
  %v5262 = vand.u32 %v82, 4294901760
  %5263 = vmatprep.subr.mxu0 %v5262
  %v5264 = vand.u32 %v81, 4294901760
  %5265 = vmatpush1.msra.mxu0 %v5264
  %5266 = vmatprep.subr.mxu0 0.0
  %5267 = vmatpush2.msra.mxu0 0.0
  %5268 = vmatprep.subr.mxu0 0.0
  %5269 = vmatpush2.msra.mxu0 0.0
  %5270 = vmatprep.subr.mxu0 0.0
  %5271 = vmatpush2.msra.mxu0 0.0
  %5272 = vmatprep.subr.mxu0 0.0
  %5273 = vmatpush2.msra.mxu0 0.0
  %5274 = vmatprep.subr.mxu0 0.0
  %5275 = vmatpush2.msra.mxu0 0.0
  %5276 = vmatprep.subr.mxu0 0.0
  %5277 = vmatpush2.msra.mxu0 0.0
  %5278 = vmatprep.subr.mxu0 0.0
  %5279 = vmatpush2.msra.mxu0 0.0
  %5280 = vmatprep.subr.mxu0 0.0
  %5281 = vmatpush2.msra.mxu0 0.0
  %5282 = vmatprep.subr.mxu0 0.0
  %5283 = vmatpush2.msra.mxu0 0.0
  %5284 = vmatprep.subr.mxu0 0.0
  %5285 = vmatpush2.msra.mxu0 0.0
  %5286 = vmatprep.subr.mxu0 0.0
  %5287 = vmatpush2.msra.mxu0 0.0
  %5288 = vmatprep.subr.mxu0 0.0
  %5289 = vmatpush2.msra.mxu0 0.0
  %5290 = vmatprep.subr.mxu0 0.0
  %5291 = vmatpush2.msra.mxu0 0.0
  %5292 = vmatprep.subr.mxu0 0.0
  %5293 = vmatpush2.msra.mxu0 0.0
  %5294 = vmatprep.subr.mxu0 0.0
  %5295 = vmatpush2.msra.mxu0 0.0
  %5296 = vmatprep.subr.mxu0 0.0
  %5297 = vmatpush2.msra.mxu0 0.0
  %5298 = vmatprep.mubr.f32.mxu0 0.0
  %v5299 = vand.u32 %v4694, 4294901760
  %v5300 = vsub.f32 %v4694, %v5299
  %v5301 = vand.u32 %v5300, 4294901760
  %5302 = vmatmul.mubr.f32.gmra.mxu0 %v5301
  %v5303 = vpop.f32.mrf.mxu0
  %v5304 = vadd.f32 %v5190, %v5303
  %v5305 = vpop.f32.mrf.mxu0
  %v5306 = vadd.f32 %v5192, %v5305
  %5307 = vmatprep.mubr.f32.mxu0 0.0
  %v5308 = vand.u32 %v4696, 4294901760
  %v5309 = vsub.f32 %v4696, %v5308
  %v5310 = vand.u32 %v5309, 4294901760
  %5311 = vmatmul.mubr.f32.gmra.mxu0 %v5310
  %v5312 = vpop.f32.mrf.mxu0
  %v5313 = vadd.f32 %v5198, %v5312
  %v5314 = vpop.f32.mrf.mxu0
  %v5315 = vadd.f32 %v5200, %v5314
  %5316 = vdwg.mxu0
  %v5317 = vand.u32 %v112, 4294901760
  %v5318 = vsub.f32 %v112, %v5317
  %v5319 = vand.u32 %v5318, 4294901760
  %5320 = vmatprep.subr.mxu0 %v5319
  %v5321 = vand.u32 %v111, 4294901760
  %v5322 = vsub.f32 %v111, %v5321
  %v5323 = vand.u32 %v5322, 4294901760
  %5324 = vmatpush1.msra.mxu0 %v5323
  %v5325 = vand.u32 %v110, 4294901760
  %v5326 = vsub.f32 %v110, %v5325
  %v5327 = vand.u32 %v5326, 4294901760
  %5328 = vmatprep.subr.mxu0 %v5327
  %v5329 = vand.u32 %v109, 4294901760
  %v5330 = vsub.f32 %v109, %v5329
  %v5331 = vand.u32 %v5330, 4294901760
  %5332 = vmatpush1.msra.mxu0 %v5331
  %v5333 = vand.u32 %v108, 4294901760
  %v5334 = vsub.f32 %v108, %v5333
  %v5335 = vand.u32 %v5334, 4294901760
  %5336 = vmatprep.subr.mxu0 %v5335
  %v5337 = vand.u32 %v107, 4294901760
  %v5338 = vsub.f32 %v107, %v5337
  %v5339 = vand.u32 %v5338, 4294901760
  %5340 = vmatpush1.msra.mxu0 %v5339
  %v5341 = vand.u32 %v106, 4294901760
  %v5342 = vsub.f32 %v106, %v5341
  %v5343 = vand.u32 %v5342, 4294901760
  %5344 = vmatprep.subr.mxu0 %v5343
  %v5345 = vand.u32 %v105, 4294901760
  %v5346 = vsub.f32 %v105, %v5345
  %v5347 = vand.u32 %v5346, 4294901760
  %5348 = vmatpush1.msra.mxu0 %v5347
  %v5349 = vand.u32 %v104, 4294901760
  %v5350 = vsub.f32 %v104, %v5349
  %v5351 = vand.u32 %v5350, 4294901760
  %5352 = vmatprep.subr.mxu0 %v5351
  %v5353 = vand.u32 %v103, 4294901760
  %v5354 = vsub.f32 %v103, %v5353
  %v5355 = vand.u32 %v5354, 4294901760
  %5356 = vmatpush1.msra.mxu0 %v5355
  %v5357 = vand.u32 %v102, 4294901760
  %v5358 = vsub.f32 %v102, %v5357
  %v5359 = vand.u32 %v5358, 4294901760
  %5360 = vmatprep.subr.mxu0 %v5359
  %v5361 = vand.u32 %v101, 4294901760
  %v5362 = vsub.f32 %v101, %v5361
  %v5363 = vand.u32 %v5362, 4294901760
  %5364 = vmatpush1.msra.mxu0 %v5363
  %v5365 = vand.u32 %v100, 4294901760
  %v5366 = vsub.f32 %v100, %v5365
  %v5367 = vand.u32 %v5366, 4294901760
  %5368 = vmatprep.subr.mxu0 %v5367
  %v5369 = vand.u32 %v99, 4294901760
  %v5370 = vsub.f32 %v99, %v5369
  %v5371 = vand.u32 %v5370, 4294901760
  %5372 = vmatpush1.msra.mxu0 %v5371
  %v5373 = vand.u32 %v98, 4294901760
  %v5374 = vsub.f32 %v98, %v5373
  %v5375 = vand.u32 %v5374, 4294901760
  %5376 = vmatprep.subr.mxu0 %v5375
  %v5377 = vand.u32 %v97, 4294901760
  %v5378 = vsub.f32 %v97, %v5377
  %v5379 = vand.u32 %v5378, 4294901760
  %5380 = vmatpush1.msra.mxu0 %v5379
  %v5381 = vand.u32 %v96, 4294901760
  %v5382 = vsub.f32 %v96, %v5381
  %v5383 = vand.u32 %v5382, 4294901760
  %5384 = vmatprep.subr.mxu0 %v5383
  %v5385 = vand.u32 %v95, 4294901760
  %v5386 = vsub.f32 %v95, %v5385
  %v5387 = vand.u32 %v5386, 4294901760
  %5388 = vmatpush1.msra.mxu0 %v5387
  %v5389 = vand.u32 %v94, 4294901760
  %v5390 = vsub.f32 %v94, %v5389
  %v5391 = vand.u32 %v5390, 4294901760
  %5392 = vmatprep.subr.mxu0 %v5391
  %v5393 = vand.u32 %v93, 4294901760
  %v5394 = vsub.f32 %v93, %v5393
  %v5395 = vand.u32 %v5394, 4294901760
  %5396 = vmatpush1.msra.mxu0 %v5395
  %v5397 = vand.u32 %v92, 4294901760
  %v5398 = vsub.f32 %v92, %v5397
  %v5399 = vand.u32 %v5398, 4294901760
  %5400 = vmatprep.subr.mxu0 %v5399
  %v5401 = vand.u32 %v91, 4294901760
  %v5402 = vsub.f32 %v91, %v5401
  %v5403 = vand.u32 %v5402, 4294901760
  %5404 = vmatpush1.msra.mxu0 %v5403
  %v5405 = vand.u32 %v90, 4294901760
  %v5406 = vsub.f32 %v90, %v5405
  %v5407 = vand.u32 %v5406, 4294901760
  %5408 = vmatprep.subr.mxu0 %v5407
  %v5409 = vand.u32 %v89, 4294901760
  %v5410 = vsub.f32 %v89, %v5409
  %v5411 = vand.u32 %v5410, 4294901760
  %5412 = vmatpush1.msra.mxu0 %v5411
  %v5413 = vand.u32 %v88, 4294901760
  %v5414 = vsub.f32 %v88, %v5413
  %v5415 = vand.u32 %v5414, 4294901760
  %5416 = vmatprep.subr.mxu0 %v5415
  %v5417 = vand.u32 %v87, 4294901760
  %v5418 = vsub.f32 %v87, %v5417
  %v5419 = vand.u32 %v5418, 4294901760
  %5420 = vmatpush1.msra.mxu0 %v5419
  %v5421 = vand.u32 %v86, 4294901760
  %v5422 = vsub.f32 %v86, %v5421
  %v5423 = vand.u32 %v5422, 4294901760
  %5424 = vmatprep.subr.mxu0 %v5423
  %v5425 = vand.u32 %v85, 4294901760
  %v5426 = vsub.f32 %v85, %v5425
  %v5427 = vand.u32 %v5426, 4294901760
  %5428 = vmatpush1.msra.mxu0 %v5427
  %v5429 = vand.u32 %v84, 4294901760
  %v5430 = vsub.f32 %v84, %v5429
  %v5431 = vand.u32 %v5430, 4294901760
  %5432 = vmatprep.subr.mxu0 %v5431
  %v5433 = vand.u32 %v83, 4294901760
  %v5434 = vsub.f32 %v83, %v5433
  %v5435 = vand.u32 %v5434, 4294901760
  %5436 = vmatpush1.msra.mxu0 %v5435
  %v5437 = vand.u32 %v82, 4294901760
  %v5438 = vsub.f32 %v82, %v5437
  %v5439 = vand.u32 %v5438, 4294901760
  %5440 = vmatprep.subr.mxu0 %v5439
  %v5441 = vand.u32 %v81, 4294901760
  %v5442 = vsub.f32 %v81, %v5441
  %v5443 = vand.u32 %v5442, 4294901760
  %5444 = vmatpush1.msra.mxu0 %v5443
  %5445 = vmatprep.subr.mxu0 0.0
  %5446 = vmatpush2.msra.mxu0 0.0
  %5447 = vmatprep.subr.mxu0 0.0
  %5448 = vmatpush2.msra.mxu0 0.0
  %5449 = vmatprep.subr.mxu0 0.0
  %5450 = vmatpush2.msra.mxu0 0.0
  %5451 = vmatprep.subr.mxu0 0.0
  %5452 = vmatpush2.msra.mxu0 0.0
  %5453 = vmatprep.subr.mxu0 0.0
  %5454 = vmatpush2.msra.mxu0 0.0
  %5455 = vmatprep.subr.mxu0 0.0
  %5456 = vmatpush2.msra.mxu0 0.0
  %5457 = vmatprep.subr.mxu0 0.0
  %5458 = vmatpush2.msra.mxu0 0.0
  %5459 = vmatprep.subr.mxu0 0.0
  %5460 = vmatpush2.msra.mxu0 0.0
  %5461 = vmatprep.subr.mxu0 0.0
  %5462 = vmatpush2.msra.mxu0 0.0
  %5463 = vmatprep.subr.mxu0 0.0
  %5464 = vmatpush2.msra.mxu0 0.0
  %5465 = vmatprep.subr.mxu0 0.0
  %5466 = vmatpush2.msra.mxu0 0.0
  %5467 = vmatprep.subr.mxu0 0.0
  %5468 = vmatpush2.msra.mxu0 0.0
  %5469 = vmatprep.subr.mxu0 0.0
  %5470 = vmatpush2.msra.mxu0 0.0
  %5471 = vmatprep.subr.mxu0 0.0
  %5472 = vmatpush2.msra.mxu0 0.0
  %5473 = vmatprep.subr.mxu0 0.0
  %5474 = vmatpush2.msra.mxu0 0.0
  %5475 = vmatprep.subr.mxu0 0.0
  %5476 = vmatpush2.msra.mxu0 0.0
  %5477 = vmatprep.mubr.f32.mxu0 0.0
  %v5478 = vand.u32 %v4694, 4294901760
  %5479 = vmatmul.mubr.f32.gmra.mxu0 %v5478
  %v5480 = vpop.f32.mrf.mxu0
  %v5481 = vadd.f32 %v5304, %v5480
  %v5482 = vpop.f32.mrf.mxu0
  %v5483 = vadd.f32 %v5306, %v5482
  %5484 = vmatprep.mubr.f32.mxu0 0.0
  %v5485 = vand.u32 %v4696, 4294901760
  %5486 = vmatmul.mubr.f32.gmra.mxu0 %v5485
  %v5487 = vpop.f32.mrf.mxu0
  %v5488 = vadd.f32 %v5313, %v5487
  %v5489 = vpop.f32.mrf.mxu0
  %v5490 = vadd.f32 %v5315, %v5489
  %5491 = vdwg.mxu0
  %v5492 = vand.u32 %v112, 4294901760
  %5493 = vmatprep.subr.mxu0 %v5492
  %v5494 = vand.u32 %v111, 4294901760
  %5495 = vmatpush1.msra.mxu0 %v5494
  %v5496 = vand.u32 %v110, 4294901760
  %5497 = vmatprep.subr.mxu0 %v5496
  %v5498 = vand.u32 %v109, 4294901760
  %5499 = vmatpush1.msra.mxu0 %v5498
  %v5500 = vand.u32 %v108, 4294901760
  %5501 = vmatprep.subr.mxu0 %v5500
  %v5502 = vand.u32 %v107, 4294901760
  %5503 = vmatpush1.msra.mxu0 %v5502
  %v5504 = vand.u32 %v106, 4294901760
  %5505 = vmatprep.subr.mxu0 %v5504
  %v5506 = vand.u32 %v105, 4294901760
  %5507 = vmatpush1.msra.mxu0 %v5506
  %v5508 = vand.u32 %v104, 4294901760
  %5509 = vmatprep.subr.mxu0 %v5508
  %v5510 = vand.u32 %v103, 4294901760
  %5511 = vmatpush1.msra.mxu0 %v5510
  %v5512 = vand.u32 %v102, 4294901760
  %5513 = vmatprep.subr.mxu0 %v5512
  %v5514 = vand.u32 %v101, 4294901760
  %5515 = vmatpush1.msra.mxu0 %v5514
  %v5516 = vand.u32 %v100, 4294901760
  %5517 = vmatprep.subr.mxu0 %v5516
  %v5518 = vand.u32 %v99, 4294901760
  %5519 = vmatpush1.msra.mxu0 %v5518
  %v5520 = vand.u32 %v98, 4294901760
  %5521 = vmatprep.subr.mxu0 %v5520
  %v5522 = vand.u32 %v97, 4294901760
  %5523 = vmatpush1.msra.mxu0 %v5522
  %v5524 = vand.u32 %v96, 4294901760
  %5525 = vmatprep.subr.mxu0 %v5524
  %v5526 = vand.u32 %v95, 4294901760
  %5527 = vmatpush1.msra.mxu0 %v5526
  %v5528 = vand.u32 %v94, 4294901760
  %5529 = vmatprep.subr.mxu0 %v5528
  %v5530 = vand.u32 %v93, 4294901760
  %5531 = vmatpush1.msra.mxu0 %v5530
  %v5532 = vand.u32 %v92, 4294901760
  %5533 = vmatprep.subr.mxu0 %v5532
  %v5534 = vand.u32 %v91, 4294901760
  %5535 = vmatpush1.msra.mxu0 %v5534
  %v5536 = vand.u32 %v90, 4294901760
  %5537 = vmatprep.subr.mxu0 %v5536
  %v5538 = vand.u32 %v89, 4294901760
  %5539 = vmatpush1.msra.mxu0 %v5538
  %v5540 = vand.u32 %v88, 4294901760
  %5541 = vmatprep.subr.mxu0 %v5540
  %v5542 = vand.u32 %v87, 4294901760
  %5543 = vmatpush1.msra.mxu0 %v5542
  %v5544 = vand.u32 %v86, 4294901760
  %5545 = vmatprep.subr.mxu0 %v5544
  %v5546 = vand.u32 %v85, 4294901760
  %5547 = vmatpush1.msra.mxu0 %v5546
  %v5548 = vand.u32 %v84, 4294901760
  %5549 = vmatprep.subr.mxu0 %v5548
  %v5550 = vand.u32 %v83, 4294901760
  %5551 = vmatpush1.msra.mxu0 %v5550
  %v5552 = vand.u32 %v82, 4294901760
  %5553 = vmatprep.subr.mxu0 %v5552
  %v5554 = vand.u32 %v81, 4294901760
  %5555 = vmatpush1.msra.mxu0 %v5554
  %5556 = vmatprep.subr.mxu0 0.0
  %5557 = vmatpush2.msra.mxu0 0.0
  %5558 = vmatprep.subr.mxu0 0.0
  %5559 = vmatpush2.msra.mxu0 0.0
  %5560 = vmatprep.subr.mxu0 0.0
  %5561 = vmatpush2.msra.mxu0 0.0
  %5562 = vmatprep.subr.mxu0 0.0
  %5563 = vmatpush2.msra.mxu0 0.0
  %5564 = vmatprep.subr.mxu0 0.0
  %5565 = vmatpush2.msra.mxu0 0.0
  %5566 = vmatprep.subr.mxu0 0.0
  %5567 = vmatpush2.msra.mxu0 0.0
  %5568 = vmatprep.subr.mxu0 0.0
  %5569 = vmatpush2.msra.mxu0 0.0
  %5570 = vmatprep.subr.mxu0 0.0
  %5571 = vmatpush2.msra.mxu0 0.0
  %5572 = vmatprep.subr.mxu0 0.0
  %5573 = vmatpush2.msra.mxu0 0.0
  %5574 = vmatprep.subr.mxu0 0.0
  %5575 = vmatpush2.msra.mxu0 0.0
  %5576 = vmatprep.subr.mxu0 0.0
  %5577 = vmatpush2.msra.mxu0 0.0
  %5578 = vmatprep.subr.mxu0 0.0
  %5579 = vmatpush2.msra.mxu0 0.0
  %5580 = vmatprep.subr.mxu0 0.0
  %5581 = vmatpush2.msra.mxu0 0.0
  %5582 = vmatprep.subr.mxu0 0.0
  %5583 = vmatpush2.msra.mxu0 0.0
  %5584 = vmatprep.subr.mxu0 0.0
  %5585 = vmatpush2.msra.mxu0 0.0
  %5586 = vmatprep.subr.mxu0 0.0
  %5587 = vmatpush2.msra.mxu0 0.0
  %5588 = vmatprep.mubr.f32.mxu0 0.0
  %v5589 = vand.u32 %v4694, 4294901760
  %5590 = vmatmul.mubr.f32.gmra.mxu0 %v5589
  %v5591 = vpop.f32.mrf.mxu0
  %v5592 = vadd.f32 %v5481, %v5591
  %v5593 = vpop.f32.mrf.mxu0
  %v5594 = vadd.f32 %v5483, %v5593
  %5595 = vmatprep.mubr.f32.mxu0 0.0
  %v5596 = vand.u32 %v4696, 4294901760
  %5597 = vmatmul.mubr.f32.gmra.mxu0 %v5596
  %v5598 = vpop.f32.mrf.mxu0
  %v5599 = vadd.f32 %v5488, %v5598
  %v5600 = vpop.f32.mrf.mxu0
  %v5601 = vadd.f32 %v5490, %v5600
  %5602 = vdwg.mxu0
  %v5603 = vadd.f32 %v4681, %v5592
  %v5604 = vadd.f32 %v4683, %v5594
  %v5605 = vadd.f32 %v4688, %v5599
  %v5606 = vadd.f32 %v4690, %v5601
  %v5607 = vadd.f32 %v5603, %v2855
  %v5608 = vadd.f32 %v5604, %v2859
  %v5609 = vadd.f32 %v5605, %v2855
  %v5610 = vadd.f32 %v5606, %v2859
  %s5611 = scalar_lea.vmem %s3, 32
  %5612 = vst [vmem:[%s5611] sm:$0xff] %v5607
  %5613 = vst [vmem:[%s5611 + $0x8] sm:$0xff] %v5608
  %5614 = vst [vmem:[%s5611 + $0x10] sm:$0xff] %v5609
  %5615 = vst [vmem:[%s5611 + $0x18] sm:$0xff] %v5610
  // Predicated region
  $region14: #{upsample_forward.1} parent=0 // pred_check
    _
  $region15: #{upsample_forward.1} parent=0 // pred_check_branch
    %5617 = sbr.rel (0) target = $region17
  $region16: #{upsample_forward.1} parent=0 // pred_region
    _
  $region17: #{upsample_forward.1} parent=0 // pred_fallthru
    _
  // Predicated region
  $region18: #{upsample_forward.1} parent=0 // pred_check
    _
  $region19: #{upsample_forward.1} parent=0 // pred_check_branch
    %5619 = sbr.rel (0) target = $region21
  $region20: #{upsample_forward.1} parent=0 // pred_region
    _
  $region21: #{upsample_forward.1} parent=0 // pred_fallthru
    _

</llo_original>
